<compile_context>
chip_gen: v7x
topology: tpu7x:2x2x1
jax: 0.10.0
libtpu: 0.0.40
codegen_flags: <defaults>
</compile_context>

<pallas_src>
import functools
import math

import jax
import jax.numpy as jnp
from jax.experimental import pallas as pl
from jax.experimental.pallas import tpu as pltpu

LANE = 128


def _pad_dim(n):
    return ((n + LANE - 1) // LANE) * LANE


# ----------------------------- fused kernel ----------------------------------

def _fused_audio_encoder_kernel(
        frames_ref, mel_w_ref, mel_b_ref, c1_w_ref, c1_b_ref,
        s2_ref, c2_w_ref, c2_b_ref, pos_ref,
        ln1_w_ref, ln1_b_ref, wq_ref, bq_ref, wk_ref, wv_ref, bv_ref,
        wo_ref, bo_ref, ln2_w_ref, ln2_b_ref, w1_ref, b1_ref, w2_ref, b2_ref,
        lnf_w_ref, lnf_b_ref, o_ref,
        *, num_layers, num_heads, head_dim, d_real, t0, t_enc, bpg):
    f32, bf16 = jnp.float32, jnp.bfloat16
    bt0 = bpg * t0          # stacked rows entering conv1
    bt = bpg * t_enc        # stacked rows in the encoder body
    d_pad = o_ref.shape[-1]

    # Padded lanes (>= d_real) of the residual stream stay zero, and LayerNorm
    # statistics additionally mask them so the invariant is not load-bearing.
    lane_mask = (jax.lax.broadcasted_iota(jnp.int32, (1, d_pad), 1)
                 < d_real).astype(f32)
    inv_d = 1.0 / d_real

    def gelu(x):
        # TODO(synk): PyTorch/Whisper uses exact erf GELU; tanh approximation
        # is used for guaranteed Mosaic lowering (small numeric divergence).
        return 0.5 * x * (1.0 + jnp.tanh(
            0.7978845608028654 * (x + 0.044715 * x * x * x)))

    def layernorm(x, w, b, eps=1e-5):
        xm = x * lane_mask
        mu = jnp.sum(xm, axis=-1, keepdims=True) * inv_d
        diff = (x - mu) * lane_mask
        var = jnp.sum(diff * diff, axis=-1, keepdims=True) * inv_d
        return diff * jax.lax.rsqrt(var + eps) * w + b

    # ---- "log-mel" front end: framing + learned filterbank + log|.| ----
    frames = frames_ref[...].astype(bf16)                      # (bt0, FRAME_PAD)
    mel = jnp.dot(frames, mel_w_ref[...],
                  preferred_element_type=f32) + mel_b_ref[...]
    feats_f = jnp.log(jnp.abs(mel) + 1e-5)                     # (bt0, MEL_PAD)

    # ---- conv1: k=3, s=1, p=1, GELU.  Time shifts via XLU rolls + masks ----
    row = jax.lax.broadcasted_iota(jnp.int32, (bt0, 1), 0)
    first_row = jnp.zeros((bt0, 1), jnp.bool_)
    last_row = jnp.zeros((bt0, 1), jnp.bool_)
    for b in range(bpg):                        # static; per-batch boundaries
        first_row = jnp.logical_or(first_row, row == b * t0)
        last_row = jnp.logical_or(last_row, row == b * t0 + t0 - 1)
    not_first = jnp.logical_not(first_row).astype(f32)
    not_last = jnp.logical_not(last_row).astype(f32)

    prev_f = (pltpu.roll(feats_f, 1, 0) * not_first).astype(bf16)        # x[t-1]
    cent_f = feats_f.astype(bf16)                                         # x[t]
    next_f = (pltpu.roll(feats_f, bt0 - 1, 0) * not_last).astype(bf16)    # x[t+1]
    acc = jnp.dot(prev_f, c1_w_ref[0], preferred_element_type=f32)
    acc = acc + jnp.dot(cent_f, c1_w_ref[1], preferred_element_type=f32)
    acc = acc + jnp.dot(next_f, c1_w_ref[2], preferred_element_type=f32)
    x1 = gelu(acc + c1_b_ref[...]).astype(bf16)                 # (bt0, D_PAD)

    # ---- conv2: k=3, s=2, p=1, GELU + sinusoidal pos-emb ----
    # Stride-2 gather via tiny 0/1 block-diagonal matrices (per batch block).
    acc = jnp.zeros((bt, d_pad), f32)
    for k in range(3):
        xk = jnp.dot(s2_ref[k], x1, preferred_element_type=f32).astype(bf16)
        acc = acc + jnp.dot(xk, c2_w_ref[k], preferred_element_type=f32)
    x = gelu(acc + c2_b_ref[...]) + pos_ref[...]                # (bt, D_PAD) f32

    # ---- cross-batch attention mask (only needed when batch is folded) ----
    if bpg > 1:
        r = jax.lax.broadcasted_iota(jnp.int32, (bt, bt), 0)
        c = jax.lax.broadcasted_iota(jnp.int32, (bt, bt), 1)
        same = jnp.zeros((bt, bt), jnp.bool_)
        for b in range(bpg):
            rin = jnp.logical_and(r >= b * t_enc, r < (b + 1) * t_enc)
            cin = jnp.logical_and(c >= b * t_enc, c < (b + 1) * t_enc)
            same = jnp.logical_or(same, jnp.logical_and(rin, cin))
        attn_bias = jnp.where(same, 0.0, -1e30).astype(f32)
    else:
        attn_bias = None

    # ---- transformer encoder layers (weights stacked on a layer axis) ----
    # TODO(synk): at Whisper scale (T=1500) tile keys with an online softmax
    # instead of materializing the full (bt, bt) score block.
    def layer(l, x):
        # pre-LN MHSA; heads packed into lanes -> one matmul per projection.
        h1 = layernorm(x, ln1_w_ref[l], ln1_b_ref[l]).astype(bf16)
        q = (jnp.dot(h1, wq_ref[l], preferred_element_type=f32)
             + bq_ref[l]).astype(bf16)           # softmax scale folded into Wq
        kx = jnp.dot(h1, wk_ref[l], preferred_element_type=f32).astype(bf16)
        v = (jnp.dot(h1, wv_ref[l], preferred_element_type=f32)
             + bv_ref[l]).astype(bf16)

        ctx = []
        for h in range(num_heads):              # static; head_dim-wide slices
            sl = slice(h * head_dim, (h + 1) * head_dim)
            s = jax.lax.dot_general(q[:, sl], kx[:, sl],
                                    (((1,), (1,)), ((), ())),
                                    preferred_element_type=f32)    # (bt, bt)
            if attn_bias is not None:
                s = s + attn_bias
            s = s - jnp.max(s, axis=-1, keepdims=True)
            p = jnp.exp(s)
            p = p * pl.reciprocal(jnp.sum(p, axis=-1, keepdims=True),
                                  approx=True)
            ctx.append(jnp.dot(p.astype(bf16), v[:, sl],
                               preferred_element_type=f32))
        o_heads = jnp.concatenate(ctx, axis=-1).astype(bf16)       # (bt, H*hd)
        # head-sum fused into the packed output projection (rows = heads).
        x = x + jnp.dot(o_heads, wo_ref[l],
                        preferred_element_type=f32) + bo_ref[l]

        # pre-LN GELU MLP
        h2 = layernorm(x, ln2_w_ref[l], ln2_b_ref[l]).astype(bf16)
        m = gelu(jnp.dot(h2, w1_ref[l], preferred_element_type=f32)
                 + b1_ref[l]).astype(bf16)
        x = x + jnp.dot(m, w2_ref[l], preferred_element_type=f32) + b2_ref[l]
        return x

    x = jax.lax.fori_loop(0, num_layers, layer, x)

    # ---- final LN + per-utterance mean pool over time ----
    y = layernorm(x, lnf_w_ref[...], lnf_b_ref[...])
    for b in range(bpg):
        seg = y[b * t_enc:(b + 1) * t_enc, :]
        o_ref[b] = jnp.mean(seg, axis=0, keepdims=True).astype(o_ref.dtype)


# ------------------------------ host-side glue --------------------------------

def sinusoid_pos_emb(length, d):
    half = d // 2
    log_ts = math.log(10000.0) / max(half - 1, 1)
    inv = jnp.exp(-log_ts * jnp.arange(half, dtype=jnp.float32))
    pos = jnp.arange(length, dtype=jnp.float32)[:, None] * inv[None, :]
    return jnp.concatenate([jnp.sin(pos), jnp.cos(pos)], axis=-1)


def _make_strided_gather(t_out, t_in, stride, kernel_size=3, pad=1):
    # gather[k] @ x  ==  x[stride*t + k - pad]  (zero rows where out of range)
    t = jnp.arange(t_out)[:, None]
    s = jnp.arange(t_in)[None, :]
    return jnp.stack([(s == (stride * t + k - pad)).astype(jnp.float32)
                      for k in range(kernel_size)])


def _pad_to(a, shape, dtype=jnp.float32):
    z = jnp.zeros(shape, jnp.float32)
    z = z.at[tuple(slice(0, d) for d in a.shape)].set(a.astype(jnp.float32))
    return z.astype(dtype)


def init_params(key, *, frame_len, n_mels, d_model, ffn, n_layers, n_heads,
                t_enc):
    bf16 = jnp.bfloat16
    head_dim = d_model // n_heads
    frame_pad, mel_pad = _pad_dim(frame_len), _pad_dim(n_mels)
    d_pad, ffn_pad = _pad_dim(d_model), _pad_dim(ffn)
    keys = iter(jax.random.split(key, 8 + 8 * n_layers))

    def nrm(shape, scale=0.02):
        return scale * jax.random.normal(next(keys), shape, jnp.float32)

    p = {
        "mel_w": _pad_to(nrm((frame_len, n_mels), 0.1), (frame_pad, mel_pad), bf16),
        "mel_b": jnp.zeros((1, mel_pad), jnp.float32),
        "c1_w": _pad_to(nrm((3, n_mels, d_model)), (3, mel_pad, d_pad), bf16),
        "c1_b": jnp.zeros((1, d_pad), jnp.float32),
        "c2_w": _pad_to(nrm((3, d_model, d_model)), (3, d_pad, d_pad), bf16),
        "c2_b": jnp.zeros((1, d_pad), jnp.float32),
        "pos": _pad_to(sinusoid_pos_emb(t_enc, d_model), (t_enc, d_pad)),
        "lnf_w": _pad_to(jnp.ones((1, d_model)), (1, d_pad)),
        "lnf_b": jnp.zeros((1, d_pad), jnp.float32),
    }

    scale = head_dim ** -0.5                 # folded into Wq/bq (static)
    per = {k: [] for k in ("ln1_w", "ln1_b", "wq", "bq", "wk", "wv", "bv",
                           "wo", "bo", "ln2_w", "ln2_b", "w1", "b1", "w2", "b2")}
    for _ in range(n_layers):
        per["ln1_w"].append(_pad_to(jnp.ones((1, d_model)), (1, d_pad)))
        per["ln1_b"].append(jnp.zeros((1, d_pad), jnp.float32))
        # heads packed along output lanes (columns h*hd : (h+1)*hd)
        per["wq"].append(_pad_to(nrm((d_model, d_model)) * scale, (d_pad, d_pad)))
        per["bq"].append(jnp.zeros((1, d_pad), jnp.float32))
        per["wk"].append(_pad_to(nrm((d_model, d_model)), (d_pad, d_pad)))
        per["wv"].append(_pad_to(nrm((d_model, d_model)), (d_pad, d_pad)))
        per["bv"].append(jnp.zeros((1, d_pad), jnp.float32))
        # output projection: rows = concatenated heads (contraction dim)
        per["wo"].append(_pad_to(nrm((d_model, d_model)), (d_model, d_pad)))
        per["bo"].append(jnp.zeros((1, d_pad), jnp.float32))
        per["ln2_w"].append(_pad_to(jnp.ones((1, d_model)), (1, d_pad)))
        per["ln2_b"].append(jnp.zeros((1, d_pad), jnp.float32))
        per["w1"].append(_pad_to(nrm((d_model, ffn)), (d_pad, ffn_pad)))
        per["b1"].append(jnp.zeros((1, ffn_pad), jnp.float32))
        per["w2"].append(_pad_to(nrm((ffn, d_model)), (ffn_pad, d_pad)))
        per["b2"].append(jnp.zeros((1, d_pad), jnp.float32))

    matmul_weights = {"wq", "wk", "wv", "wo", "w1", "w2"}
    for name, vals in per.items():
        arr = jnp.stack(vals)
        p[name] = arr.astype(bf16) if name in matmul_weights else arr
    return p


def _pick_n_groups(batch):
    # v7x has two TensorCores per chip: one batch element per TC via a size-2
    # "parallel" grid.  Single-TC chips (v5e/v6e): fold the whole batch into
    # one grid step so every matmul sees B*T rows (better MXU fill, no
    # per-step overhead, weights fetched once).
    try:
        kind = jax.devices()[0].device_kind.lower()
    except Exception:
        kind = ""
    if "7" in kind and batch % 2 == 0:
        return 2
    return 1


def audio_encoder_forward(audio_waveform, params, *, frame_len, d_model,
                          num_heads, num_layers, n_groups=None):
    """audio_waveform: (B, n_samples) float32 -> (embeddings (B, D), None)."""
    B, n_samples = audio_waveform.shape
    t0 = n_samples // frame_len
    t_enc = t0 // 2
    frame_pad = _pad_dim(frame_len)
    d_pad = params["lnf_w"].shape[-1]
    head_dim = d_model // num_heads

    if n_groups is None:
        n_groups = _pick_n_groups(B)
    assert B % n_groups == 0
    bpg = B // n_groups                        # batch elements folded per step

    # TODO(synk): WhisperProcessor's STFT + mel filterbank is replaced by a
    # deterministic framing + learned-filterbank projection + log magnitude.
    # Lane-dense frames: pad frame_len to 128 lanes, stack batch along rows.
    frames = audio_waveform[:, : t0 * frame_len].reshape(B, t0, frame_len)
    frames = jnp.pad(frames, ((0, 0), (0, 0), (0, frame_pad - frame_len)))
    frames = frames.reshape(B * t0, frame_pad)

    # stride-2 conv gather matrices, block-diagonal over the folded batch.
    s2_one = _make_strided_gather(t_enc, t0, stride=2)         # (3, t_enc, t0)
    eye = jnp.eye(bpg, dtype=jnp.float32)
    s2 = jnp.stack([jnp.kron(eye, s2_one[k]) for k in range(3)]
                   ).astype(jnp.bfloat16)                       # (3, bt, bt0)
    pos_t = jnp.tile(params["pos"], (bpg, 1))                   # (bt, d_pad)

    weight_args = [
        params["mel_w"], params["mel_b"], params["c1_w"], params["c1_b"],
        s2, params["c2_w"], params["c2_b"], pos_t,
        params["ln1_w"], params["ln1_b"], params["wq"], params["bq"],
        params["wk"], params["wv"], params["bv"], params["wo"], params["bo"],
        params["ln2_w"], params["ln2_b"], params["w1"], params["b1"],
        params["w2"], params["b2"], params["lnf_w"], params["lnf_b"],
    ]
    weight_specs = [pl.BlockSpec(a.shape, lambda i, nd=a.ndim: (0,) * nd)
                    for a in weight_args]

    kernel = functools.partial(
        _fused_audio_encoder_kernel, num_layers=num_layers,
        num_heads=num_heads, head_dim=head_dim, d_real=d_model,
        t0=t0, t_enc=t_enc, bpg=bpg)

    out = pl.pallas_call(
        kernel,
        out_shape=jax.ShapeDtypeStruct((B, 1, d_pad), jnp.float32),
        grid=(n_groups,),
        in_specs=[pl.BlockSpec((bpg * t0, frame_pad), lambda i: (i, 0))]
                 + weight_specs,
        out_specs=pl.BlockSpec((bpg, 1, d_pad), lambda i: (i, 0, 0)),
        compiler_params=pltpu.CompilerParams(
            dimension_semantics=("parallel",),
            vmem_limit_bytes=32 * 1024 * 1024),
    )(frames, *weight_args)

    embeddings = out[:, 0, :d_model]
    return embeddings, None                    # (B, D), transcript=None


# ---------------------------------- main ---------------------------------------

if __name__ == "__main__":
    B = 2
    N_SAMPLES = 1024
    FRAME_LEN = 16            # -> 64 frames
    N_MELS = 16
    D_MODEL = 32
    FFN = 64
    N_LAYERS = 2
    N_HEADS = 4
    T0 = N_SAMPLES // FRAME_LEN        # 64
    T_ENC = T0 // 2                    # 32 after the stride-2 conv

    key = jax.random.PRNGKey(0)
    k_wav, k_par = jax.random.split(key)
    waveform = jax.random.normal(k_wav, (B, N_SAMPLES), dtype=jnp.float32)
    params = init_params(k_par, frame_len=FRAME_LEN, n_mels=N_MELS,
                         d_model=D_MODEL, ffn=FFN, n_layers=N_LAYERS,
                         n_heads=N_HEADS, t_enc=T_ENC)

    emb, transcript = audio_encoder_forward(
        waveform, params, frame_len=FRAME_LEN, d_model=D_MODEL,
        num_heads=N_HEADS, num_layers=N_LAYERS)
    emb = jax.block_until_ready(emb)
    assert emb.shape == (B, D_MODEL) and emb.dtype == jnp.float32
    assert transcript is None
    assert bool(jnp.all(jnp.isfinite(emb)))
    print("KERNEL_OK")
</pallas_src>

<mosaic_0001>
module attributes {stable_mosaic.version = 11 : i64} {
  func.func @_fused_audio_encoder_kernel(%arg0: i32, %arg1: memref<128x128xf32, #tpu.memory_space<vmem>>, %arg2: memref<128x128xbf16, #tpu.memory_space<vmem>>, %arg3: memref<1x128xf32, #tpu.memory_space<vmem>>, %arg4: memref<3x128x128xbf16, #tpu.memory_space<vmem>>, %arg5: memref<1x128xf32, #tpu.memory_space<vmem>>, %arg6: memref<3x64x128xbf16, #tpu.memory_space<vmem>>, %arg7: memref<3x128x128xbf16, #tpu.memory_space<vmem>>, %arg8: memref<1x128xf32, #tpu.memory_space<vmem>>, %arg9: memref<64x128xf32, #tpu.memory_space<vmem>>, %arg10: memref<2x1x128xf32, #tpu.memory_space<vmem>>, %arg11: memref<2x1x128xf32, #tpu.memory_space<vmem>>, %arg12: memref<2x128x128xbf16, #tpu.memory_space<vmem>>, %arg13: memref<2x1x128xf32, #tpu.memory_space<vmem>>, %arg14: memref<2x128x128xbf16, #tpu.memory_space<vmem>>, %arg15: memref<2x128x128xbf16, #tpu.memory_space<vmem>>, %arg16: memref<2x1x128xf32, #tpu.memory_space<vmem>>, %arg17: memref<2x32x128xbf16, #tpu.memory_space<vmem>>, %arg18: memref<2x1x128xf32, #tpu.memory_space<vmem>>, %arg19: memref<2x1x128xf32, #tpu.memory_space<vmem>>, %arg20: memref<2x1x128xf32, #tpu.memory_space<vmem>>, %arg21: memref<2x128x128xbf16, #tpu.memory_space<vmem>>, %arg22: memref<2x1x128xf32, #tpu.memory_space<vmem>>, %arg23: memref<2x128x128xbf16, #tpu.memory_space<vmem>>, %arg24: memref<2x1x128xf32, #tpu.memory_space<vmem>>, %arg25: memref<1x128xf32, #tpu.memory_space<vmem>>, %arg26: memref<1x128xf32, #tpu.memory_space<vmem>>, %arg27: memref<2x1x128xf32, #tpu.memory_space<vmem>>) attributes {dimension_semantics = [#tpu.dimension_semantics<parallel>], iteration_bounds = array<i64: 1>, scalar_prefetch = 0 : i64, scratch_operands = 0 : i64, tpu.core_type = #tpu.core_type<tc>, window_params = [{transform_indices = @transform_0, window_bounds = array<i64: 128, 128>}, {pipeline_mode = #tpu.pipeline_mode<synchronous>, transform_indices = @transform_1, window_bounds = array<i64: 128, 128>}, {pipeline_mode = #tpu.pipeline_mode<synchronous>, transform_indices = @transform_2, window_bounds = array<i64: 1, 128>}, {pipeline_mode = #tpu.pipeline_mode<synchronous>, transform_indices = @transform_3, window_bounds = array<i64: 3, 128, 128>}, {pipeline_mode = #tpu.pipeline_mode<synchronous>, transform_indices = @transform_4, window_bounds = array<i64: 1, 128>}, {pipeline_mode = #tpu.pipeline_mode<synchronous>, transform_indices = @transform_5, window_bounds = array<i64: 3, 64, 128>}, {pipeline_mode = #tpu.pipeline_mode<synchronous>, transform_indices = @transform_6, window_bounds = array<i64: 3, 128, 128>}, {pipeline_mode = #tpu.pipeline_mode<synchronous>, transform_indices = @transform_7, window_bounds = array<i64: 1, 128>}, {pipeline_mode = #tpu.pipeline_mode<synchronous>, transform_indices = @transform_8, window_bounds = array<i64: 64, 128>}, {pipeline_mode = #tpu.pipeline_mode<synchronous>, transform_indices = @transform_9, window_bounds = array<i64: 2, 1, 128>}, {pipeline_mode = #tpu.pipeline_mode<synchronous>, transform_indices = @transform_10, window_bounds = array<i64: 2, 1, 128>}, {pipeline_mode = #tpu.pipeline_mode<synchronous>, transform_indices = @transform_11, window_bounds = array<i64: 2, 128, 128>}, {pipeline_mode = #tpu.pipeline_mode<synchronous>, transform_indices = @transform_12, window_bounds = array<i64: 2, 1, 128>}, {pipeline_mode = #tpu.pipeline_mode<synchronous>, transform_indices = @transform_13, window_bounds = array<i64: 2, 128, 128>}, {pipeline_mode = #tpu.pipeline_mode<synchronous>, transform_indices = @transform_14, window_bounds = array<i64: 2, 128, 128>}, {pipeline_mode = #tpu.pipeline_mode<synchronous>, transform_indices = @transform_15, window_bounds = array<i64: 2, 1, 128>}, {pipeline_mode = #tpu.pipeline_mode<synchronous>, transform_indices = @transform_16, window_bounds = array<i64: 2, 32, 128>}, {pipeline_mode = #tpu.pipeline_mode<synchronous>, transform_indices = @transform_17, window_bounds = array<i64: 2, 1, 128>}, {pipeline_mode = #tpu.pipeline_mode<synchronous>, transform_indices = @transform_18, window_bounds = array<i64: 2, 1, 128>}, {pipeline_mode = #tpu.pipeline_mode<synchronous>, transform_indices = @transform_19, window_bounds = array<i64: 2, 1, 128>}, {pipeline_mode = #tpu.pipeline_mode<synchronous>, transform_indices = @transform_20, window_bounds = array<i64: 2, 128, 128>}, {pipeline_mode = #tpu.pipeline_mode<synchronous>, transform_indices = @transform_21, window_bounds = array<i64: 2, 1, 128>}, {pipeline_mode = #tpu.pipeline_mode<synchronous>, transform_indices = @transform_22, window_bounds = array<i64: 2, 128, 128>}, {pipeline_mode = #tpu.pipeline_mode<synchronous>, transform_indices = @transform_23, window_bounds = array<i64: 2, 1, 128>}, {pipeline_mode = #tpu.pipeline_mode<synchronous>, transform_indices = @transform_24, window_bounds = array<i64: 1, 128>}, {pipeline_mode = #tpu.pipeline_mode<synchronous>, transform_indices = @transform_25, window_bounds = array<i64: 1, 128>}, {transform_indices = @transform_26, window_bounds = array<i64: 2, 1, 128>}]} {
    %0 = tpu.iota {dimensions = array<i32: 1>} : vector<1x128xi32>
    %c32_i32 = arith.constant 32 : i32
    %1 = vector.broadcast %c32_i32 : i32 to vector<1x128xi32>
    %2 = arith.cmpi slt, %0, %1 : vector<1x128xi32>
    %3 = arith.extui %2 : vector<1x128xi1> to vector<1x128xi32>
    %4 = arith.sitofp %3 : vector<1x128xi32> to vector<1x128xf32>
    %c0 = arith.constant 0 : index
    %c0_0 = arith.constant 0 : index
    %5 = vector.load %arg1[%c0, %c0_0] : memref<128x128xf32, #tpu.memory_space<vmem>>, vector<128x128xf32>
    %6 = arith.truncf %5 : vector<128x128xf32> to vector<128x128xbf16>
    %c0_1 = arith.constant 0 : index
    %c0_2 = arith.constant 0 : index
    %7 = vector.load %arg2[%c0_1, %c0_2] : memref<128x128xbf16, #tpu.memory_space<vmem>>, vector<128x128xbf16>
    %cst = arith.constant dense<0.000000e+00> : vector<128x128xf32>
    %8 = tpu.matmul %6, %7, %cst {dimension_numbers = #tpu.dot_dimension_numbers<[1], [0], [0], [1], [0, 0, 1, 1], [], []>} : vector<128x128xbf16>, vector<128x128xbf16>, vector<128x128xf32> -> vector<128x128xf32>
    %c0_3 = arith.constant 0 : index
    %c0_4 = arith.constant 0 : index
    %9 = vector.load %arg3[%c0_3, %c0_4] : memref<1x128xf32, #tpu.memory_space<vmem>>, vector<1x128xf32>
    %10 = vector.broadcast %9 : vector<1x128xf32> to vector<128x128xf32>
    %11 = arith.addf %8, %10 : vector<128x128xf32>
    %12 = math.absf %11 : vector<128x128xf32>
    %cst_5 = arith.constant 9.99999974E-6 : f32
    %13 = vector.broadcast %cst_5 : f32 to vector<128x128xf32>
    %14 = arith.addf %12, %13 : vector<128x128xf32>
    %15 = math.log %14 : vector<128x128xf32>
    %16 = tpu.iota {dimensions = array<i32: 0>} : vector<128x1xi32>
    %false = arith.constant false
    %17 = vector.broadcast %false : i1 to vector<128x1xi1>
    %false_6 = arith.constant false
    %18 = vector.broadcast %false_6 : i1 to vector<128x1xi1>
    %c0_i32 = arith.constant 0 : i32
    %19 = vector.broadcast %c0_i32 : i32 to vector<128x1xi32>
    %20 = arith.cmpi eq, %16, %19 : vector<128x1xi32>
    %21 = arith.ori %17, %20 : vector<128x1xi1>
    %c63_i32 = arith.constant 63 : i32
    %22 = vector.broadcast %c63_i32 : i32 to vector<128x1xi32>
    %23 = arith.cmpi eq, %16, %22 : vector<128x1xi32>
    %24 = arith.ori %18, %23 : vector<128x1xi1>
    %c64_i32 = arith.constant 64 : i32
    %25 = vector.broadcast %c64_i32 : i32 to vector<128x1xi32>
    %26 = arith.cmpi eq, %16, %25 : vector<128x1xi32>
    %27 = arith.ori %21, %26 : vector<128x1xi1>
    %c127_i32 = arith.constant 127 : i32
    %28 = vector.broadcast %c127_i32 : i32 to vector<128x1xi32>
    %29 = arith.cmpi eq, %16, %28 : vector<128x1xi32>
    %30 = arith.ori %24, %29 : vector<128x1xi1>
    %cst_7 = arith.constant dense<true> : vector<128x1xi1>
    %31 = arith.xori %27, %cst_7 : vector<128x1xi1>
    %32 = arith.extui %31 : vector<128x1xi1> to vector<128x1xi32>
    %33 = arith.sitofp %32 : vector<128x1xi32> to vector<128x1xf32>
    %cst_8 = arith.constant dense<true> : vector<128x1xi1>
    %34 = arith.xori %30, %cst_8 : vector<128x1xi1>
    %35 = arith.extui %34 : vector<128x1xi1> to vector<128x1xi32>
    %36 = arith.sitofp %35 : vector<128x1xi32> to vector<128x1xf32>
    %c1_i32 = arith.constant 1 : i32
    %37 = tpu.dynamic_rotate %15 by %c1_i32 dim 0 : vector<128x128xf32>, i32 -> vector<128x128xf32>
    %38 = vector.broadcast %33 : vector<128x1xf32> to vector<128x128xf32>
    %39 = arith.mulf %37, %38 : vector<128x128xf32>
    %40 = arith.truncf %39 : vector<128x128xf32> to vector<128x128xbf16>
    %41 = arith.truncf %15 : vector<128x128xf32> to vector<128x128xbf16>
    %c127_i32_9 = arith.constant 127 : i32
    %42 = tpu.dynamic_rotate %15 by %c127_i32_9 dim 0 : vector<128x128xf32>, i32 -> vector<128x128xf32>
    %43 = vector.broadcast %36 : vector<128x1xf32> to vector<128x128xf32>
    %44 = arith.mulf %42, %43 : vector<128x128xf32>
    %45 = arith.truncf %44 : vector<128x128xf32> to vector<128x128xbf16>
    %c0_10 = arith.constant 0 : index
    %c0_11 = arith.constant 0 : index
    %c0_12 = arith.constant 0 : index
    %46 = vector.load %arg4[%c0_10, %c0_11, %c0_12] : memref<3x128x128xbf16, #tpu.memory_space<vmem>>, vector<1x128x128xbf16>
    %47 = vector.shape_cast %46 : vector<1x128x128xbf16> to vector<128x128xbf16>
    %cst_13 = arith.constant dense<0.000000e+00> : vector<128x128xf32>
    %48 = tpu.matmul %40, %47, %cst_13 {dimension_numbers = #tpu.dot_dimension_numbers<[1], [0], [0], [1], [0, 0, 1, 1], [], []>} : vector<128x128xbf16>, vector<128x128xbf16>, vector<128x128xf32> -> vector<128x128xf32>
    %c1 = arith.constant 1 : index
    %c0_14 = arith.constant 0 : index
    %c0_15 = arith.constant 0 : index
    %49 = vector.load %arg4[%c1, %c0_14, %c0_15] : memref<3x128x128xbf16, #tpu.memory_space<vmem>>, vector<1x128x128xbf16>
    %50 = vector.shape_cast %49 : vector<1x128x128xbf16> to vector<128x128xbf16>
    %cst_16 = arith.constant dense<0.000000e+00> : vector<128x128xf32>
    %51 = tpu.matmul %41, %50, %cst_16 {dimension_numbers = #tpu.dot_dimension_numbers<[1], [0], [0], [1], [0, 0, 1, 1], [], []>} : vector<128x128xbf16>, vector<128x128xbf16>, vector<128x128xf32> -> vector<128x128xf32>
    %52 = arith.addf %48, %51 : vector<128x128xf32>
    %c2 = arith.constant 2 : index
    %c0_17 = arith.constant 0 : index
    %c0_18 = arith.constant 0 : index
    %53 = vector.load %arg4[%c2, %c0_17, %c0_18] : memref<3x128x128xbf16, #tpu.memory_space<vmem>>, vector<1x128x128xbf16>
    %54 = vector.shape_cast %53 : vector<1x128x128xbf16> to vector<128x128xbf16>
    %cst_19 = arith.constant dense<0.000000e+00> : vector<128x128xf32>
    %55 = tpu.matmul %45, %54, %cst_19 {dimension_numbers = #tpu.dot_dimension_numbers<[1], [0], [0], [1], [0, 0, 1, 1], [], []>} : vector<128x128xbf16>, vector<128x128xbf16>, vector<128x128xf32> -> vector<128x128xf32>
    %56 = arith.addf %52, %55 : vector<128x128xf32>
    %c0_20 = arith.constant 0 : index
    %c0_21 = arith.constant 0 : index
    %57 = vector.load %arg5[%c0_20, %c0_21] : memref<1x128xf32, #tpu.memory_space<vmem>>, vector<1x128xf32>
    %58 = vector.broadcast %57 : vector<1x128xf32> to vector<128x128xf32>
    %59 = arith.addf %56, %58 : vector<128x128xf32>
    %cst_22 = arith.constant 5.000000e-01 : f32
    %60 = vector.broadcast %cst_22 : f32 to vector<128x128xf32>
    %61 = arith.mulf %60, %59 : vector<128x128xf32>
    %cst_23 = arith.constant 4.471500e-02 : f32
    %62 = vector.broadcast %cst_23 : f32 to vector<128x128xf32>
    %63 = arith.mulf %62, %59 : vector<128x128xf32>
    %64 = arith.mulf %63, %59 : vector<128x128xf32>
    %65 = arith.mulf %64, %59 : vector<128x128xf32>
    %66 = arith.addf %59, %65 : vector<128x128xf32>
    %cst_24 = arith.constant 0.797884583 : f32
    %67 = vector.broadcast %cst_24 : f32 to vector<128x128xf32>
    %68 = arith.mulf %67, %66 : vector<128x128xf32>
    %69 = math.tanh %68 : vector<128x128xf32>
    %cst_25 = arith.constant 1.000000e+00 : f32
    %70 = vector.broadcast %cst_25 : f32 to vector<128x128xf32>
    %71 = arith.addf %70, %69 : vector<128x128xf32>
    %72 = arith.mulf %61, %71 : vector<128x128xf32>
    %73 = arith.truncf %72 : vector<128x128xf32> to vector<128x128xbf16>
    %cst_26 = arith.constant 0.000000e+00 : f32
    %74 = vector.broadcast %cst_26 : f32 to vector<64x128xf32>
    %c0_27 = arith.constant 0 : index
    %c0_28 = arith.constant 0 : index
    %c0_29 = arith.constant 0 : index
    %75 = vector.load %arg6[%c0_27, %c0_28, %c0_29] : memref<3x64x128xbf16, #tpu.memory_space<vmem>>, vector<1x64x128xbf16>
    %76 = vector.shape_cast %75 : vector<1x64x128xbf16> to vector<64x128xbf16>
    %cst_30 = arith.constant dense<0.000000e+00> : vector<64x128xf32>
    %77 = tpu.matmul %76, %73, %cst_30 {dimension_numbers = #tpu.dot_dimension_numbers<[1], [0], [0], [1], [0, 0, 1, 1], [], []>} : vector<64x128xbf16>, vector<128x128xbf16>, vector<64x128xf32> -> vector<64x128xf32>
    %78 = arith.truncf %77 : vector<64x128xf32> to vector<64x128xbf16>
    %c0_31 = arith.constant 0 : index
    %c0_32 = arith.constant 0 : index
    %c0_33 = arith.constant 0 : index
    %79 = vector.load %arg7[%c0_31, %c0_32, %c0_33] : memref<3x128x128xbf16, #tpu.memory_space<vmem>>, vector<1x128x128xbf16>
    %80 = vector.shape_cast %79 : vector<1x128x128xbf16> to vector<128x128xbf16>
    %cst_34 = arith.constant dense<0.000000e+00> : vector<64x128xf32>
    %81 = tpu.matmul %78, %80, %cst_34 {dimension_numbers = #tpu.dot_dimension_numbers<[1], [0], [0], [1], [0, 0, 1, 1], [], []>} : vector<64x128xbf16>, vector<128x128xbf16>, vector<64x128xf32> -> vector<64x128xf32>
    %82 = arith.addf %74, %81 : vector<64x128xf32>
    %c1_35 = arith.constant 1 : index
    %c0_36 = arith.constant 0 : index
    %c0_37 = arith.constant 0 : index
    %83 = vector.load %arg6[%c1_35, %c0_36, %c0_37] : memref<3x64x128xbf16, #tpu.memory_space<vmem>>, vector<1x64x128xbf16>
    %84 = vector.shape_cast %83 : vector<1x64x128xbf16> to vector<64x128xbf16>
    %cst_38 = arith.constant dense<0.000000e+00> : vector<64x128xf32>
    %85 = tpu.matmul %84, %73, %cst_38 {dimension_numbers = #tpu.dot_dimension_numbers<[1], [0], [0], [1], [0, 0, 1, 1], [], []>} : vector<64x128xbf16>, vector<128x128xbf16>, vector<64x128xf32> -> vector<64x128xf32>
    %86 = arith.truncf %85 : vector<64x128xf32> to vector<64x128xbf16>
    %c1_39 = arith.constant 1 : index
    %c0_40 = arith.constant 0 : index
    %c0_41 = arith.constant 0 : index
    %87 = vector.load %arg7[%c1_39, %c0_40, %c0_41] : memref<3x128x128xbf16, #tpu.memory_space<vmem>>, vector<1x128x128xbf16>
    %88 = vector.shape_cast %87 : vector<1x128x128xbf16> to vector<128x128xbf16>
    %cst_42 = arith.constant dense<0.000000e+00> : vector<64x128xf32>
    %89 = tpu.matmul %86, %88, %cst_42 {dimension_numbers = #tpu.dot_dimension_numbers<[1], [0], [0], [1], [0, 0, 1, 1], [], []>} : vector<64x128xbf16>, vector<128x128xbf16>, vector<64x128xf32> -> vector<64x128xf32>
    %90 = arith.addf %82, %89 : vector<64x128xf32>
    %c2_43 = arith.constant 2 : index
    %c0_44 = arith.constant 0 : index
    %c0_45 = arith.constant 0 : index
    %91 = vector.load %arg6[%c2_43, %c0_44, %c0_45] : memref<3x64x128xbf16, #tpu.memory_space<vmem>>, vector<1x64x128xbf16>
    %92 = vector.shape_cast %91 : vector<1x64x128xbf16> to vector<64x128xbf16>
    %cst_46 = arith.constant dense<0.000000e+00> : vector<64x128xf32>
    %93 = tpu.matmul %92, %73, %cst_46 {dimension_numbers = #tpu.dot_dimension_numbers<[1], [0], [0], [1], [0, 0, 1, 1], [], []>} : vector<64x128xbf16>, vector<128x128xbf16>, vector<64x128xf32> -> vector<64x128xf32>
    %94 = arith.truncf %93 : vector<64x128xf32> to vector<64x128xbf16>
    %c2_47 = arith.constant 2 : index
    %c0_48 = arith.constant 0 : index
    %c0_49 = arith.constant 0 : index
    %95 = vector.load %arg7[%c2_47, %c0_48, %c0_49] : memref<3x128x128xbf16, #tpu.memory_space<vmem>>, vector<1x128x128xbf16>
    %96 = vector.shape_cast %95 : vector<1x128x128xbf16> to vector<128x128xbf16>
    %cst_50 = arith.constant dense<0.000000e+00> : vector<64x128xf32>
    %97 = tpu.matmul %94, %96, %cst_50 {dimension_numbers = #tpu.dot_dimension_numbers<[1], [0], [0], [1], [0, 0, 1, 1], [], []>} : vector<64x128xbf16>, vector<128x128xbf16>, vector<64x128xf32> -> vector<64x128xf32>
    %98 = arith.addf %90, %97 : vector<64x128xf32>
    %c0_51 = arith.constant 0 : index
    %c0_52 = arith.constant 0 : index
    %99 = vector.load %arg8[%c0_51, %c0_52] : memref<1x128xf32, #tpu.memory_space<vmem>>, vector<1x128xf32>
    %100 = vector.broadcast %99 : vector<1x128xf32> to vector<64x128xf32>
    %101 = arith.addf %98, %100 : vector<64x128xf32>
    %cst_53 = arith.constant 5.000000e-01 : f32
    %102 = vector.broadcast %cst_53 : f32 to vector<64x128xf32>
    %103 = arith.mulf %102, %101 : vector<64x128xf32>
    %cst_54 = arith.constant 4.471500e-02 : f32
    %104 = vector.broadcast %cst_54 : f32 to vector<64x128xf32>
    %105 = arith.mulf %104, %101 : vector<64x128xf32>
    %106 = arith.mulf %105, %101 : vector<64x128xf32>
    %107 = arith.mulf %106, %101 : vector<64x128xf32>
    %108 = arith.addf %101, %107 : vector<64x128xf32>
    %cst_55 = arith.constant 0.797884583 : f32
    %109 = vector.broadcast %cst_55 : f32 to vector<64x128xf32>
    %110 = arith.mulf %109, %108 : vector<64x128xf32>
    %111 = math.tanh %110 : vector<64x128xf32>
    %cst_56 = arith.constant 1.000000e+00 : f32
    %112 = vector.broadcast %cst_56 : f32 to vector<64x128xf32>
    %113 = arith.addf %112, %111 : vector<64x128xf32>
    %114 = arith.mulf %103, %113 : vector<64x128xf32>
    %c0_57 = arith.constant 0 : index
    %c0_58 = arith.constant 0 : index
    %115 = vector.load %arg9[%c0_57, %c0_58] : memref<64x128xf32, #tpu.memory_space<vmem>>, vector<64x128xf32>
    %116 = arith.addf %114, %115 : vector<64x128xf32>
    %117 = tpu.iota {dimensions = array<i32: 0>} : vector<64x64xi32>
    %118 = tpu.iota {dimensions = array<i32: 1>} : vector<64x64xi32>
    %false_59 = arith.constant false
    %119 = vector.broadcast %false_59 : i1 to vector<64x64xi1>
    %c0_i32_60 = arith.constant 0 : i32
    %120 = vector.broadcast %c0_i32_60 : i32 to vector<64x64xi32>
    %121 = arith.cmpi sge, %117, %120 : vector<64x64xi32>
    %c32_i32_61 = arith.constant 32 : i32
    %122 = vector.broadcast %c32_i32_61 : i32 to vector<64x64xi32>
    %123 = arith.cmpi slt, %117, %122 : vector<64x64xi32>
    %124 = arith.andi %121, %123 : vector<64x64xi1>
    %c0_i32_62 = arith.constant 0 : i32
    %125 = vector.broadcast %c0_i32_62 : i32 to vector<64x64xi32>
    %126 = arith.cmpi sge, %118, %125 : vector<64x64xi32>
    %c32_i32_63 = arith.constant 32 : i32
    %127 = vector.broadcast %c32_i32_63 : i32 to vector<64x64xi32>
    %128 = arith.cmpi slt, %118, %127 : vector<64x64xi32>
    %129 = arith.andi %126, %128 : vector<64x64xi1>
    %130 = arith.andi %124, %129 : vector<64x64xi1>
    %131 = arith.ori %119, %130 : vector<64x64xi1>
    %c32_i32_64 = arith.constant 32 : i32
    %132 = vector.broadcast %c32_i32_64 : i32 to vector<64x64xi32>
    %133 = arith.cmpi sge, %117, %132 : vector<64x64xi32>
    %c64_i32_65 = arith.constant 64 : i32
    %134 = vector.broadcast %c64_i32_65 : i32 to vector<64x64xi32>
    %135 = arith.cmpi slt, %117, %134 : vector<64x64xi32>
    %136 = arith.andi %133, %135 : vector<64x64xi1>
    %c32_i32_66 = arith.constant 32 : i32
    %137 = vector.broadcast %c32_i32_66 : i32 to vector<64x64xi32>
    %138 = arith.cmpi sge, %118, %137 : vector<64x64xi32>
    %c64_i32_67 = arith.constant 64 : i32
    %139 = vector.broadcast %c64_i32_67 : i32 to vector<64x64xi32>
    %140 = arith.cmpi slt, %118, %139 : vector<64x64xi32>
    %141 = arith.andi %138, %140 : vector<64x64xi1>
    %142 = arith.andi %136, %141 : vector<64x64xi1>
    %143 = arith.ori %131, %142 : vector<64x64xi1>
    %cst_68 = arith.constant 0.000000e+00 : f32
    %cst_69 = arith.constant -1.000000e+30 : f32
    %144 = vector.broadcast %cst_68 : f32 to vector<64x64xf32>
    %145 = vector.broadcast %cst_69 : f32 to vector<64x64xf32>
    %146 = arith.select %143, %144, %145 : vector<64x64xi1>, vector<64x64xf32>
    %c0_i32_70 = arith.constant 0 : i32
    %c2_i32 = arith.constant 2 : i32
    %147 = arith.addi %c0_i32_70, %c2_i32 : i32
    %c1_i32_71 = arith.constant 1 : i32
    %148 = scf.for %arg28 = %c0_i32_70 to %147 step %c1_i32_71 iter_args(%arg29 = %116) -> (vector<64x128xf32>)  : i32 {
      %191 = arith.index_cast %arg28 : i32 to index
      %c0_92 = arith.constant 0 : index
      %c0_93 = arith.constant 0 : index
      %192 = vector.load %arg10[%191, %c0_92, %c0_93] : memref<2x1x128xf32, #tpu.memory_space<vmem>>, vector<1x1x128xf32>
      %193 = vector.shape_cast %192 : vector<1x1x128xf32> to vector<1x128xf32>
      %194 = arith.index_cast %arg28 : i32 to index
      %c0_94 = arith.constant 0 : index
      %c0_95 = arith.constant 0 : index
      %195 = vector.load %arg11[%194, %c0_94, %c0_95] : memref<2x1x128xf32, #tpu.memory_space<vmem>>, vector<1x1x128xf32>
      %196 = vector.shape_cast %195 : vector<1x1x128xf32> to vector<1x128xf32>
      %197 = vector.broadcast %4 : vector<1x128xf32> to vector<64x128xf32>
      %198 = arith.mulf %arg29, %197 : vector<64x128xf32>
      %cst_96 = arith.constant dense<0.000000e+00> : vector<64xf32>
      %199 = vector.multi_reduction <add>, %198, %cst_96 [1] : vector<64x128xf32> to vector<64xf32>
      %200 = vector.shape_cast %199 : vector<64xf32> to vector<64x1xf32>
      %cst_97 = arith.constant 3.125000e-02 : f32
      %201 = vector.broadcast %cst_97 : f32 to vector<64x1xf32>
      %202 = arith.mulf %200, %201 : vector<64x1xf32>
      %203 = vector.broadcast %202 : vector<64x1xf32> to vector<64x128xf32>
      %204 = arith.subf %arg29, %203 : vector<64x128xf32>
      %205 = vector.broadcast %4 : vector<1x128xf32> to vector<64x128xf32>
      %206 = arith.mulf %204, %205 : vector<64x128xf32>
      %207 = arith.mulf %206, %206 : vector<64x128xf32>
      %cst_98 = arith.constant dense<0.000000e+00> : vector<64xf32>
      %208 = vector.multi_reduction <add>, %207, %cst_98 [1] : vector<64x128xf32> to vector<64xf32>
      %209 = vector.shape_cast %208 : vector<64xf32> to vector<64x1xf32>
      %cst_99 = arith.constant 3.125000e-02 : f32
      %210 = vector.broadcast %cst_99 : f32 to vector<64x1xf32>
      %211 = arith.mulf %209, %210 : vector<64x1xf32>
      %cst_100 = arith.constant 9.99999974E-6 : f32
      %212 = vector.broadcast %cst_100 : f32 to vector<64x1xf32>
      %213 = arith.addf %211, %212 : vector<64x1xf32>
      %214 = math.rsqrt %213 : vector<64x1xf32>
      %215 = vector.broadcast %214 : vector<64x1xf32> to vector<64x128xf32>
      %216 = arith.mulf %206, %215 : vector<64x128xf32>
      %217 = vector.broadcast %193 : vector<1x128xf32> to vector<64x128xf32>
      %218 = arith.mulf %216, %217 : vector<64x128xf32>
      %219 = vector.broadcast %196 : vector<1x128xf32> to vector<64x128xf32>
      %220 = arith.addf %218, %219 : vector<64x128xf32>
      %221 = arith.truncf %220 : vector<64x128xf32> to vector<64x128xbf16>
      %222 = arith.index_cast %arg28 : i32 to index
      %c0_101 = arith.constant 0 : index
      %c0_102 = arith.constant 0 : index
      %223 = vector.load %arg12[%222, %c0_101, %c0_102] : memref<2x128x128xbf16, #tpu.memory_space<vmem>>, vector<1x128x128xbf16>
      %224 = vector.shape_cast %223 : vector<1x128x128xbf16> to vector<128x128xbf16>
      %cst_103 = arith.constant dense<0.000000e+00> : vector<64x128xf32>
      %225 = tpu.matmul %221, %224, %cst_103 {dimension_numbers = #tpu.dot_dimension_numbers<[1], [0], [0], [1], [0, 0, 1, 1], [], []>} : vector<64x128xbf16>, vector<128x128xbf16>, vector<64x128xf32> -> vector<64x128xf32>
      %226 = arith.index_cast %arg28 : i32 to index
      %c0_104 = arith.constant 0 : index
      %c0_105 = arith.constant 0 : index
      %227 = vector.load %arg13[%226, %c0_104, %c0_105] : memref<2x1x128xf32, #tpu.memory_space<vmem>>, vector<1x1x128xf32>
      %228 = vector.shape_cast %227 : vector<1x1x128xf32> to vector<1x128xf32>
      %229 = vector.broadcast %228 : vector<1x128xf32> to vector<64x128xf32>
      %230 = arith.addf %225, %229 : vector<64x128xf32>
      %231 = arith.truncf %230 : vector<64x128xf32> to vector<64x128xbf16>
      %232 = arith.index_cast %arg28 : i32 to index
      %c0_106 = arith.constant 0 : index
      %c0_107 = arith.constant 0 : index
      %233 = vector.load %arg14[%232, %c0_106, %c0_107] : memref<2x128x128xbf16, #tpu.memory_space<vmem>>, vector<1x128x128xbf16>
      %234 = vector.shape_cast %233 : vector<1x128x128xbf16> to vector<128x128xbf16>
      %cst_108 = arith.constant dense<0.000000e+00> : vector<64x128xf32>
      %235 = tpu.matmul %221, %234, %cst_108 {dimension_numbers = #tpu.dot_dimension_numbers<[1], [0], [0], [1], [0, 0, 1, 1], [], []>} : vector<64x128xbf16>, vector<128x128xbf16>, vector<64x128xf32> -> vector<64x128xf32>
      %236 = arith.truncf %235 : vector<64x128xf32> to vector<64x128xbf16>
      %237 = arith.index_cast %arg28 : i32 to index
      %c0_109 = arith.constant 0 : index
      %c0_110 = arith.constant 0 : index
      %238 = vector.load %arg15[%237, %c0_109, %c0_110] : memref<2x128x128xbf16, #tpu.memory_space<vmem>>, vector<1x128x128xbf16>
      %239 = vector.shape_cast %238 : vector<1x128x128xbf16> to vector<128x128xbf16>
      %cst_111 = arith.constant dense<0.000000e+00> : vector<64x128xf32>
      %240 = tpu.matmul %221, %239, %cst_111 {dimension_numbers = #tpu.dot_dimension_numbers<[1], [0], [0], [1], [0, 0, 1, 1], [], []>} : vector<64x128xbf16>, vector<128x128xbf16>, vector<64x128xf32> -> vector<64x128xf32>
      %241 = arith.index_cast %arg28 : i32 to index
      %c0_112 = arith.constant 0 : index
      %c0_113 = arith.constant 0 : index
      %242 = vector.load %arg16[%241, %c0_112, %c0_113] : memref<2x1x128xf32, #tpu.memory_space<vmem>>, vector<1x1x128xf32>
      %243 = vector.shape_cast %242 : vector<1x1x128xf32> to vector<1x128xf32>
      %244 = vector.broadcast %243 : vector<1x128xf32> to vector<64x128xf32>
      %245 = arith.addf %240, %244 : vector<64x128xf32>
      %246 = arith.truncf %245 : vector<64x128xf32> to vector<64x128xbf16>
      %247 = vector.extract_strided_slice %231 {offsets = [0, 0], sizes = [64, 8], strides = [1, 1]} : vector<64x128xbf16> to vector<64x8xbf16>
      %248 = vector.extract_strided_slice %236 {offsets = [0, 0], sizes = [64, 8], strides = [1, 1]} : vector<64x128xbf16> to vector<64x8xbf16>
      %cst_114 = arith.constant dense<0.000000e+00> : vector<64x64xf32>
      %249 = tpu.matmul %247, %248, %cst_114 {dimension_numbers = #tpu.dot_dimension_numbers<[1], [1], [0], [0], [0, 0, 1, 0], [], []>} : vector<64x8xbf16>, vector<64x8xbf16>, vector<64x64xf32> -> vector<64x64xf32>
      %250 = arith.addf %249, %146 : vector<64x64xf32>
      %cst_115 = arith.constant dense<0xFF800000> : vector<64xf32>
      %251 = vector.multi_reduction <maximumf>, %250, %cst_115 [1] : vector<64x64xf32> to vector<64xf32>
      %252 = vector.shape_cast %251 : vector<64xf32> to vector<64x1xf32>
      %253 = vector.broadcast %252 : vector<64x1xf32> to vector<64x64xf32>
      %254 = arith.subf %250, %253 : vector<64x64xf32>
      %255 = math.exp %254 : vector<64x64xf32>
      %cst_116 = arith.constant dense<0.000000e+00> : vector<64xf32>
      %256 = vector.multi_reduction <add>, %255, %cst_116 [1] : vector<64x64xf32> to vector<64xf32>
      %257 = vector.shape_cast %256 : vector<64xf32> to vector<64x1xf32>
      %258 = tpu.reciprocal %257 {approx = true} : vector<64x1xf32> -> vector<64x1xf32>
      %259 = vector.broadcast %258 : vector<64x1xf32> to vector<64x64xf32>
      %260 = arith.mulf %255, %259 : vector<64x64xf32>
      %261 = arith.truncf %260 : vector<64x64xf32> to vector<64x64xbf16>
      %262 = vector.extract_strided_slice %246 {offsets = [0, 0], sizes = [64, 8], strides = [1, 1]} : vector<64x128xbf16> to vector<64x8xbf16>
      %cst_117 = arith.constant dense<0.000000e+00> : vector<64x8xf32>
      %263 = tpu.matmul %261, %262, %cst_117 {dimension_numbers = #tpu.dot_dimension_numbers<[1], [0], [0], [1], [0, 0, 1, 1], [], []>} : vector<64x64xbf16>, vector<64x8xbf16>, vector<64x8xf32> -> vector<64x8xf32>
      %264 = vector.extract_strided_slice %231 {offsets = [0, 8], sizes = [64, 8], strides = [1, 1]} : vector<64x128xbf16> to vector<64x8xbf16>
      %265 = vector.extract_strided_slice %236 {offsets = [0, 8], sizes = [64, 8], strides = [1, 1]} : vector<64x128xbf16> to vector<64x8xbf16>
      %cst_118 = arith.constant dense<0.000000e+00> : vector<64x64xf32>
      %266 = tpu.matmul %264, %265, %cst_118 {dimension_numbers = #tpu.dot_dimension_numbers<[1], [1], [0], [0], [0, 0, 1, 0], [], []>} : vector<64x8xbf16>, vector<64x8xbf16>, vector<64x64xf32> -> vector<64x64xf32>
      %267 = arith.addf %266, %146 : vector<64x64xf32>
      %cst_119 = arith.constant dense<0xFF800000> : vector<64xf32>
      %268 = vector.multi_reduction <maximumf>, %267, %cst_119 [1] : vector<64x64xf32> to vector<64xf32>
      %269 = vector.shape_cast %268 : vector<64xf32> to vector<64x1xf32>
      %270 = vector.broadcast %269 : vector<64x1xf32> to vector<64x64xf32>
      %271 = arith.subf %267, %270 : vector<64x64xf32>
      %272 = math.exp %271 : vector<64x64xf32>
      %cst_120 = arith.constant dense<0.000000e+00> : vector<64xf32>
      %273 = vector.multi_reduction <add>, %272, %cst_120 [1] : vector<64x64xf32> to vector<64xf32>
      %274 = vector.shape_cast %273 : vector<64xf32> to vector<64x1xf32>
      %275 = tpu.reciprocal %274 {approx = true} : vector<64x1xf32> -> vector<64x1xf32>
      %276 = vector.broadcast %275 : vector<64x1xf32> to vector<64x64xf32>
      %277 = arith.mulf %272, %276 : vector<64x64xf32>
      %278 = arith.truncf %277 : vector<64x64xf32> to vector<64x64xbf16>
      %279 = vector.extract_strided_slice %246 {offsets = [0, 8], sizes = [64, 8], strides = [1, 1]} : vector<64x128xbf16> to vector<64x8xbf16>
      %cst_121 = arith.constant dense<0.000000e+00> : vector<64x8xf32>
      %280 = tpu.matmul %278, %279, %cst_121 {dimension_numbers = #tpu.dot_dimension_numbers<[1], [0], [0], [1], [0, 0, 1, 1], [], []>} : vector<64x64xbf16>, vector<64x8xbf16>, vector<64x8xf32> -> vector<64x8xf32>
      %281 = vector.extract_strided_slice %231 {offsets = [0, 16], sizes = [64, 8], strides = [1, 1]} : vector<64x128xbf16> to vector<64x8xbf16>
      %282 = vector.extract_strided_slice %236 {offsets = [0, 16], sizes = [64, 8], strides = [1, 1]} : vector<64x128xbf16> to vector<64x8xbf16>
      %cst_122 = arith.constant dense<0.000000e+00> : vector<64x64xf32>
      %283 = tpu.matmul %281, %282, %cst_122 {dimension_numbers = #tpu.dot_dimension_numbers<[1], [1], [0], [0], [0, 0, 1, 0], [], []>} : vector<64x8xbf16>, vector<64x8xbf16>, vector<64x64xf32> -> vector<64x64xf32>
      %284 = arith.addf %283, %146 : vector<64x64xf32>
      %cst_123 = arith.constant dense<0xFF800000> : vector<64xf32>
      %285 = vector.multi_reduction <maximumf>, %284, %cst_123 [1] : vector<64x64xf32> to vector<64xf32>
      %286 = vector.shape_cast %285 : vector<64xf32> to vector<64x1xf32>
      %287 = vector.broadcast %286 : vector<64x1xf32> to vector<64x64xf32>
      %288 = arith.subf %284, %287 : vector<64x64xf32>
      %289 = math.exp %288 : vector<64x64xf32>
      %cst_124 = arith.constant dense<0.000000e+00> : vector<64xf32>
      %290 = vector.multi_reduction <add>, %289, %cst_124 [1] : vector<64x64xf32> to vector<64xf32>
      %291 = vector.shape_cast %290 : vector<64xf32> to vector<64x1xf32>
      %292 = tpu.reciprocal %291 {approx = true} : vector<64x1xf32> -> vector<64x1xf32>
      %293 = vector.broadcast %292 : vector<64x1xf32> to vector<64x64xf32>
      %294 = arith.mulf %289, %293 : vector<64x64xf32>
      %295 = arith.truncf %294 : vector<64x64xf32> to vector<64x64xbf16>
      %296 = vector.extract_strided_slice %246 {offsets = [0, 16], sizes = [64, 8], strides = [1, 1]} : vector<64x128xbf16> to vector<64x8xbf16>
      %cst_125 = arith.constant dense<0.000000e+00> : vector<64x8xf32>
      %297 = tpu.matmul %295, %296, %cst_125 {dimension_numbers = #tpu.dot_dimension_numbers<[1], [0], [0], [1], [0, 0, 1, 1], [], []>} : vector<64x64xbf16>, vector<64x8xbf16>, vector<64x8xf32> -> vector<64x8xf32>
      %298 = vector.extract_strided_slice %231 {offsets = [0, 24], sizes = [64, 8], strides = [1, 1]} : vector<64x128xbf16> to vector<64x8xbf16>
      %299 = vector.extract_strided_slice %236 {offsets = [0, 24], sizes = [64, 8], strides = [1, 1]} : vector<64x128xbf16> to vector<64x8xbf16>
      %cst_126 = arith.constant dense<0.000000e+00> : vector<64x64xf32>
      %300 = tpu.matmul %298, %299, %cst_126 {dimension_numbers = #tpu.dot_dimension_numbers<[1], [1], [0], [0], [0, 0, 1, 0], [], []>} : vector<64x8xbf16>, vector<64x8xbf16>, vector<64x64xf32> -> vector<64x64xf32>
      %301 = arith.addf %300, %146 : vector<64x64xf32>
      %cst_127 = arith.constant dense<0xFF800000> : vector<64xf32>
      %302 = vector.multi_reduction <maximumf>, %301, %cst_127 [1] : vector<64x64xf32> to vector<64xf32>
      %303 = vector.shape_cast %302 : vector<64xf32> to vector<64x1xf32>
      %304 = vector.broadcast %303 : vector<64x1xf32> to vector<64x64xf32>
      %305 = arith.subf %301, %304 : vector<64x64xf32>
      %306 = math.exp %305 : vector<64x64xf32>
      %cst_128 = arith.constant dense<0.000000e+00> : vector<64xf32>
      %307 = vector.multi_reduction <add>, %306, %cst_128 [1] : vector<64x64xf32> to vector<64xf32>
      %308 = vector.shape_cast %307 : vector<64xf32> to vector<64x1xf32>
      %309 = tpu.reciprocal %308 {approx = true} : vector<64x1xf32> -> vector<64x1xf32>
      %310 = vector.broadcast %309 : vector<64x1xf32> to vector<64x64xf32>
      %311 = arith.mulf %306, %310 : vector<64x64xf32>
      %312 = arith.truncf %311 : vector<64x64xf32> to vector<64x64xbf16>
      %313 = vector.extract_strided_slice %246 {offsets = [0, 24], sizes = [64, 8], strides = [1, 1]} : vector<64x128xbf16> to vector<64x8xbf16>
      %cst_129 = arith.constant dense<0.000000e+00> : vector<64x8xf32>
      %314 = tpu.matmul %312, %313, %cst_129 {dimension_numbers = #tpu.dot_dimension_numbers<[1], [0], [0], [1], [0, 0, 1, 1], [], []>} : vector<64x64xbf16>, vector<64x8xbf16>, vector<64x8xf32> -> vector<64x8xf32>
      %315 = tpu.concatenate %263, %280, %297, %314 in 1 : vector<64x8xf32>, vector<64x8xf32>, vector<64x8xf32>, vector<64x8xf32> -> vector<64x32xf32>
      %316 = arith.truncf %315 : vector<64x32xf32> to vector<64x32xbf16>
      %317 = arith.index_cast %arg28 : i32 to index
      %c0_130 = arith.constant 0 : index
      %c0_131 = arith.constant 0 : index
      %318 = vector.load %arg17[%317, %c0_130, %c0_131] : memref<2x32x128xbf16, #tpu.memory_space<vmem>>, vector<1x32x128xbf16>
      %319 = vector.shape_cast %318 : vector<1x32x128xbf16> to vector<32x128xbf16>
      %cst_132 = arith.constant dense<0.000000e+00> : vector<64x128xf32>
      %320 = tpu.matmul %316, %319, %cst_132 {dimension_numbers = #tpu.dot_dimension_numbers<[1], [0], [0], [1], [0, 0, 1, 1], [], []>} : vector<64x32xbf16>, vector<32x128xbf16>, vector<64x128xf32> -> vector<64x128xf32>
      %321 = arith.addf %arg29, %320 : vector<64x128xf32>
      %322 = arith.index_cast %arg28 : i32 to index
      %c0_133 = arith.constant 0 : index
      %c0_134 = arith.constant 0 : index
      %323 = vector.load %arg18[%322, %c0_133, %c0_134] : memref<2x1x128xf32, #tpu.memory_space<vmem>>, vector<1x1x128xf32>
      %324 = vector.shape_cast %323 : vector<1x1x128xf32> to vector<1x128xf32>
      %325 = vector.broadcast %324 : vector<1x128xf32> to vector<64x128xf32>
      %326 = arith.addf %321, %325 : vector<64x128xf32>
      %327 = arith.index_cast %arg28 : i32 to index
      %c0_135 = arith.constant 0 : index
      %c0_136 = arith.constant 0 : index
      %328 = vector.load %arg19[%327, %c0_135, %c0_136] : memref<2x1x128xf32, #tpu.memory_space<vmem>>, vector<1x1x128xf32>
      %329 = vector.shape_cast %328 : vector<1x1x128xf32> to vector<1x128xf32>
      %330 = arith.index_cast %arg28 : i32 to index
      %c0_137 = arith.constant 0 : index
      %c0_138 = arith.constant 0 : index
      %331 = vector.load %arg20[%330, %c0_137, %c0_138] : memref<2x1x128xf32, #tpu.memory_space<vmem>>, vector<1x1x128xf32>
      %332 = vector.shape_cast %331 : vector<1x1x128xf32> to vector<1x128xf32>
      %333 = vector.broadcast %4 : vector<1x128xf32> to vector<64x128xf32>
      %334 = arith.mulf %326, %333 : vector<64x128xf32>
      %cst_139 = arith.constant dense<0.000000e+00> : vector<64xf32>
      %335 = vector.multi_reduction <add>, %334, %cst_139 [1] : vector<64x128xf32> to vector<64xf32>
      %336 = vector.shape_cast %335 : vector<64xf32> to vector<64x1xf32>
      %cst_140 = arith.constant 3.125000e-02 : f32
      %337 = vector.broadcast %cst_140 : f32 to vector<64x1xf32>
      %338 = arith.mulf %336, %337 : vector<64x1xf32>
      %339 = vector.broadcast %338 : vector<64x1xf32> to vector<64x128xf32>
      %340 = arith.subf %326, %339 : vector<64x128xf32>
      %341 = vector.broadcast %4 : vector<1x128xf32> to vector<64x128xf32>
      %342 = arith.mulf %340, %341 : vector<64x128xf32>
      %343 = arith.mulf %342, %342 : vector<64x128xf32>
      %cst_141 = arith.constant dense<0.000000e+00> : vector<64xf32>
      %344 = vector.multi_reduction <add>, %343, %cst_141 [1] : vector<64x128xf32> to vector<64xf32>
      %345 = vector.shape_cast %344 : vector<64xf32> to vector<64x1xf32>
      %cst_142 = arith.constant 3.125000e-02 : f32
      %346 = vector.broadcast %cst_142 : f32 to vector<64x1xf32>
      %347 = arith.mulf %345, %346 : vector<64x1xf32>
      %cst_143 = arith.constant 9.99999974E-6 : f32
      %348 = vector.broadcast %cst_143 : f32 to vector<64x1xf32>
      %349 = arith.addf %347, %348 : vector<64x1xf32>
      %350 = math.rsqrt %349 : vector<64x1xf32>
      %351 = vector.broadcast %350 : vector<64x1xf32> to vector<64x128xf32>
      %352 = arith.mulf %342, %351 : vector<64x128xf32>
      %353 = vector.broadcast %329 : vector<1x128xf32> to vector<64x128xf32>
      %354 = arith.mulf %352, %353 : vector<64x128xf32>
      %355 = vector.broadcast %332 : vector<1x128xf32> to vector<64x128xf32>
      %356 = arith.addf %354, %355 : vector<64x128xf32>
      %357 = arith.truncf %356 : vector<64x128xf32> to vector<64x128xbf16>
      %358 = arith.index_cast %arg28 : i32 to index
      %c0_144 = arith.constant 0 : index
      %c0_145 = arith.constant 0 : index
      %359 = vector.load %arg21[%358, %c0_144, %c0_145] : memref<2x128x128xbf16, #tpu.memory_space<vmem>>, vector<1x128x128xbf16>
      %360 = vector.shape_cast %359 : vector<1x128x128xbf16> to vector<128x128xbf16>
      %cst_146 = arith.constant dense<0.000000e+00> : vector<64x128xf32>
      %361 = tpu.matmul %357, %360, %cst_146 {dimension_numbers = #tpu.dot_dimension_numbers<[1], [0], [0], [1], [0, 0, 1, 1], [], []>} : vector<64x128xbf16>, vector<128x128xbf16>, vector<64x128xf32> -> vector<64x128xf32>
      %362 = arith.index_cast %arg28 : i32 to index
      %c0_147 = arith.constant 0 : index
      %c0_148 = arith.constant 0 : index
      %363 = vector.load %arg22[%362, %c0_147, %c0_148] : memref<2x1x128xf32, #tpu.memory_space<vmem>>, vector<1x1x128xf32>
      %364 = vector.shape_cast %363 : vector<1x1x128xf32> to vector<1x128xf32>
      %365 = vector.broadcast %364 : vector<1x128xf32> to vector<64x128xf32>
      %366 = arith.addf %361, %365 : vector<64x128xf32>
      %cst_149 = arith.constant 5.000000e-01 : f32
      %367 = vector.broadcast %cst_149 : f32 to vector<64x128xf32>
      %368 = arith.mulf %367, %366 : vector<64x128xf32>
      %cst_150 = arith.constant 4.471500e-02 : f32
      %369 = vector.broadcast %cst_150 : f32 to vector<64x128xf32>
      %370 = arith.mulf %369, %366 : vector<64x128xf32>
      %371 = arith.mulf %370, %366 : vector<64x128xf32>
      %372 = arith.mulf %371, %366 : vector<64x128xf32>
      %373 = arith.addf %366, %372 : vector<64x128xf32>
      %cst_151 = arith.constant 0.797884583 : f32
      %374 = vector.broadcast %cst_151 : f32 to vector<64x128xf32>
      %375 = arith.mulf %374, %373 : vector<64x128xf32>
      %376 = math.tanh %375 : vector<64x128xf32>
      %cst_152 = arith.constant 1.000000e+00 : f32
      %377 = vector.broadcast %cst_152 : f32 to vector<64x128xf32>
      %378 = arith.addf %377, %376 : vector<64x128xf32>
      %379 = arith.mulf %368, %378 : vector<64x128xf32>
      %380 = arith.truncf %379 : vector<64x128xf32> to vector<64x128xbf16>
      %381 = arith.index_cast %arg28 : i32 to index
      %c0_153 = arith.constant 0 : index
      %c0_154 = arith.constant 0 : index
      %382 = vector.load %arg23[%381, %c0_153, %c0_154] : memref<2x128x128xbf16, #tpu.memory_space<vmem>>, vector<1x128x128xbf16>
      %383 = vector.shape_cast %382 : vector<1x128x128xbf16> to vector<128x128xbf16>
      %cst_155 = arith.constant dense<0.000000e+00> : vector<64x128xf32>
      %384 = tpu.matmul %380, %383, %cst_155 {dimension_numbers = #tpu.dot_dimension_numbers<[1], [0], [0], [1], [0, 0, 1, 1], [], []>} : vector<64x128xbf16>, vector<128x128xbf16>, vector<64x128xf32> -> vector<64x128xf32>
      %385 = arith.addf %326, %384 : vector<64x128xf32>
      %386 = arith.index_cast %arg28 : i32 to index
      %c0_156 = arith.constant 0 : index
      %c0_157 = arith.constant 0 : index
      %387 = vector.load %arg24[%386, %c0_156, %c0_157] : memref<2x1x128xf32, #tpu.memory_space<vmem>>, vector<1x1x128xf32>
      %388 = vector.shape_cast %387 : vector<1x1x128xf32> to vector<1x128xf32>
      %389 = vector.broadcast %388 : vector<1x128xf32> to vector<64x128xf32>
      %390 = arith.addf %385, %389 : vector<64x128xf32>
      scf.yield %390 : vector<64x128xf32>
    }
    %c2_i32_72 = arith.constant 2 : i32
    %c0_73 = arith.constant 0 : index
    %c0_74 = arith.constant 0 : index
    %149 = vector.load %arg25[%c0_73, %c0_74] : memref<1x128xf32, #tpu.memory_space<vmem>>, vector<1x128xf32>
    %c0_75 = arith.constant 0 : index
    %c0_76 = arith.constant 0 : index
    %150 = vector.load %arg26[%c0_75, %c0_76] : memref<1x128xf32, #tpu.memory_space<vmem>>, vector<1x128xf32>
    %151 = vector.broadcast %4 : vector<1x128xf32> to vector<64x128xf32>
    %152 = arith.mulf %148, %151 : vector<64x128xf32>
    %cst_77 = arith.constant dense<0.000000e+00> : vector<64xf32>
    %153 = vector.multi_reduction <add>, %152, %cst_77 [1] : vector<64x128xf32> to vector<64xf32>
    %154 = vector.shape_cast %153 : vector<64xf32> to vector<64x1xf32>
    %cst_78 = arith.constant 3.125000e-02 : f32
    %155 = vector.broadcast %cst_78 : f32 to vector<64x1xf32>
    %156 = arith.mulf %154, %155 : vector<64x1xf32>
    %157 = vector.broadcast %156 : vector<64x1xf32> to vector<64x128xf32>
    %158 = arith.subf %148, %157 : vector<64x128xf32>
    %159 = vector.broadcast %4 : vector<1x128xf32> to vector<64x128xf32>
    %160 = arith.mulf %158, %159 : vector<64x128xf32>
    %161 = arith.mulf %160, %160 : vector<64x128xf32>
    %cst_79 = arith.constant dense<0.000000e+00> : vector<64xf32>
    %162 = vector.multi_reduction <add>, %161, %cst_79 [1] : vector<64x128xf32> to vector<64xf32>
    %163 = vector.shape_cast %162 : vector<64xf32> to vector<64x1xf32>
    %cst_80 = arith.constant 3.125000e-02 : f32
    %164 = vector.broadcast %cst_80 : f32 to vector<64x1xf32>
    %165 = arith.mulf %163, %164 : vector<64x1xf32>
    %cst_81 = arith.constant 9.99999974E-6 : f32
    %166 = vector.broadcast %cst_81 : f32 to vector<64x1xf32>
    %167 = arith.addf %165, %166 : vector<64x1xf32>
    %168 = math.rsqrt %167 : vector<64x1xf32>
    %169 = vector.broadcast %168 : vector<64x1xf32> to vector<64x128xf32>
    %170 = arith.mulf %160, %169 : vector<64x128xf32>
    %171 = vector.broadcast %149 : vector<1x128xf32> to vector<64x128xf32>
    %172 = arith.mulf %170, %171 : vector<64x128xf32>
    %173 = vector.broadcast %150 : vector<1x128xf32> to vector<64x128xf32>
    %174 = arith.addf %172, %173 : vector<64x128xf32>
    %175 = vector.extract_strided_slice %174 {offsets = [0, 0], sizes = [32, 128], strides = [1, 1]} : vector<64x128xf32> to vector<32x128xf32>
    %cst_82 = arith.constant dense<0.000000e+00> : vector<128xf32>
    %176 = vector.multi_reduction <add>, %175, %cst_82 [0] : vector<32x128xf32> to vector<128xf32>
    %177 = vector.shape_cast %176 : vector<128xf32> to vector<1x128xf32>
    %cst_83 = arith.constant 3.200000e+01 : f32
    %178 = vector.broadcast %cst_83 : f32 to vector<1x128xf32>
    %179 = arith.divf %177, %178 : vector<1x128xf32>
    %c0_84 = arith.constant 0 : index
    %c0_85 = arith.constant 0 : index
    %c0_86 = arith.constant 0 : index
    %180 = vector.load %arg27[%c0_84, %c0_85, %c0_86] : memref<2x1x128xf32, #tpu.memory_space<vmem>>, vector<1x1x128xf32>
    %181 = vector.shape_cast %180 : vector<1x1x128xf32> to vector<1x128xf32>
    %182 = vector.shape_cast %179 : vector<1x128xf32> to vector<1x1x128xf32>
    tpu.vector_store %arg27[%c0_84, %c0_85, %c0_86], %182 {strides = array<i32>} : memref<2x1x128xf32, #tpu.memory_space<vmem>>, vector<1x1x128xf32>,
    %183 = vector.extract_strided_slice %174 {offsets = [32, 0], sizes = [32, 128], strides = [1, 1]} : vector<64x128xf32> to vector<32x128xf32>
    %cst_87 = arith.constant dense<0.000000e+00> : vector<128xf32>
    %184 = vector.multi_reduction <add>, %183, %cst_87 [0] : vector<32x128xf32> to vector<128xf32>
    %185 = vector.shape_cast %184 : vector<128xf32> to vector<1x128xf32>
    %cst_88 = arith.constant 3.200000e+01 : f32
    %186 = vector.broadcast %cst_88 : f32 to vector<1x128xf32>
    %187 = arith.divf %185, %186 : vector<1x128xf32>
    %c1_89 = arith.constant 1 : index
    %c0_90 = arith.constant 0 : index
    %c0_91 = arith.constant 0 : index
    %188 = vector.load %arg27[%c1_89, %c0_90, %c0_91] : memref<2x1x128xf32, #tpu.memory_space<vmem>>, vector<1x1x128xf32>
    %189 = vector.shape_cast %188 : vector<1x1x128xf32> to vector<1x128xf32>
    %190 = vector.shape_cast %187 : vector<1x128xf32> to vector<1x1x128xf32>
    tpu.vector_store %arg27[%c1_89, %c0_90, %c0_91], %190 {strides = array<i32>} : memref<2x1x128xf32, #tpu.memory_space<vmem>>, vector<1x1x128xf32>,
    return
  }
  func.func @transform_0(%arg0: i32) -> (i32, i32) {
    %c0_i32 = arith.constant 0 : i32
    %c0_i32_0 = arith.constant 0 : i32
    return %arg0, %c0_i32 : i32, i32
  }
  func.func @transform_1(%arg0: i32) -> (i32, i32) {
    %c0_i32 = arith.constant 0 : i32
    %c0_i32_0 = arith.constant 0 : i32
    %c0_i32_1 = arith.constant 0 : i32
    return %c0_i32, %c0_i32_0 : i32, i32
  }
  func.func @transform_2(%arg0: i32) -> (i32, i32) {
    %c0_i32 = arith.constant 0 : i32
    %c0_i32_0 = arith.constant 0 : i32
    %c0_i32_1 = arith.constant 0 : i32
    return %c0_i32, %c0_i32_0 : i32, i32
  }
  func.func @transform_3(%arg0: i32) -> (i32, i32, i32) {
    %c0_i32 = arith.constant 0 : i32
    %c0_i32_0 = arith.constant 0 : i32
    %c0_i32_1 = arith.constant 0 : i32
    %c0_i32_2 = arith.constant 0 : i32
    return %c0_i32, %c0_i32_0, %c0_i32_1 : i32, i32, i32
  }
  func.func @transform_4(%arg0: i32) -> (i32, i32) {
    %c0_i32 = arith.constant 0 : i32
    %c0_i32_0 = arith.constant 0 : i32
    %c0_i32_1 = arith.constant 0 : i32
    return %c0_i32, %c0_i32_0 : i32, i32
  }
  func.func @transform_5(%arg0: i32) -> (i32, i32, i32) {
    %c0_i32 = arith.constant 0 : i32
    %c0_i32_0 = arith.constant 0 : i32
    %c0_i32_1 = arith.constant 0 : i32
    %c0_i32_2 = arith.constant 0 : i32
    return %c0_i32, %c0_i32_0, %c0_i32_1 : i32, i32, i32
  }
  func.func @transform_6(%arg0: i32) -> (i32, i32, i32) {
    %c0_i32 = arith.constant 0 : i32
    %c0_i32_0 = arith.constant 0 : i32
    %c0_i32_1 = arith.constant 0 : i32
    %c0_i32_2 = arith.constant 0 : i32
    return %c0_i32, %c0_i32_0, %c0_i32_1 : i32, i32, i32
  }
  func.func @transform_7(%arg0: i32) -> (i32, i32) {
    %c0_i32 = arith.constant 0 : i32
    %c0_i32_0 = arith.constant 0 : i32
    %c0_i32_1 = arith.constant 0 : i32
    return %c0_i32, %c0_i32_0 : i32, i32
  }
  func.func @transform_8(%arg0: i32) -> (i32, i32) {
    %c0_i32 = arith.constant 0 : i32
    %c0_i32_0 = arith.constant 0 : i32
    %c0_i32_1 = arith.constant 0 : i32
    return %c0_i32, %c0_i32_0 : i32, i32
  }
  func.func @transform_9(%arg0: i32) -> (i32, i32, i32) {
    %c0_i32 = arith.constant 0 : i32
    %c0_i32_0 = arith.constant 0 : i32
    %c0_i32_1 = arith.constant 0 : i32
    %c0_i32_2 = arith.constant 0 : i32
    return %c0_i32, %c0_i32_0, %c0_i32_1 : i32, i32, i32
  }
  func.func @transform_10(%arg0: i32) -> (i32, i32, i32) {
    %c0_i32 = arith.constant 0 : i32
    %c0_i32_0 = arith.constant 0 : i32
    %c0_i32_1 = arith.constant 0 : i32
    %c0_i32_2 = arith.constant 0 : i32
    return %c0_i32, %c0_i32_0, %c0_i32_1 : i32, i32, i32
  }
  func.func @transform_11(%arg0: i32) -> (i32, i32, i32) {
    %c0_i32 = arith.constant 0 : i32
    %c0_i32_0 = arith.constant 0 : i32
    %c0_i32_1 = arith.constant 0 : i32
    %c0_i32_2 = arith.constant 0 : i32
    return %c0_i32, %c0_i32_0, %c0_i32_1 : i32, i32, i32
  }
  func.func @transform_12(%arg0: i32) -> (i32, i32, i32) {
    %c0_i32 = arith.constant 0 : i32
    %c0_i32_0 = arith.constant 0 : i32
    %c0_i32_1 = arith.constant 0 : i32
    %c0_i32_2 = arith.constant 0 : i32
    return %c0_i32, %c0_i32_0, %c0_i32_1 : i32, i32, i32
  }
  func.func @transform_13(%arg0: i32) -> (i32, i32, i32) {
    %c0_i32 = arith.constant 0 : i32
    %c0_i32_0 = arith.constant 0 : i32
    %c0_i32_1 = arith.constant 0 : i32
    %c0_i32_2 = arith.constant 0 : i32
    return %c0_i32, %c0_i32_0, %c0_i32_1 : i32, i32, i32
  }
  func.func @transform_14(%arg0: i32) -> (i32, i32, i32) {
    %c0_i32 = arith.constant 0 : i32
    %c0_i32_0 = arith.constant 0 : i32
    %c0_i32_1 = arith.constant 0 : i32
    %c0_i32_2 = arith.constant 0 : i32
    return %c0_i32, %c0_i32_0, %c0_i32_1 : i32, i32, i32
  }
  func.func @transform_15(%arg0: i32) -> (i32, i32, i32) {
    %c0_i32 = arith.constant 0 : i32
    %c0_i32_0 = arith.constant 0 : i32
    %c0_i32_1 = arith.constant 0 : i32
    %c0_i32_2 = arith.constant 0 : i32
    return %c0_i32, %c0_i32_0, %c0_i32_1 : i32, i32, i32
  }
  func.func @transform_16(%arg0: i32) -> (i32, i32, i32) {
    %c0_i32 = arith.constant 0 : i32
    %c0_i32_0 = arith.constant 0 : i32
    %c0_i32_1 = arith.constant 0 : i32
    %c0_i32_2 = arith.constant 0 : i32
    return %c0_i32, %c0_i32_0, %c0_i32_1 : i32, i32, i32
  }
  func.func @transform_17(%arg0: i32) -> (i32, i32, i32) {
    %c0_i32 = arith.constant 0 : i32
    %c0_i32_0 = arith.constant 0 : i32
    %c0_i32_1 = arith.constant 0 : i32
    %c0_i32_2 = arith.constant 0 : i32
    return %c0_i32, %c0_i32_0, %c0_i32_1 : i32, i32, i32
  }
  func.func @transform_18(%arg0: i32) -> (i32, i32, i32) {
    %c0_i32 = arith.constant 0 : i32
    %c0_i32_0 = arith.constant 0 : i32
    %c0_i32_1 = arith.constant 0 : i32
    %c0_i32_2 = arith.constant 0 : i32
    return %c0_i32, %c0_i32_0, %c0_i32_1 : i32, i32, i32
  }
  func.func @transform_19(%arg0: i32) -> (i32, i32, i32) {
    %c0_i32 = arith.constant 0 : i32
    %c0_i32_0 = arith.constant 0 : i32
    %c0_i32_1 = arith.constant 0 : i32
    %c0_i32_2 = arith.constant 0 : i32
    return %c0_i32, %c0_i32_0, %c0_i32_1 : i32, i32, i32
  }
  func.func @transform_20(%arg0: i32) -> (i32, i32, i32) {
    %c0_i32 = arith.constant 0 : i32
    %c0_i32_0 = arith.constant 0 : i32
    %c0_i32_1 = arith.constant 0 : i32
    %c0_i32_2 = arith.constant 0 : i32
    return %c0_i32, %c0_i32_0, %c0_i32_1 : i32, i32, i32
  }
  func.func @transform_21(%arg0: i32) -> (i32, i32, i32) {
    %c0_i32 = arith.constant 0 : i32
    %c0_i32_0 = arith.constant 0 : i32
    %c0_i32_1 = arith.constant 0 : i32
    %c0_i32_2 = arith.constant 0 : i32
    return %c0_i32, %c0_i32_0, %c0_i32_1 : i32, i32, i32
  }
  func.func @transform_22(%arg0: i32) -> (i32, i32, i32) {
    %c0_i32 = arith.constant 0 : i32
    %c0_i32_0 = arith.constant 0 : i32
    %c0_i32_1 = arith.constant 0 : i32
    %c0_i32_2 = arith.constant 0 : i32
    return %c0_i32, %c0_i32_0, %c0_i32_1 : i32, i32, i32
  }
  func.func @transform_23(%arg0: i32) -> (i32, i32, i32) {
    %c0_i32 = arith.constant 0 : i32
    %c0_i32_0 = arith.constant 0 : i32
    %c0_i32_1 = arith.constant 0 : i32
    %c0_i32_2 = arith.constant 0 : i32
    return %c0_i32, %c0_i32_0, %c0_i32_1 : i32, i32, i32
  }
  func.func @transform_24(%arg0: i32) -> (i32, i32) {
    %c0_i32 = arith.constant 0 : i32
    %c0_i32_0 = arith.constant 0 : i32
    %c0_i32_1 = arith.constant 0 : i32
    return %c0_i32, %c0_i32_0 : i32, i32
  }
  func.func @transform_25(%arg0: i32) -> (i32, i32) {
    %c0_i32 = arith.constant 0 : i32
    %c0_i32_0 = arith.constant 0 : i32
    %c0_i32_1 = arith.constant 0 : i32
    return %c0_i32, %c0_i32_0 : i32, i32
  }
  func.func @transform_26(%arg0: i32) -> (i32, i32, i32) {
    %c0_i32 = arith.constant 0 : i32
    %c0_i32_0 = arith.constant 0 : i32
    %c0_i32_1 = arith.constant 0 : i32
    return %arg0, %c0_i32, %c0_i32_0 : i32, i32, i32
  }
}

</mosaic_0001>

<llo_original>
// kernel: tpu_custom_call.1
$region0: #{tpu_custom_call.1}
  #allocation0 [shape = 'u32[]', space=smem, size = 0x4, offset = 0x4, fixed_abs, tag = 'smem constant byte address 0x4 - core index']
  #allocation1 [shape = 'u32[144,128]{1,0:T(1,128)}', space=vmem, size = 0x12000, scoped, tag = 'internal scratch']
  %s0 = inlined_call_operand.hbm [shape: f32[128,128], index: 0, kind: input, shape index: {}]
  %s1 = inlined_call_operand.hbm [shape: bf16[128,128], index: 1, kind: input, shape index: {}]
  %s2 = inlined_call_operand.hbm [shape: f32[1,128], index: 2, kind: input, shape index: {}]
  %s3 = inlined_call_operand.hbm [shape: bf16[3,128,128], index: 3, kind: input, shape index: {}]
  %s4 = inlined_call_operand.hbm [shape: f32[1,128], index: 4, kind: input, shape index: {}]
  %s5 = inlined_call_operand.hbm [shape: bf16[3,64,128], index: 5, kind: input, shape index: {}]
  %s6 = inlined_call_operand.hbm [shape: bf16[3,128,128], index: 6, kind: input, shape index: {}]
  %s7 = inlined_call_operand.vmem [shape: f32[1,128], index: 7, kind: input, shape index: {}]
  %s8 = inlined_call_operand.hbm [shape: f32[64,128], index: 8, kind: input, shape index: {}]
  %s9 = inlined_call_operand.vmem [shape: f32[2,1,128], index: 9, kind: input, shape index: {}]
  %s10 = inlined_call_operand.vmem [shape: f32[2,1,128], index: 10, kind: input, shape index: {}]
  %s11 = inlined_call_operand.hbm [shape: bf16[2,128,128], index: 11, kind: input, shape index: {}]
  %s12 = inlined_call_operand.vmem [shape: f32[2,1,128], index: 12, kind: input, shape index: {}]
  %s13 = inlined_call_operand.hbm [shape: bf16[2,128,128], index: 13, kind: input, shape index: {}]
  %s14 = inlined_call_operand.hbm [shape: bf16[2,128,128], index: 14, kind: input, shape index: {}]
  %s15 = inlined_call_operand.vmem [shape: f32[2,1,128], index: 15, kind: input, shape index: {}]
  %s16 = inlined_call_operand.vmem [shape: bf16[2,32,128], index: 16, kind: input, shape index: {}]
  %s17 = inlined_call_operand.vmem [shape: f32[2,1,128], index: 17, kind: input, shape index: {}]
  %s18 = inlined_call_operand.vmem [shape: f32[2,1,128], index: 18, kind: input, shape index: {}]
  %s19 = inlined_call_operand.vmem [shape: f32[2,1,128], index: 19, kind: input, shape index: {}]
  %s20 = inlined_call_operand.hbm [shape: bf16[2,128,128], index: 20, kind: input, shape index: {}]
  %s21 = inlined_call_operand.vmem [shape: f32[2,1,128], index: 21, kind: input, shape index: {}]
  %s22 = inlined_call_operand.hbm [shape: bf16[2,128,128], index: 22, kind: input, shape index: {}]
  %s23 = inlined_call_operand.vmem [shape: f32[2,1,128], index: 23, kind: input, shape index: {}]
  %s24 = inlined_call_operand.vmem [shape: f32[1,128], index: 24, kind: input, shape index: {}]
  %s25 = inlined_call_operand.vmem [shape: f32[1,128], index: 25, kind: input, shape index: {}]
  %s26 = inlined_call_operand.hbm [shape: f32[2,1,128], index: 26, kind: output, shape index: {}]
  %s27 = sld [smem:[#allocation0]]
  $region173: #{tpu_custom_call.1} parent=0
    _
  %s29 = ssub.s32 1, %s27
  %s30 = scalar_select 0, %s29, %s27
  $region1: #{tpu_custom_call.1} parent=0
    #allocation2 [shape = 'u8[65536]{0}', space=vmem, size = 0x10000, scoped, tag = 'input window, operand 0, single buffered']
    #allocation3 [shape = 's32[1]{0}', space=sflag, size = 0x4, scoped, tag = 'scoped memory for tpu_custom_call.1']
    #allocation4 [shape = 's32[1]{0}', space=sflag, size = 0x4, scoped, tag = 'scoped memory for tpu_custom_call.1']
    #allocation5 [shape = 'u8[32768]{0}', space=vmem, size = 0x8000, scoped, tag = 'input window, operand 1, single buffered']
    #allocation6 [shape = 's32[1]{0}', space=sflag, size = 0x4, scoped, tag = 'scoped memory for tpu_custom_call.1']
    #allocation7 [shape = 'u8[512]{0}', space=vmem, size = 0x400, scoped, tag = 'input window, operand 2, single buffered']
    #allocation8 [shape = 'u8[98304]{0}', space=vmem, size = 0x18000, scoped, tag = 'input window, operand 3, single buffered']
    #allocation9 [shape = 's32[1]{0}', space=sflag, size = 0x4, scoped, tag = 'scoped memory for tpu_custom_call.1']
    #allocation10 [shape = 'u8[512]{0}', space=vmem, size = 0x400, scoped, tag = 'input window, operand 4, single buffered']
    #allocation11 [shape = 'u8[49152]{0}', space=vmem, size = 0xc000, scoped, tag = 'input window, operand 5, single buffered']
    #allocation12 [shape = 's32[1]{0}', space=sflag, size = 0x4, scoped, tag = 'scoped memory for tpu_custom_call.1']
    #allocation13 [shape = 'u8[98304]{0}', space=vmem, size = 0x18000, scoped, tag = 'input window, operand 6, single buffered']
    #allocation14 [shape = 'u8[32768]{0}', space=vmem, size = 0x8000, scoped, tag = 'input window, operand 8, single buffered']
    #allocation15 [shape = 's32[1]{0}', space=sflag, size = 0x4, scoped, tag = 'scoped memory for tpu_custom_call.1']
    #allocation16 [shape = 'u8[65536]{0}', space=vmem, size = 0x10000, scoped, tag = 'input window, operand 11, single buffered']
    #allocation17 [shape = 'u8[65536]{0}', space=vmem, size = 0x10000, scoped, tag = 'input window, operand 13, single buffered']
    #allocation18 [shape = 's32[1]{0}', space=sflag, size = 0x4, scoped, tag = 'scoped memory for tpu_custom_call.1']
    #allocation19 [shape = 'u8[65536]{0}', space=vmem, size = 0x10000, scoped, tag = 'input window, operand 14, single buffered']
    #allocation20 [shape = 'u8[65536]{0}', space=vmem, size = 0x10000, scoped, tag = 'input window, operand 20, single buffered']
    #allocation21 [shape = 's32[1]{0}', space=sflag, size = 0x4, scoped, tag = 'scoped memory for tpu_custom_call.1']
    #allocation22 [shape = 'u8[65536]{0}', space=vmem, size = 0x10000, scoped, tag = 'input window, operand 22, single buffered']
    #allocation23 [shape = 'u8[1024]{0}', space=vmem, size = 0x400, scoped, tag = 'output window, operand 0, single buffered']
    %31 = vsyncpa [#allocation3], 0
    %32 = vsyncpa [#allocation6], 0
    %33 = vsyncpa [#allocation9], 0
    %34 = vsyncpa [#allocation12], 0
    %35 = vsyncpa [#allocation15], 0
    %36 = vsyncpa [#allocation18], 0
    %37 = vsyncpa [#allocation21], 0
    %38 = vsyncpa [#allocation4], 0
    // Predicated region
    $region2: #{tpu_custom_call.1} parent=1 // pred_check
      _
    $region3: #{tpu_custom_call.1} parent=1 // pred_check_branch
      %40 = sbr.rel (0) target = $region5
    $region4: #{tpu_custom_call.1} parent=1 // pred_region
      %s42 = ssub.s32 2048, 2048
      %43 = vsyncadd [#allocation3], %s42
      %s44 = sshll.u32 [#allocation2], 4
      %s45 = int_to_ptr.vmem [resolvable:$true] %s44
      %50 = dma.hbm_to_vmem [thread:$0]  %s0, 2048, %s45, [#allocation3], 128, 128, 8
    $region5: #{tpu_custom_call.1} parent=1 // pred_fallthru
      _
    // Predicated region
    $region6: #{tpu_custom_call.1} parent=1 // pred_check
      _
    $region7: #{tpu_custom_call.1} parent=1 // pred_check_branch
      %52 = sbr.rel (0) target = $region9
    $region8: #{tpu_custom_call.1} parent=1 // pred_region
      %s54 = ssub.s32 1024, 1024
      %55 = vsyncadd [#allocation6], %s54
      %s56 = sshll.u32 [#allocation5], 4
      %s57 = int_to_ptr.vmem [resolvable:$true] %s56
      %62 = dma.hbm_to_vmem [thread:$0]  %s1, 1024, %s57, [#allocation6], 64, 64, 4
    $region9: #{tpu_custom_call.1} parent=1 // pred_fallthru
      _
    // Predicated region
    $region10: #{tpu_custom_call.1} parent=1 // pred_check
      _
    $region11: #{tpu_custom_call.1} parent=1 // pred_check_branch
      %64 = sbr.rel (0) target = $region13
    $region12: #{tpu_custom_call.1} parent=1 // pred_region
      %s66 = ssub.s32 16, 16
      %67 = vsyncadd [#allocation6], %s66
      %s69 = sshll.u32 [#allocation7], 4
      %s70 = int_to_ptr.vmem [resolvable:$true] %s69
      %72 = dma.hbm_to_vmem [thread:$0]  %s2, 16, %s70, [#allocation6]
    $region13: #{tpu_custom_call.1} parent=1 // pred_fallthru
      _
    // Predicated region
    $region14: #{tpu_custom_call.1} parent=1 // pred_check
      _
    $region15: #{tpu_custom_call.1} parent=1 // pred_check_branch
      %74 = sbr.rel (0) target = $region17
    $region16: #{tpu_custom_call.1} parent=1 // pred_region
      %s76 = ssub.s32 3072, 3072
      %77 = vsyncadd [#allocation9], %s76
      %s78 = sshll.u32 [#allocation8], 4
      %s79 = int_to_ptr.vmem [resolvable:$true] %s78
      %84 = dma.hbm_to_vmem [thread:$0]  %s3, 3072, %s79, [#allocation9], 64, 64, 4
    $region17: #{tpu_custom_call.1} parent=1 // pred_fallthru
      _
    // Predicated region
    $region18: #{tpu_custom_call.1} parent=1 // pred_check
      _
    $region19: #{tpu_custom_call.1} parent=1 // pred_check_branch
      %86 = sbr.rel (0) target = $region21
    $region20: #{tpu_custom_call.1} parent=1 // pred_region
      %s88 = ssub.s32 16, 16
      %89 = vsyncadd [#allocation9], %s88
      %s91 = sshll.u32 [#allocation10], 4
      %s92 = int_to_ptr.vmem [resolvable:$true] %s91
      %94 = dma.hbm_to_vmem [thread:$0]  %s4, 16, %s92, [#allocation9]
    $region21: #{tpu_custom_call.1} parent=1 // pred_fallthru
      _
    // Predicated region
    $region22: #{tpu_custom_call.1} parent=1 // pred_check
      _
    $region23: #{tpu_custom_call.1} parent=1 // pred_check_branch
      %96 = sbr.rel (0) target = $region25
    $region24: #{tpu_custom_call.1} parent=1 // pred_region
      %s98 = ssub.s32 1536, 1536
      %99 = vsyncadd [#allocation12], %s98
      %s100 = sshll.u32 [#allocation11], 4
      %s101 = int_to_ptr.vmem [resolvable:$true] %s100
      %106 = dma.hbm_to_vmem [thread:$0]  %s5, 1536, %s101, [#allocation12], 64, 64, 4
    $region25: #{tpu_custom_call.1} parent=1 // pred_fallthru
      _
    // Predicated region
    $region26: #{tpu_custom_call.1} parent=1 // pred_check
      _
    $region27: #{tpu_custom_call.1} parent=1 // pred_check_branch
      %108 = sbr.rel (0) target = $region29
    $region28: #{tpu_custom_call.1} parent=1 // pred_region
      %s110 = ssub.s32 3072, 3072
      %111 = vsyncadd [#allocation12], %s110
      %s112 = sshll.u32 [#allocation13], 4
      %s113 = int_to_ptr.vmem [resolvable:$true] %s112
      %118 = dma.hbm_to_vmem [thread:$0]  %s6, 3072, %s113, [#allocation12], 64, 64, 4
    $region29: #{tpu_custom_call.1} parent=1 // pred_fallthru
      _
    // Predicated region
    $region30: #{tpu_custom_call.1} parent=1 // pred_check
      _
    $region31: #{tpu_custom_call.1} parent=1 // pred_check_branch
      %120 = sbr.rel (0) target = $region33
    $region32: #{tpu_custom_call.1} parent=1 // pred_region
      _
    $region33: #{tpu_custom_call.1} parent=1 // pred_fallthru
      _
    // Predicated region
    $region34: #{tpu_custom_call.1} parent=1 // pred_check
      _
    $region35: #{tpu_custom_call.1} parent=1 // pred_check_branch
      %122 = sbr.rel (0) target = $region37
    $region36: #{tpu_custom_call.1} parent=1 // pred_region
      %s124 = ssub.s32 1024, 1024
      %125 = vsyncadd [#allocation15], %s124
      %s126 = sshll.u32 [#allocation14], 4
      %s127 = int_to_ptr.vmem [resolvable:$true] %s126
      %132 = dma.hbm_to_vmem [thread:$0]  %s8, 1024, %s127, [#allocation15], 128, 128, 8
    $region37: #{tpu_custom_call.1} parent=1 // pred_fallthru
      _
    // Predicated region
    $region38: #{tpu_custom_call.1} parent=1 // pred_check
      _
    $region39: #{tpu_custom_call.1} parent=1 // pred_check_branch
      %134 = sbr.rel (0) target = $region41
    $region40: #{tpu_custom_call.1} parent=1 // pred_region
      _
    $region41: #{tpu_custom_call.1} parent=1 // pred_fallthru
      _
    // Predicated region
    $region42: #{tpu_custom_call.1} parent=1 // pred_check
      _
    $region43: #{tpu_custom_call.1} parent=1 // pred_check_branch
      %136 = sbr.rel (0) target = $region45
    $region44: #{tpu_custom_call.1} parent=1 // pred_region
      _
    $region45: #{tpu_custom_call.1} parent=1 // pred_fallthru
      _
    // Predicated region
    $region46: #{tpu_custom_call.1} parent=1 // pred_check
      _
    $region47: #{tpu_custom_call.1} parent=1 // pred_check_branch
      %138 = sbr.rel (0) target = $region49
    $region48: #{tpu_custom_call.1} parent=1 // pred_region
      %s140 = ssub.s32 2048, 2048
      %141 = vsyncadd [#allocation15], %s140
      %s142 = sshll.u32 [#allocation16], 4
      %s143 = int_to_ptr.vmem [resolvable:$true] %s142
      %148 = dma.hbm_to_vmem [thread:$0]  %s11, 2048, %s143, [#allocation15], 64, 64, 4
    $region49: #{tpu_custom_call.1} parent=1 // pred_fallthru
      _
    // Predicated region
    $region50: #{tpu_custom_call.1} parent=1 // pred_check
      _
    $region51: #{tpu_custom_call.1} parent=1 // pred_check_branch
      %150 = sbr.rel (0) target = $region53
    $region52: #{tpu_custom_call.1} parent=1 // pred_region
      _
    $region53: #{tpu_custom_call.1} parent=1 // pred_fallthru
      _
    // Predicated region
    $region54: #{tpu_custom_call.1} parent=1 // pred_check
      _
    $region55: #{tpu_custom_call.1} parent=1 // pred_check_branch
      %152 = sbr.rel (0) target = $region57
    $region56: #{tpu_custom_call.1} parent=1 // pred_region
      %s154 = ssub.s32 2048, 2048
      %155 = vsyncadd [#allocation18], %s154
      %s156 = sshll.u32 [#allocation17], 4
      %s157 = int_to_ptr.vmem [resolvable:$true] %s156
      %162 = dma.hbm_to_vmem [thread:$0]  %s13, 2048, %s157, [#allocation18], 64, 64, 4
    $region57: #{tpu_custom_call.1} parent=1 // pred_fallthru
      _
    // Predicated region
    $region58: #{tpu_custom_call.1} parent=1 // pred_check
      _
    $region59: #{tpu_custom_call.1} parent=1 // pred_check_branch
      %164 = sbr.rel (0) target = $region61
    $region60: #{tpu_custom_call.1} parent=1 // pred_region
      %s166 = ssub.s32 2048, 2048
      %167 = vsyncadd [#allocation18], %s166
      %s168 = sshll.u32 [#allocation19], 4
      %s169 = int_to_ptr.vmem [resolvable:$true] %s168
      %174 = dma.hbm_to_vmem [thread:$0]  %s14, 2048, %s169, [#allocation18], 64, 64, 4
    $region61: #{tpu_custom_call.1} parent=1 // pred_fallthru
      _
    // Predicated region
    $region62: #{tpu_custom_call.1} parent=1 // pred_check
      _
    $region63: #{tpu_custom_call.1} parent=1 // pred_check_branch
      %176 = sbr.rel (0) target = $region65
    $region64: #{tpu_custom_call.1} parent=1 // pred_region
      _
    $region65: #{tpu_custom_call.1} parent=1 // pred_fallthru
      _
    // Predicated region
    $region66: #{tpu_custom_call.1} parent=1 // pred_check
      _
    $region67: #{tpu_custom_call.1} parent=1 // pred_check_branch
      %178 = sbr.rel (0) target = $region69
    $region68: #{tpu_custom_call.1} parent=1 // pred_region
      _
    $region69: #{tpu_custom_call.1} parent=1 // pred_fallthru
      _
    // Predicated region
    $region70: #{tpu_custom_call.1} parent=1 // pred_check
      _
    $region71: #{tpu_custom_call.1} parent=1 // pred_check_branch
      %180 = sbr.rel (0) target = $region73
    $region72: #{tpu_custom_call.1} parent=1 // pred_region
      _
    $region73: #{tpu_custom_call.1} parent=1 // pred_fallthru
      _
    // Predicated region
    $region74: #{tpu_custom_call.1} parent=1 // pred_check
      _
    $region75: #{tpu_custom_call.1} parent=1 // pred_check_branch
      %182 = sbr.rel (0) target = $region77
    $region76: #{tpu_custom_call.1} parent=1 // pred_region
      _
    $region77: #{tpu_custom_call.1} parent=1 // pred_fallthru
      _
    // Predicated region
    $region78: #{tpu_custom_call.1} parent=1 // pred_check
      _
    $region79: #{tpu_custom_call.1} parent=1 // pred_check_branch
      %184 = sbr.rel (0) target = $region81
    $region80: #{tpu_custom_call.1} parent=1 // pred_region
      _
    $region81: #{tpu_custom_call.1} parent=1 // pred_fallthru
      _
    // Predicated region
    $region82: #{tpu_custom_call.1} parent=1 // pred_check
      _
    $region83: #{tpu_custom_call.1} parent=1 // pred_check_branch
      %186 = sbr.rel (0) target = $region85
    $region84: #{tpu_custom_call.1} parent=1 // pred_region
      %s188 = ssub.s32 2048, 2048
      %189 = vsyncadd [#allocation21], %s188
      %s190 = sshll.u32 [#allocation20], 4
      %s191 = int_to_ptr.vmem [resolvable:$true] %s190
      %196 = dma.hbm_to_vmem [thread:$0]  %s20, 2048, %s191, [#allocation21], 64, 64, 4
    $region85: #{tpu_custom_call.1} parent=1 // pred_fallthru
      _
    // Predicated region
    $region86: #{tpu_custom_call.1} parent=1 // pred_check
      _
    $region87: #{tpu_custom_call.1} parent=1 // pred_check_branch
      %198 = sbr.rel (0) target = $region89
    $region88: #{tpu_custom_call.1} parent=1 // pred_region
      _
    $region89: #{tpu_custom_call.1} parent=1 // pred_fallthru
      _
    // Predicated region
    $region90: #{tpu_custom_call.1} parent=1 // pred_check
      _
    $region91: #{tpu_custom_call.1} parent=1 // pred_check_branch
      %200 = sbr.rel (0) target = $region93
    $region92: #{tpu_custom_call.1} parent=1 // pred_region
      %s202 = ssub.s32 2048, 2048
      %203 = vsyncadd [#allocation21], %s202
      %s204 = sshll.u32 [#allocation22], 4
      %s205 = int_to_ptr.vmem [resolvable:$true] %s204
      %210 = dma.hbm_to_vmem [thread:$0]  %s22, 2048, %s205, [#allocation21], 64, 64, 4
    $region93: #{tpu_custom_call.1} parent=1 // pred_fallthru
      _
    // Predicated region
    $region94: #{tpu_custom_call.1} parent=1 // pred_check
      _
    $region95: #{tpu_custom_call.1} parent=1 // pred_check_branch
      %212 = sbr.rel (0) target = $region97
    $region96: #{tpu_custom_call.1} parent=1 // pred_region
      _
    $region97: #{tpu_custom_call.1} parent=1 // pred_fallthru
      _
    // Predicated region
    $region98: #{tpu_custom_call.1} parent=1 // pred_check
      _
    $region99: #{tpu_custom_call.1} parent=1 // pred_check_branch
      %214 = sbr.rel (0) target = $region101
    $region100: #{tpu_custom_call.1} parent=1 // pred_region
      _
    $region101: #{tpu_custom_call.1} parent=1 // pred_fallthru
      _
    // Predicated region
    $region102: #{tpu_custom_call.1} parent=1 // pred_check
      _
    $region103: #{tpu_custom_call.1} parent=1 // pred_check_branch
      %216 = sbr.rel (0) target = $region105
    $region104: #{tpu_custom_call.1} parent=1 // pred_region
      _
    $region105: #{tpu_custom_call.1} parent=1 // pred_fallthru
      _
    // Predicated region
    $region106: #{tpu_custom_call.1} parent=1 // pred_check
      _
    $region107: #{tpu_custom_call.1} parent=1 // pred_check_branch
      %218 = sbr.rel (0) target = $region109
    $region108: #{tpu_custom_call.1} parent=1 // pred_region
      %219 = dma.done [#allocation3], 2048
    $region109: #{tpu_custom_call.1} parent=1 // pred_fallthru
      _
    // Predicated region
    $region110: #{tpu_custom_call.1} parent=1 // pred_check
      _
    $region111: #{tpu_custom_call.1} parent=1 // pred_check_branch
      %221 = sbr.rel (0) target = $region113
    $region112: #{tpu_custom_call.1} parent=1 // pred_region
      %222 = dma.done [#allocation6], 1024
    $region113: #{tpu_custom_call.1} parent=1 // pred_fallthru
      _
    // Predicated region
    $region114: #{tpu_custom_call.1} parent=1 // pred_check
      _
    $region115: #{tpu_custom_call.1} parent=1 // pred_check_branch
      %224 = sbr.rel (0) target = $region117
    $region116: #{tpu_custom_call.1} parent=1 // pred_region
      %225 = dma.done [#allocation6], 16
    $region117: #{tpu_custom_call.1} parent=1 // pred_fallthru
      _
    // Predicated region
    $region118: #{tpu_custom_call.1} parent=1 // pred_check
      _
    $region119: #{tpu_custom_call.1} parent=1 // pred_check_branch
      %227 = sbr.rel (0) target = $region121
    $region120: #{tpu_custom_call.1} parent=1 // pred_region
      %228 = dma.done [#allocation9], 3072
    $region121: #{tpu_custom_call.1} parent=1 // pred_fallthru
      _
    // Predicated region
    $region122: #{tpu_custom_call.1} parent=1 // pred_check
      _
    $region123: #{tpu_custom_call.1} parent=1 // pred_check_branch
      %230 = sbr.rel (0) target = $region125
    $region124: #{tpu_custom_call.1} parent=1 // pred_region
      %231 = dma.done [#allocation9], 16
    $region125: #{tpu_custom_call.1} parent=1 // pred_fallthru
      _
    // Predicated region
    $region126: #{tpu_custom_call.1} parent=1 // pred_check
      _
    $region127: #{tpu_custom_call.1} parent=1 // pred_check_branch
      %233 = sbr.rel (0) target = $region129
    $region128: #{tpu_custom_call.1} parent=1 // pred_region
      %234 = dma.done [#allocation12], 1536
    $region129: #{tpu_custom_call.1} parent=1 // pred_fallthru
      _
    // Predicated region
    $region130: #{tpu_custom_call.1} parent=1 // pred_check
      _
    $region131: #{tpu_custom_call.1} parent=1 // pred_check_branch
      %236 = sbr.rel (0) target = $region133
    $region132: #{tpu_custom_call.1} parent=1 // pred_region
      %237 = dma.done [#allocation12], 3072
    $region133: #{tpu_custom_call.1} parent=1 // pred_fallthru
      _
    // Predicated region
    $region134: #{tpu_custom_call.1} parent=1 // pred_check
      _
    $region135: #{tpu_custom_call.1} parent=1 // pred_check_branch
      %239 = sbr.rel (0) target = $region137
    $region136: #{tpu_custom_call.1} parent=1 // pred_region
      %240 = dma.done [#allocation15], 1024
    $region137: #{tpu_custom_call.1} parent=1 // pred_fallthru
      _
    // Predicated region
    $region138: #{tpu_custom_call.1} parent=1 // pred_check
      _
    $region139: #{tpu_custom_call.1} parent=1 // pred_check_branch
      %242 = sbr.rel (0) target = $region141
    $region140: #{tpu_custom_call.1} parent=1 // pred_region
      %243 = dma.done [#allocation15], 2048
    $region141: #{tpu_custom_call.1} parent=1 // pred_fallthru
      _
    // Predicated region
    $region142: #{tpu_custom_call.1} parent=1 // pred_check
      _
    $region143: #{tpu_custom_call.1} parent=1 // pred_check_branch
      %245 = sbr.rel (0) target = $region145
    $region144: #{tpu_custom_call.1} parent=1 // pred_region
      %246 = dma.done [#allocation18], 2048
    $region145: #{tpu_custom_call.1} parent=1 // pred_fallthru
      _
    // Predicated region
    $region146: #{tpu_custom_call.1} parent=1 // pred_check
      _
    $region147: #{tpu_custom_call.1} parent=1 // pred_check_branch
      %248 = sbr.rel (0) target = $region149
    $region148: #{tpu_custom_call.1} parent=1 // pred_region
      %249 = dma.done [#allocation18], 2048
    $region149: #{tpu_custom_call.1} parent=1 // pred_fallthru
      _
    // Predicated region
    $region150: #{tpu_custom_call.1} parent=1 // pred_check
      _
    $region151: #{tpu_custom_call.1} parent=1 // pred_check_branch
      %251 = sbr.rel (0) target = $region153
    $region152: #{tpu_custom_call.1} parent=1 // pred_region
      %252 = dma.done [#allocation21], 2048
    $region153: #{tpu_custom_call.1} parent=1 // pred_fallthru
      _
    // Predicated region
    $region154: #{tpu_custom_call.1} parent=1 // pred_check
      _
    $region155: #{tpu_custom_call.1} parent=1 // pred_check_branch
      %254 = sbr.rel (0) target = $region157
    $region156: #{tpu_custom_call.1} parent=1 // pred_region
      %255 = dma.done [#allocation21], 2048
    $region157: #{tpu_custom_call.1} parent=1 // pred_fallthru
      _
    %v257 = vlaneseq
    %v258 = vand.u32 %v257, 127
    %vm259 = vcmp.lt.s32.totalorder %v258, 32
    %v260 = vsel %vm259, 1, 0
    %v261 = vcvt.s32.f32 %v260
    %v262 = vld [vmem:[#allocation2] sm:$0xff]
    %v263 = vld [vmem:[#allocation2 + $0x8] sm:$0xff]
    %v264 = vld [vmem:[#allocation2 + $0x10] sm:$0xff]
    %v265 = vld [vmem:[#allocation2 + $0x18] sm:$0xff]
    %v266 = vld [vmem:[#allocation2 + $0x20] sm:$0xff]
    %v267 = vld [vmem:[#allocation2 + $0x28] sm:$0xff]
    %v268 = vld [vmem:[#allocation2 + $0x30] sm:$0xff]
    %v269 = vld [vmem:[#allocation2 + $0x38] sm:$0xff]
    %v270 = vld [vmem:[#allocation2 + $0x40] sm:$0xff]
    %v271 = vld [vmem:[#allocation2 + $0x48] sm:$0xff]
    %v272 = vld [vmem:[#allocation2 + $0x50] sm:$0xff]
    %v273 = vld [vmem:[#allocation2 + $0x58] sm:$0xff]
    %v274 = vld [vmem:[#allocation2 + $0x60] sm:$0xff]
    %v275 = vld [vmem:[#allocation2 + $0x68] sm:$0xff]
    %v276 = vld [vmem:[#allocation2 + $0x70] sm:$0xff]
    %v277 = vld [vmem:[#allocation2 + $0x78] sm:$0xff]
    %v278 = vpack.c.bf16 %v263, %v262
    %v279 = vpack.c.bf16 %v265, %v264
    %v280 = vpack.c.bf16 %v267, %v266
    %v281 = vpack.c.bf16 %v269, %v268
    %v282 = vpack.c.bf16 %v271, %v270
    %v283 = vpack.c.bf16 %v273, %v272
    %v284 = vpack.c.bf16 %v275, %v274
    %v285 = vpack.c.bf16 %v277, %v276
    %v286 = vld [vmem:[#allocation5] sm:$0xf]
    %v287 = vld [vmem:[#allocation5 + $0x4] sm:$0xf]
    %v288 = vld [vmem:[#allocation5 + $0x8] sm:$0xf]
    %v289 = vld [vmem:[#allocation5 + $0xc] sm:$0xf]
    %v290 = vld [vmem:[#allocation5 + $0x10] sm:$0xf]
    %v291 = vld [vmem:[#allocation5 + $0x14] sm:$0xf]
    %v292 = vld [vmem:[#allocation5 + $0x18] sm:$0xf]
    %v293 = vld [vmem:[#allocation5 + $0x1c] sm:$0xf]
    %v294 = vld [vmem:[#allocation5 + $0x20] sm:$0xf]
    %v295 = vld [vmem:[#allocation5 + $0x24] sm:$0xf]
    %v296 = vld [vmem:[#allocation5 + $0x28] sm:$0xf]
    %v297 = vld [vmem:[#allocation5 + $0x2c] sm:$0xf]
    %v298 = vld [vmem:[#allocation5 + $0x30] sm:$0xf]
    %v299 = vld [vmem:[#allocation5 + $0x34] sm:$0xf]
    %v300 = vld [vmem:[#allocation5 + $0x38] sm:$0xf]
    %v301 = vld [vmem:[#allocation5 + $0x3c] sm:$0xf]
    %v302 = vld [vmem:[#allocation7] sm:$0x1]
    %v304 = vlaneseq
    %v305 = vshrl.u32 %v304, 7
    %v306 = vsub.s32 0, %v305
    %v307 = vrot.slane %v302, %v306
    %v325 = vunpack.c.l.b16 %v286
    %v326 = vunpack.c.l.b16 %v287
    %v327 = vunpack.c.l.b16 %v288
    %v328 = vunpack.c.l.b16 %v289
    %v329 = vunpack.c.l.b16 %v290
    %v330 = vunpack.c.l.b16 %v291
    %v331 = vunpack.c.l.b16 %v292
    %v332 = vunpack.c.l.b16 %v293
    %v333 = vunpack.c.l.b16 %v294
    %v334 = vunpack.c.l.b16 %v295
    %v335 = vunpack.c.l.b16 %v296
    %v336 = vunpack.c.l.b16 %v297
    %v337 = vunpack.c.l.b16 %v298
    %v338 = vunpack.c.l.b16 %v299
    %v339 = vunpack.c.l.b16 %v300
    %v340 = vunpack.c.l.b16 %v301
    %v341 = vpack.c.b16 %v326, %v325
    %v342 = vpack.c.b16 %v328, %v327
    %v343 = vpack.c.b16 %v330, %v329
    %v344 = vpack.c.b16 %v332, %v331
    %v345 = vpack.c.b16 %v334, %v333
    %v346 = vpack.c.b16 %v336, %v335
    %v347 = vpack.c.b16 %v338, %v337
    %v348 = vpack.c.b16 %v340, %v339
    %357 = vmatprep.subr.bf16.mxu0 0
    %358 = vmatpush1.bf16.msra.mxu0 %v341
    %359 = vmatprep.subr.bf16.mxu0 0
    %360 = vmatpush1.bf16.msra.mxu0 %v342
    %361 = vmatprep.subr.bf16.mxu0 0
    %362 = vmatpush1.bf16.msra.mxu0 %v343
    %363 = vmatprep.subr.bf16.mxu0 0
    %364 = vmatpush1.bf16.msra.mxu0 %v344
    %365 = vmatprep.subr.bf16.mxu0 0
    %366 = vmatpush1.bf16.msra.mxu0 %v345
    %367 = vmatprep.subr.bf16.mxu0 0
    %368 = vmatpush1.bf16.msra.mxu0 %v346
    %369 = vmatprep.subr.bf16.mxu0 0
    %370 = vmatpush1.bf16.msra.mxu0 %v347
    %371 = vmatprep.subr.bf16.mxu0 0
    %372 = vmatpush1.bf16.msra.mxu0 %v348
    %373 = vmatprep.subr.bf16.mxu0 0
    %374 = vmatpush1.bf16.msra.mxu0 0
    %375 = vmatprep.subr.bf16.mxu0 0
    %376 = vmatpush1.bf16.msra.mxu0 0
    %377 = vmatprep.subr.bf16.mxu0 0
    %378 = vmatpush1.bf16.msra.mxu0 0
    %379 = vmatprep.subr.bf16.mxu0 0
    %380 = vmatpush1.bf16.msra.mxu0 0
    %381 = vmatprep.subr.bf16.mxu0 0
    %382 = vmatpush1.bf16.msra.mxu0 0
    %383 = vmatprep.subr.bf16.mxu0 0
    %384 = vmatpush1.bf16.msra.mxu0 0
    %385 = vmatprep.subr.bf16.mxu0 0
    %386 = vmatpush1.bf16.msra.mxu0 0
    %387 = vmatprep.subr.bf16.mxu0 0
    %388 = vmatpush1.bf16.msra.mxu0 0
    %389 = vmatprep.mubr.bf16.mxu0 0
    %390 = vmatmul.mubr.bf16.gmra.mrb[0].mxu0 %v278
    %v391 = vpop.f32.mrb[0].mxu0
    %v392 = vadd.f32 %v307, %v391
    %v393 = vpop.f32.mrb[0].mxu0
    %v394 = vpop.f32.mrb[0].mxu0
    %v395 = vadd.f32 %v307, %v394
    %v396 = vpop.f32.mrb[0].mxu0
    %397 = vmatprep.mubr.bf16.mxu0 0
    %398 = vmatmul.mubr.bf16.gmra.mrb[0].mxu0 %v279
    %v399 = vpop.f32.mrb[0].mxu0
    %v400 = vadd.f32 %v307, %v399
    %v401 = vpop.f32.mrb[0].mxu0
    %v402 = vpop.f32.mrb[0].mxu0
    %v403 = vadd.f32 %v307, %v402
    %v404 = vpop.f32.mrb[0].mxu0
    %405 = vmatprep.mubr.bf16.mxu0 0
    %406 = vmatmul.mubr.bf16.gmra.mrb[0].mxu0 %v280
    %v407 = vpop.f32.mrb[0].mxu0
    %v408 = vadd.f32 %v307, %v407
    %v409 = vpop.f32.mrb[0].mxu0
    %v410 = vpop.f32.mrb[0].mxu0
    %v411 = vadd.f32 %v307, %v410
    %v412 = vpop.f32.mrb[0].mxu0
    %413 = vmatprep.mubr.bf16.mxu0 0
    %414 = vmatmul.mubr.bf16.gmra.mrb[0].mxu0 %v281
    %v415 = vpop.f32.mrb[0].mxu0
    %v416 = vadd.f32 %v307, %v415
    %v417 = vpop.f32.mrb[0].mxu0
    %v418 = vpop.f32.mrb[0].mxu0
    %v419 = vadd.f32 %v307, %v418
    %v420 = vpop.f32.mrb[0].mxu0
    %421 = vmatprep.mubr.bf16.mxu0 0
    %422 = vmatmul.mubr.bf16.gmra.mrb[0].mxu0 %v282
    %v423 = vpop.f32.mrb[0].mxu0
    %v424 = vadd.f32 %v307, %v423
    %v425 = vpop.f32.mrb[0].mxu0
    %v426 = vpop.f32.mrb[0].mxu0
    %v427 = vadd.f32 %v307, %v426
    %v428 = vpop.f32.mrb[0].mxu0
    %429 = vmatprep.mubr.bf16.mxu0 0
    %430 = vmatmul.mubr.bf16.gmra.mrb[0].mxu0 %v283
    %v431 = vpop.f32.mrb[0].mxu0
    %v432 = vadd.f32 %v307, %v431
    %v433 = vpop.f32.mrb[0].mxu0
    %v434 = vpop.f32.mrb[0].mxu0
    %v435 = vadd.f32 %v307, %v434
    %v436 = vpop.f32.mrb[0].mxu0
    %437 = vmatprep.mubr.bf16.mxu0 0
    %438 = vmatmul.mubr.bf16.gmra.mrb[0].mxu0 %v284
    %v439 = vpop.f32.mrb[0].mxu0
    %v440 = vadd.f32 %v307, %v439
    %v441 = vpop.f32.mrb[0].mxu0
    %v442 = vpop.f32.mrb[0].mxu0
    %v443 = vadd.f32 %v307, %v442
    %v444 = vpop.f32.mrb[0].mxu0
    %445 = vmatprep.mubr.bf16.mxu0 0
    %446 = vmatmul.mubr.bf16.gmra.mrb[0].mxu0 %v285
    %v447 = vpop.f32.mrb[0].mxu0
    %v448 = vadd.f32 %v307, %v447
    %v449 = vpop.f32.mrb[0].mxu0
    %v450 = vpop.f32.mrb[0].mxu0
    %v451 = vadd.f32 %v307, %v450
    %v452 = vpop.f32.mrb[0].mxu0
    %453 = vdwg.mxu0
    %v454 = vand.u32 2147483647, %v392
    %v455 = vand.u32 2147483647, %v395
    %v456 = vand.u32 2147483647, %v400
    %v457 = vand.u32 2147483647, %v403
    %v458 = vand.u32 2147483647, %v408
    %v459 = vand.u32 2147483647, %v411
    %v460 = vand.u32 2147483647, %v416
    %v461 = vand.u32 2147483647, %v419
    %v462 = vand.u32 2147483647, %v424
    %v463 = vand.u32 2147483647, %v427
    %v464 = vand.u32 2147483647, %v432
    %v465 = vand.u32 2147483647, %v435
    %v466 = vand.u32 2147483647, %v440
    %v467 = vand.u32 2147483647, %v443
    %v468 = vand.u32 2147483647, %v448
    %v469 = vand.u32 2147483647, %v451
    %v470 = vadd.f32 %v454, 1e-05
    %v471 = vadd.f32 %v455, 1e-05
    %v472 = vadd.f32 %v456, 1e-05
    %v473 = vadd.f32 %v457, 1e-05
    %v474 = vadd.f32 %v458, 1e-05
    %v475 = vadd.f32 %v459, 1e-05
    %v476 = vadd.f32 %v460, 1e-05
    %v477 = vadd.f32 %v461, 1e-05
    %v478 = vadd.f32 %v462, 1e-05
    %v479 = vadd.f32 %v463, 1e-05
    %v480 = vadd.f32 %v464, 1e-05
    %v481 = vadd.f32 %v465, 1e-05
    %v482 = vadd.f32 %v466, 1e-05
    %v483 = vadd.f32 %v467, 1e-05
    %v484 = vadd.f32 %v468, 1e-05
    %v485 = vadd.f32 %v469, 1e-05
    %v486 = vlog2.pop %v470
    %v487 = vmul.f32 %v486, 0.6931472
    %v488 = vlog2.pop %v471
    %v489 = vmul.f32 %v488, 0.6931472
    %v490 = vlog2.pop %v472
    %v491 = vmul.f32 %v490, 0.6931472
    %v492 = vlog2.pop %v473
    %v493 = vmul.f32 %v492, 0.6931472
    %v494 = vlog2.pop %v474
    %v495 = vmul.f32 %v494, 0.6931472
    %v496 = vlog2.pop %v475
    %v497 = vmul.f32 %v496, 0.6931472
    %v498 = vlog2.pop %v476
    %v499 = vmul.f32 %v498, 0.6931472
    %v500 = vlog2.pop %v477
    %v501 = vmul.f32 %v500, 0.6931472
    %v502 = vlog2.pop %v478
    %v503 = vmul.f32 %v502, 0.6931472
    %v504 = vlog2.pop %v479
    %v505 = vmul.f32 %v504, 0.6931472
    %v506 = vlog2.pop %v480
    %v507 = vmul.f32 %v506, 0.6931472
    %v508 = vlog2.pop %v481
    %v509 = vmul.f32 %v508, 0.6931472
    %v510 = vlog2.pop %v482
    %v511 = vmul.f32 %v510, 0.6931472
    %v512 = vlog2.pop %v483
    %v513 = vmul.f32 %v512, 0.6931472
    %v514 = vlog2.pop %v484
    %v515 = vmul.f32 %v514, 0.6931472
    %v516 = vlog2.pop %v485
    %v517 = vmul.f32 %v516, 0.6931472
    %v518 = vlaneseq
    %v519 = vshrl.u32 %v518, 7
    %v520 = vadd.s32 %v519, 8
    %v521 = vadd.s32 %v519, 16
    %v522 = vadd.s32 %v519, 24
    %v523 = vadd.s32 %v519, 32
    %v524 = vadd.s32 %v519, 40
    %v525 = vadd.s32 %v519, 48
    %v526 = vadd.s32 %v519, 56
    %v527 = vadd.s32 %v519, 64
    %v528 = vadd.s32 %v519, 72
    %v529 = vadd.s32 %v519, 80
    %v530 = vadd.s32 %v519, 88
    %v531 = vadd.s32 %v519, 96
    %v532 = vadd.s32 %v519, 104
    %v533 = vadd.s32 %v519, 112
    %v534 = vadd.s32 %v519, 120
    %vm535 = vcmp.eq.s32.totalorder %v519, 0
    %vm536 = vcmp.eq.s32.totalorder %v520, 0
    %vm537 = vcmp.eq.s32.totalorder %v521, 0
    %vm538 = vcmp.eq.s32.totalorder %v522, 0
    %vm539 = vcmp.eq.s32.totalorder %v523, 0
    %vm540 = vcmp.eq.s32.totalorder %v524, 0
    %vm541 = vcmp.eq.s32.totalorder %v525, 0
    %vm542 = vcmp.eq.s32.totalorder %v526, 0
    %vm543 = vcmp.eq.s32.totalorder %v527, 0
    %vm544 = vcmp.eq.s32.totalorder %v528, 0
    %vm545 = vcmp.eq.s32.totalorder %v529, 0
    %vm546 = vcmp.eq.s32.totalorder %v530, 0
    %vm547 = vcmp.eq.s32.totalorder %v531, 0
    %vm548 = vcmp.eq.s32.totalorder %v532, 0
    %vm549 = vcmp.eq.s32.totalorder %v533, 0
    %vm550 = vcmp.eq.s32.totalorder %v534, 0
    %vm551 = vcmp.eq.s32.totalorder %v519, 63
    %vm552 = vcmp.eq.s32.totalorder %v520, 63
    %vm553 = vcmp.eq.s32.totalorder %v521, 63
    %vm554 = vcmp.eq.s32.totalorder %v522, 63
    %vm555 = vcmp.eq.s32.totalorder %v523, 63
    %vm556 = vcmp.eq.s32.totalorder %v524, 63
    %vm557 = vcmp.eq.s32.totalorder %v525, 63
    %vm558 = vcmp.eq.s32.totalorder %v526, 63
    %vm559 = vcmp.eq.s32.totalorder %v527, 63
    %vm560 = vcmp.eq.s32.totalorder %v528, 63
    %vm561 = vcmp.eq.s32.totalorder %v529, 63
    %vm562 = vcmp.eq.s32.totalorder %v530, 63
    %vm563 = vcmp.eq.s32.totalorder %v531, 63
    %vm564 = vcmp.eq.s32.totalorder %v532, 63
    %vm565 = vcmp.eq.s32.totalorder %v533, 63
    %vm566 = vcmp.eq.s32.totalorder %v534, 63
    %vm567 = vcmp.eq.s32.totalorder %v519, 64
    %vm568 = vcmp.eq.s32.totalorder %v520, 64
    %vm569 = vcmp.eq.s32.totalorder %v521, 64
    %vm570 = vcmp.eq.s32.totalorder %v522, 64
    %vm571 = vcmp.eq.s32.totalorder %v523, 64
    %vm572 = vcmp.eq.s32.totalorder %v524, 64
    %vm573 = vcmp.eq.s32.totalorder %v525, 64
    %vm574 = vcmp.eq.s32.totalorder %v526, 64
    %vm575 = vcmp.eq.s32.totalorder %v527, 64
    %vm576 = vcmp.eq.s32.totalorder %v528, 64
    %vm577 = vcmp.eq.s32.totalorder %v529, 64
    %vm578 = vcmp.eq.s32.totalorder %v530, 64
    %vm579 = vcmp.eq.s32.totalorder %v531, 64
    %vm580 = vcmp.eq.s32.totalorder %v532, 64
    %vm581 = vcmp.eq.s32.totalorder %v533, 64
    %vm582 = vcmp.eq.s32.totalorder %v534, 64
    %vm583 = vmor %vm535, %vm567
    %vm584 = vmor %vm536, %vm568
    %vm585 = vmor %vm537, %vm569
    %vm586 = vmor %vm538, %vm570
    %vm587 = vmor %vm539, %vm571
    %vm588 = vmor %vm540, %vm572
    %vm589 = vmor %vm541, %vm573
    %vm590 = vmor %vm542, %vm574
    %vm591 = vmor %vm543, %vm575
    %vm592 = vmor %vm544, %vm576
    %vm593 = vmor %vm545, %vm577
    %vm594 = vmor %vm546, %vm578
    %vm595 = vmor %vm547, %vm579
    %vm596 = vmor %vm548, %vm580
    %vm597 = vmor %vm549, %vm581
    %vm598 = vmor %vm550, %vm582
    %vm599 = vcmp.eq.s32.totalorder %v519, 127
    %vm600 = vcmp.eq.s32.totalorder %v520, 127
    %vm601 = vcmp.eq.s32.totalorder %v521, 127
    %vm602 = vcmp.eq.s32.totalorder %v522, 127
    %vm603 = vcmp.eq.s32.totalorder %v523, 127
    %vm604 = vcmp.eq.s32.totalorder %v524, 127
    %vm605 = vcmp.eq.s32.totalorder %v525, 127
    %vm606 = vcmp.eq.s32.totalorder %v526, 127
    %vm607 = vcmp.eq.s32.totalorder %v527, 127
    %vm608 = vcmp.eq.s32.totalorder %v528, 127
    %vm609 = vcmp.eq.s32.totalorder %v529, 127
    %vm610 = vcmp.eq.s32.totalorder %v530, 127
    %vm611 = vcmp.eq.s32.totalorder %v531, 127
    %vm612 = vcmp.eq.s32.totalorder %v532, 127
    %vm613 = vcmp.eq.s32.totalorder %v533, 127
    %vm614 = vcmp.eq.s32.totalorder %v534, 127
    %vm615 = vmor %vm551, %vm599
    %vm616 = vmor %vm552, %vm600
    %vm617 = vmor %vm553, %vm601
    %vm618 = vmor %vm554, %vm602
    %vm619 = vmor %vm555, %vm603
    %vm620 = vmor %vm556, %vm604
    %vm621 = vmor %vm557, %vm605
    %vm622 = vmor %vm558, %vm606
    %vm623 = vmor %vm559, %vm607
    %vm624 = vmor %vm560, %vm608
    %vm625 = vmor %vm561, %vm609
    %vm626 = vmor %vm562, %vm610
    %vm627 = vmor %vm563, %vm611
    %vm628 = vmor %vm564, %vm612
    %vm629 = vmor %vm565, %vm613
    %vm630 = vmor %vm566, %vm614
    %vm631 = vmxor %vm583, 1
    %vm632 = vmxor %vm584, 1
    %vm633 = vmxor %vm585, 1
    %vm634 = vmxor %vm586, 1
    %vm635 = vmxor %vm587, 1
    %vm636 = vmxor %vm588, 1
    %vm637 = vmxor %vm589, 1
    %vm638 = vmxor %vm590, 1
    %vm639 = vmxor %vm591, 1
    %vm640 = vmxor %vm592, 1
    %vm641 = vmxor %vm593, 1
    %vm642 = vmxor %vm594, 1
    %vm643 = vmxor %vm595, 1
    %vm644 = vmxor %vm596, 1
    %vm645 = vmxor %vm597, 1
    %vm646 = vmxor %vm598, 1
    %v647 = vsel %vm631, 1, 0
    %v648 = vsel %vm632, 1, 0
    %v649 = vsel %vm633, 1, 0
    %v650 = vsel %vm634, 1, 0
    %v651 = vsel %vm635, 1, 0
    %v652 = vsel %vm636, 1, 0
    %v653 = vsel %vm637, 1, 0
    %v654 = vsel %vm638, 1, 0
    %v655 = vsel %vm639, 1, 0
    %v656 = vsel %vm640, 1, 0
    %v657 = vsel %vm641, 1, 0
    %v658 = vsel %vm642, 1, 0
    %v659 = vsel %vm643, 1, 0
    %v660 = vsel %vm644, 1, 0
    %v661 = vsel %vm645, 1, 0
    %v662 = vsel %vm646, 1, 0
    %v663 = vcvt.s32.f32 %v647
    %v664 = vcvt.s32.f32 %v648
    %v665 = vcvt.s32.f32 %v649
    %v666 = vcvt.s32.f32 %v650
    %v667 = vcvt.s32.f32 %v651
    %v668 = vcvt.s32.f32 %v652
    %v669 = vcvt.s32.f32 %v653
    %v670 = vcvt.s32.f32 %v654
    %v671 = vcvt.s32.f32 %v655
    %v672 = vcvt.s32.f32 %v656
    %v673 = vcvt.s32.f32 %v657
    %v674 = vcvt.s32.f32 %v658
    %v675 = vcvt.s32.f32 %v659
    %v676 = vcvt.s32.f32 %v660
    %v677 = vcvt.s32.f32 %v661
    %v678 = vcvt.s32.f32 %v662
    %vm679 = vmxor %vm615, 1
    %vm680 = vmxor %vm616, 1
    %vm681 = vmxor %vm617, 1
    %vm682 = vmxor %vm618, 1
    %vm683 = vmxor %vm619, 1
    %vm684 = vmxor %vm620, 1
    %vm685 = vmxor %vm621, 1
    %vm686 = vmxor %vm622, 1
    %vm687 = vmxor %vm623, 1
    %vm688 = vmxor %vm624, 1
    %vm689 = vmxor %vm625, 1
    %vm690 = vmxor %vm626, 1
    %vm691 = vmxor %vm627, 1
    %vm692 = vmxor %vm628, 1
    %vm693 = vmxor %vm629, 1
    %vm694 = vmxor %vm630, 1
    %v695 = vsel %vm679, 1, 0
    %v696 = vsel %vm680, 1, 0
    %v697 = vsel %vm681, 1, 0
    %v698 = vsel %vm682, 1, 0
    %v699 = vsel %vm683, 1, 0
    %v700 = vsel %vm684, 1, 0
    %v701 = vsel %vm685, 1, 0
    %v702 = vsel %vm686, 1, 0
    %v703 = vsel %vm687, 1, 0
    %v704 = vsel %vm688, 1, 0
    %v705 = vsel %vm689, 1, 0
    %v706 = vsel %vm690, 1, 0
    %v707 = vsel %vm691, 1, 0
    %v708 = vsel %vm692, 1, 0
    %v709 = vsel %vm693, 1, 0
    %v710 = vsel %vm694, 1, 0
    %v711 = vcvt.s32.f32 %v695
    %v712 = vcvt.s32.f32 %v696
    %v713 = vcvt.s32.f32 %v697
    %v714 = vcvt.s32.f32 %v698
    %v715 = vcvt.s32.f32 %v699
    %v716 = vcvt.s32.f32 %v700
    %v717 = vcvt.s32.f32 %v701
    %v718 = vcvt.s32.f32 %v702
    %v719 = vcvt.s32.f32 %v703
    %v720 = vcvt.s32.f32 %v704
    %v721 = vcvt.s32.f32 %v705
    %v722 = vcvt.s32.f32 %v706
    %v723 = vcvt.s32.f32 %v707
    %v724 = vcvt.s32.f32 %v708
    %v725 = vcvt.s32.f32 %v709
    %v726 = vcvt.s32.f32 %v710
    %v727 = vrot.slane %v487, 7
    %v728 = vrot.slane %v489, 7
    %v729 = vrot.slane %v491, 7
    %v730 = vrot.slane %v493, 7
    %v731 = vrot.slane %v495, 7
    %v732 = vrot.slane %v497, 7
    %v733 = vrot.slane %v499, 7
    %v734 = vrot.slane %v501, 7
    %v735 = vrot.slane %v503, 7
    %v736 = vrot.slane %v505, 7
    %v737 = vrot.slane %v507, 7
    %v738 = vrot.slane %v509, 7
    %v739 = vrot.slane %v511, 7
    %v740 = vrot.slane %v513, 7
    %v741 = vrot.slane %v515, 7
    %v742 = vrot.slane %v517, 7
    %vm743 = vcmp.lt.s32.totalorder %v519, 1
    %v744 = vsel %vm743, %v741, %v742
    %v745 = vsel %vm743, %v740, %v741
    %v746 = vsel %vm743, %v739, %v740
    %v747 = vsel %vm743, %v738, %v739
    %v748 = vsel %vm743, %v737, %v738
    %v749 = vsel %vm743, %v736, %v737
    %v750 = vsel %vm743, %v735, %v736
    %v751 = vsel %vm743, %v734, %v735
    %v752 = vsel %vm743, %v733, %v734
    %v753 = vsel %vm743, %v732, %v733
    %v754 = vsel %vm743, %v731, %v732
    %v755 = vsel %vm743, %v730, %v731
    %v756 = vsel %vm743, %v729, %v730
    %v757 = vsel %vm743, %v728, %v729
    %v758 = vsel %vm743, %v727, %v728
    %v759 = vsel %vm743, %v742, %v727
    %v760 = vmul.f32 %v759, %v663
    %v761 = vmul.f32 %v758, %v664
    %v762 = vmul.f32 %v757, %v665
    %v763 = vmul.f32 %v756, %v666
    %v764 = vmul.f32 %v755, %v667
    %v765 = vmul.f32 %v754, %v668
    %v766 = vmul.f32 %v753, %v669
    %v767 = vmul.f32 %v752, %v670
    %v768 = vmul.f32 %v751, %v671
    %v769 = vmul.f32 %v750, %v672
    %v770 = vmul.f32 %v749, %v673
    %v771 = vmul.f32 %v748, %v674
    %v772 = vmul.f32 %v747, %v675
    %v773 = vmul.f32 %v746, %v676
    %v774 = vmul.f32 %v745, %v677
    %v775 = vmul.f32 %v744, %v678
    %v776 = vpack.c.bf16 %v761, %v760
    %v777 = vpack.c.bf16 %v763, %v762
    %v778 = vpack.c.bf16 %v765, %v764
    %v779 = vpack.c.bf16 %v767, %v766
    %v780 = vpack.c.bf16 %v769, %v768
    %v781 = vpack.c.bf16 %v771, %v770
    %v782 = vpack.c.bf16 %v773, %v772
    %v783 = vpack.c.bf16 %v775, %v774
    %v784 = vpack.c.bf16 %v489, %v487
    %v785 = vpack.c.bf16 %v493, %v491
    %v786 = vpack.c.bf16 %v497, %v495
    %v787 = vpack.c.bf16 %v501, %v499
    %v788 = vpack.c.bf16 %v505, %v503
    %v789 = vpack.c.bf16 %v509, %v507
    %v790 = vpack.c.bf16 %v513, %v511
    %v791 = vpack.c.bf16 %v517, %v515
    %v792 = vrot.slane %v487, 1
    %v793 = vrot.slane %v489, 1
    %v794 = vrot.slane %v491, 1
    %v795 = vrot.slane %v493, 1
    %v796 = vrot.slane %v495, 1
    %v797 = vrot.slane %v497, 1
    %v798 = vrot.slane %v499, 1
    %v799 = vrot.slane %v501, 1
    %v800 = vrot.slane %v503, 1
    %v801 = vrot.slane %v505, 1
    %v802 = vrot.slane %v507, 1
    %v803 = vrot.slane %v509, 1
    %v804 = vrot.slane %v511, 1
    %v805 = vrot.slane %v513, 1
    %v806 = vrot.slane %v515, 1
    %v807 = vrot.slane %v517, 1
    %vm808 = vcmp.lt.s32.totalorder %v519, 7
    %v809 = vsel %vm808, %v806, %v807
    %v810 = vsel %vm808, %v805, %v806
    %v811 = vsel %vm808, %v804, %v805
    %v812 = vsel %vm808, %v803, %v804
    %v813 = vsel %vm808, %v802, %v803
    %v814 = vsel %vm808, %v801, %v802
    %v815 = vsel %vm808, %v800, %v801
    %v816 = vsel %vm808, %v799, %v800
    %v817 = vsel %vm808, %v798, %v799
    %v818 = vsel %vm808, %v797, %v798
    %v819 = vsel %vm808, %v796, %v797
    %v820 = vsel %vm808, %v795, %v796
    %v821 = vsel %vm808, %v794, %v795
    %v822 = vsel %vm808, %v793, %v794
    %v823 = vsel %vm808, %v792, %v793
    %v824 = vsel %vm808, %v807, %v792
    %v825 = vmul.f32 %v823, %v711
    %v826 = vmul.f32 %v822, %v712
    %v827 = vmul.f32 %v821, %v713
    %v828 = vmul.f32 %v820, %v714
    %v829 = vmul.f32 %v819, %v715
    %v830 = vmul.f32 %v818, %v716
    %v831 = vmul.f32 %v817, %v717
    %v832 = vmul.f32 %v816, %v718
    %v833 = vmul.f32 %v815, %v719
    %v834 = vmul.f32 %v814, %v720
    %v835 = vmul.f32 %v813, %v721
    %v836 = vmul.f32 %v812, %v722
    %v837 = vmul.f32 %v811, %v723
    %v838 = vmul.f32 %v810, %v724
    %v839 = vmul.f32 %v809, %v725
    %v840 = vmul.f32 %v824, %v726
    %v841 = vpack.c.bf16 %v826, %v825
    %v842 = vpack.c.bf16 %v828, %v827
    %v843 = vpack.c.bf16 %v830, %v829
    %v844 = vpack.c.bf16 %v832, %v831
    %v845 = vpack.c.bf16 %v834, %v833
    %v846 = vpack.c.bf16 %v836, %v835
    %v847 = vpack.c.bf16 %v838, %v837
    %v848 = vpack.c.bf16 %v840, %v839
    %v849 = vld [vmem:[#allocation8] sm:$0xf]
    %v850 = vld [vmem:[#allocation8 + $0x4] sm:$0xf]
    %v851 = vld [vmem:[#allocation8 + $0x8] sm:$0xf]
    %v852 = vld [vmem:[#allocation8 + $0xc] sm:$0xf]
    %v853 = vld [vmem:[#allocation8 + $0x10] sm:$0xf]
    %v854 = vld [vmem:[#allocation8 + $0x14] sm:$0xf]
    %v855 = vld [vmem:[#allocation8 + $0x18] sm:$0xf]
    %v856 = vld [vmem:[#allocation8 + $0x1c] sm:$0xf]
    %v857 = vld [vmem:[#allocation8 + $0x20] sm:$0xf]
    %v858 = vld [vmem:[#allocation8 + $0x24] sm:$0xf]
    %v859 = vld [vmem:[#allocation8 + $0x28] sm:$0xf]
    %v860 = vld [vmem:[#allocation8 + $0x2c] sm:$0xf]
    %v861 = vld [vmem:[#allocation8 + $0x30] sm:$0xf]
    %v862 = vld [vmem:[#allocation8 + $0x34] sm:$0xf]
    %v863 = vld [vmem:[#allocation8 + $0x38] sm:$0xf]
    %v864 = vld [vmem:[#allocation8 + $0x3c] sm:$0xf]
    %s865 = scalar_lea.vmem [#allocation8], 64
    %v866 = vld [vmem:[%s865] sm:$0xf]
    %v867 = vld [vmem:[%s865 + $0x4] sm:$0xf]
    %v868 = vld [vmem:[%s865 + $0x8] sm:$0xf]
    %v869 = vld [vmem:[%s865 + $0xc] sm:$0xf]
    %v870 = vld [vmem:[%s865 + $0x10] sm:$0xf]
    %v871 = vld [vmem:[%s865 + $0x14] sm:$0xf]
    %v872 = vld [vmem:[%s865 + $0x18] sm:$0xf]
    %v873 = vld [vmem:[%s865 + $0x1c] sm:$0xf]
    %v874 = vld [vmem:[%s865 + $0x20] sm:$0xf]
    %v875 = vld [vmem:[%s865 + $0x24] sm:$0xf]
    %v876 = vld [vmem:[%s865 + $0x28] sm:$0xf]
    %v877 = vld [vmem:[%s865 + $0x2c] sm:$0xf]
    %v878 = vld [vmem:[%s865 + $0x30] sm:$0xf]
    %v879 = vld [vmem:[%s865 + $0x34] sm:$0xf]
    %v880 = vld [vmem:[%s865 + $0x38] sm:$0xf]
    %v881 = vld [vmem:[%s865 + $0x3c] sm:$0xf]
    %v898 = vunpack.c.l.b16 %v866
    %v899 = vunpack.c.l.b16 %v867
    %v900 = vunpack.c.l.b16 %v868
    %v901 = vunpack.c.l.b16 %v869
    %v902 = vunpack.c.l.b16 %v870
    %v903 = vunpack.c.l.b16 %v871
    %v904 = vunpack.c.l.b16 %v872
    %v905 = vunpack.c.l.b16 %v873
    %v906 = vunpack.c.l.b16 %v874
    %v907 = vunpack.c.l.b16 %v875
    %v908 = vunpack.c.l.b16 %v876
    %v909 = vunpack.c.l.b16 %v877
    %v910 = vunpack.c.l.b16 %v878
    %v911 = vunpack.c.l.b16 %v879
    %v912 = vunpack.c.l.b16 %v880
    %v913 = vunpack.c.l.b16 %v881
    %v914 = vpack.c.b16 %v899, %v898
    %v915 = vpack.c.b16 %v901, %v900
    %v916 = vpack.c.b16 %v903, %v902
    %v917 = vpack.c.b16 %v905, %v904
    %v918 = vpack.c.b16 %v907, %v906
    %v919 = vpack.c.b16 %v909, %v908
    %v920 = vpack.c.b16 %v911, %v910
    %v921 = vpack.c.b16 %v913, %v912
    %930 = vmatprep.subr.bf16.mxu0 0
    %931 = vmatpush1.bf16.msra.mxu0 %v914
    %932 = vmatprep.subr.bf16.mxu0 0
    %933 = vmatpush1.bf16.msra.mxu0 %v915
    %934 = vmatprep.subr.bf16.mxu0 0
    %935 = vmatpush1.bf16.msra.mxu0 %v916
    %936 = vmatprep.subr.bf16.mxu0 0
    %937 = vmatpush1.bf16.msra.mxu0 %v917
    %938 = vmatprep.subr.bf16.mxu0 0
    %939 = vmatpush1.bf16.msra.mxu0 %v918
    %940 = vmatprep.subr.bf16.mxu0 0
    %941 = vmatpush1.bf16.msra.mxu0 %v919
    %942 = vmatprep.subr.bf16.mxu0 0
    %943 = vmatpush1.bf16.msra.mxu0 %v920
    %944 = vmatprep.subr.bf16.mxu0 0
    %945 = vmatpush1.bf16.msra.mxu0 %v921
    %946 = vmatprep.subr.bf16.mxu0 0
    %947 = vmatpush1.bf16.msra.mxu0 0
    %948 = vmatprep.subr.bf16.mxu0 0
    %949 = vmatpush1.bf16.msra.mxu0 0
    %950 = vmatprep.subr.bf16.mxu0 0
    %951 = vmatpush1.bf16.msra.mxu0 0
    %952 = vmatprep.subr.bf16.mxu0 0
    %953 = vmatpush1.bf16.msra.mxu0 0
    %954 = vmatprep.subr.bf16.mxu0 0
    %955 = vmatpush1.bf16.msra.mxu0 0
    %956 = vmatprep.subr.bf16.mxu0 0
    %957 = vmatpush1.bf16.msra.mxu0 0
    %958 = vmatprep.subr.bf16.mxu0 0
    %959 = vmatpush1.bf16.msra.mxu0 0
    %960 = vmatprep.subr.bf16.mxu0 0
    %961 = vmatpush1.bf16.msra.mxu0 0
    %962 = vmatprep.mubr.bf16.mxu0 0
    %963 = vmatmul.mubr.bf16.gmra.mrb[0].mxu0 %v784
    %v964 = vpop.f32.mrb[0].mxu0
    %v965 = vadd.f32 0.0, %v964
    %v966 = vpop.f32.mrb[0].mxu0
    %v967 = vpop.f32.mrb[0].mxu0
    %v968 = vadd.f32 0.0, %v967
    %v969 = vpop.f32.mrb[0].mxu0
    %970 = vmatprep.mubr.bf16.mxu0 0
    %971 = vmatmul.mubr.bf16.gmra.mrb[0].mxu0 %v785
    %v972 = vpop.f32.mrb[0].mxu0
    %v973 = vadd.f32 0.0, %v972
    %v974 = vpop.f32.mrb[0].mxu0
    %v975 = vpop.f32.mrb[0].mxu0
    %v976 = vadd.f32 0.0, %v975
    %v977 = vpop.f32.mrb[0].mxu0
    %978 = vmatprep.mubr.bf16.mxu0 0
    %979 = vmatmul.mubr.bf16.gmra.mrb[0].mxu0 %v786
    %v980 = vpop.f32.mrb[0].mxu0
    %v981 = vadd.f32 0.0, %v980
    %v982 = vpop.f32.mrb[0].mxu0
    %v983 = vpop.f32.mrb[0].mxu0
    %v984 = vadd.f32 0.0, %v983
    %v985 = vpop.f32.mrb[0].mxu0
    %986 = vmatprep.mubr.bf16.mxu0 0
    %987 = vmatmul.mubr.bf16.gmra.mrb[0].mxu0 %v787
    %v988 = vpop.f32.mrb[0].mxu0
    %v989 = vadd.f32 0.0, %v988
    %v990 = vpop.f32.mrb[0].mxu0
    %v991 = vpop.f32.mrb[0].mxu0
    %v992 = vadd.f32 0.0, %v991
    %v993 = vpop.f32.mrb[0].mxu0
    %994 = vmatprep.mubr.bf16.mxu0 0
    %995 = vmatmul.mubr.bf16.gmra.mrb[0].mxu0 %v788
    %v996 = vpop.f32.mrb[0].mxu0
    %v997 = vadd.f32 0.0, %v996
    %v998 = vpop.f32.mrb[0].mxu0
    %v999 = vpop.f32.mrb[0].mxu0
    %v1000 = vadd.f32 0.0, %v999
    %v1001 = vpop.f32.mrb[0].mxu0
    %1002 = vmatprep.mubr.bf16.mxu0 0
    %1003 = vmatmul.mubr.bf16.gmra.mrb[0].mxu0 %v789
    %v1004 = vpop.f32.mrb[0].mxu0
    %v1005 = vadd.f32 0.0, %v1004
    %v1006 = vpop.f32.mrb[0].mxu0
    %v1007 = vpop.f32.mrb[0].mxu0
    %v1008 = vadd.f32 0.0, %v1007
    %v1009 = vpop.f32.mrb[0].mxu0
    %1010 = vmatprep.mubr.bf16.mxu0 0
    %1011 = vmatmul.mubr.bf16.gmra.mrb[0].mxu0 %v790
    %v1012 = vpop.f32.mrb[0].mxu0
    %v1013 = vadd.f32 0.0, %v1012
    %v1014 = vpop.f32.mrb[0].mxu0
    %v1015 = vpop.f32.mrb[0].mxu0
    %v1016 = vadd.f32 0.0, %v1015
    %v1017 = vpop.f32.mrb[0].mxu0
    %1018 = vmatprep.mubr.bf16.mxu0 0
    %1019 = vmatmul.mubr.bf16.gmra.mrb[0].mxu0 %v791
    %v1020 = vpop.f32.mrb[0].mxu0
    %v1021 = vadd.f32 0.0, %v1020
    %v1022 = vpop.f32.mrb[0].mxu0
    %v1023 = vpop.f32.mrb[0].mxu0
    %v1024 = vadd.f32 0.0, %v1023
    %v1025 = vpop.f32.mrb[0].mxu0
    %1026 = vdwg.mxu0
    %v1043 = vunpack.c.l.b16 %v849
    %v1044 = vunpack.c.l.b16 %v850
    %v1045 = vunpack.c.l.b16 %v851
    %v1046 = vunpack.c.l.b16 %v852
    %v1047 = vunpack.c.l.b16 %v853
    %v1048 = vunpack.c.l.b16 %v854
    %v1049 = vunpack.c.l.b16 %v855
    %v1050 = vunpack.c.l.b16 %v856
    %v1051 = vunpack.c.l.b16 %v857
    %v1052 = vunpack.c.l.b16 %v858
    %v1053 = vunpack.c.l.b16 %v859
    %v1054 = vunpack.c.l.b16 %v860
    %v1055 = vunpack.c.l.b16 %v861
    %v1056 = vunpack.c.l.b16 %v862
    %v1057 = vunpack.c.l.b16 %v863
    %v1058 = vunpack.c.l.b16 %v864
    %v1059 = vpack.c.b16 %v1044, %v1043
    %v1060 = vpack.c.b16 %v1046, %v1045
    %v1061 = vpack.c.b16 %v1048, %v1047
    %v1062 = vpack.c.b16 %v1050, %v1049
    %v1063 = vpack.c.b16 %v1052, %v1051
    %v1064 = vpack.c.b16 %v1054, %v1053
    %v1065 = vpack.c.b16 %v1056, %v1055
    %v1066 = vpack.c.b16 %v1058, %v1057
    %1075 = vmatprep.subr.bf16.mxu0 0
    %1076 = vmatpush1.bf16.msra.mxu0 %v1059
    %1077 = vmatprep.subr.bf16.mxu0 0
    %1078 = vmatpush1.bf16.msra.mxu0 %v1060
    %1079 = vmatprep.subr.bf16.mxu0 0
    %1080 = vmatpush1.bf16.msra.mxu0 %v1061
    %1081 = vmatprep.subr.bf16.mxu0 0
    %1082 = vmatpush1.bf16.msra.mxu0 %v1062
    %1083 = vmatprep.subr.bf16.mxu0 0
    %1084 = vmatpush1.bf16.msra.mxu0 %v1063
    %1085 = vmatprep.subr.bf16.mxu0 0
    %1086 = vmatpush1.bf16.msra.mxu0 %v1064
    %1087 = vmatprep.subr.bf16.mxu0 0
    %1088 = vmatpush1.bf16.msra.mxu0 %v1065
    %1089 = vmatprep.subr.bf16.mxu0 0
    %1090 = vmatpush1.bf16.msra.mxu0 %v1066
    %1091 = vmatprep.subr.bf16.mxu0 0
    %1092 = vmatpush1.bf16.msra.mxu0 0
    %1093 = vmatprep.subr.bf16.mxu0 0
    %1094 = vmatpush1.bf16.msra.mxu0 0
    %1095 = vmatprep.subr.bf16.mxu0 0
    %1096 = vmatpush1.bf16.msra.mxu0 0
    %1097 = vmatprep.subr.bf16.mxu0 0
    %1098 = vmatpush1.bf16.msra.mxu0 0
    %1099 = vmatprep.subr.bf16.mxu0 0
    %1100 = vmatpush1.bf16.msra.mxu0 0
    %1101 = vmatprep.subr.bf16.mxu0 0
    %1102 = vmatpush1.bf16.msra.mxu0 0
    %1103 = vmatprep.subr.bf16.mxu0 0
    %1104 = vmatpush1.bf16.msra.mxu0 0
    %1105 = vmatprep.subr.bf16.mxu0 0
    %1106 = vmatpush1.bf16.msra.mxu0 0
    %1107 = vmatprep.mubr.bf16.mxu0 0
    %1108 = vmatmul.mubr.bf16.gmra.mrb[0].mxu0 %v776
    %v1109 = vpop.f32.mrb[0].mxu0
    %v1110 = vadd.f32 %v965, %v1109
    %v1111 = vpop.f32.mrb[0].mxu0
    %v1112 = vpop.f32.mrb[0].mxu0
    %v1113 = vadd.f32 %v968, %v1112
    %v1114 = vpop.f32.mrb[0].mxu0
    %1115 = vmatprep.mubr.bf16.mxu0 0
    %1116 = vmatmul.mubr.bf16.gmra.mrb[0].mxu0 %v777
    %v1117 = vpop.f32.mrb[0].mxu0
    %v1118 = vadd.f32 %v973, %v1117
    %v1119 = vpop.f32.mrb[0].mxu0
    %v1120 = vpop.f32.mrb[0].mxu0
    %v1121 = vadd.f32 %v976, %v1120
    %v1122 = vpop.f32.mrb[0].mxu0
    %1123 = vmatprep.mubr.bf16.mxu0 0
    %1124 = vmatmul.mubr.bf16.gmra.mrb[0].mxu0 %v778
    %v1125 = vpop.f32.mrb[0].mxu0
    %v1126 = vadd.f32 %v981, %v1125
    %v1127 = vpop.f32.mrb[0].mxu0
    %v1128 = vpop.f32.mrb[0].mxu0
    %v1129 = vadd.f32 %v984, %v1128
    %v1130 = vpop.f32.mrb[0].mxu0
    %1131 = vmatprep.mubr.bf16.mxu0 0
    %1132 = vmatmul.mubr.bf16.gmra.mrb[0].mxu0 %v779
    %v1133 = vpop.f32.mrb[0].mxu0
    %v1134 = vadd.f32 %v989, %v1133
    %v1135 = vpop.f32.mrb[0].mxu0
    %v1136 = vpop.f32.mrb[0].mxu0
    %v1137 = vadd.f32 %v992, %v1136
    %v1138 = vpop.f32.mrb[0].mxu0
    %1139 = vmatprep.mubr.bf16.mxu0 0
    %1140 = vmatmul.mubr.bf16.gmra.mrb[0].mxu0 %v780
    %v1141 = vpop.f32.mrb[0].mxu0
    %v1142 = vadd.f32 %v997, %v1141
    %v1143 = vpop.f32.mrb[0].mxu0
    %v1144 = vpop.f32.mrb[0].mxu0
    %v1145 = vadd.f32 %v1000, %v1144
    %v1146 = vpop.f32.mrb[0].mxu0
    %1147 = vmatprep.mubr.bf16.mxu0 0
    %1148 = vmatmul.mubr.bf16.gmra.mrb[0].mxu0 %v781
    %v1149 = vpop.f32.mrb[0].mxu0
    %v1150 = vadd.f32 %v1005, %v1149
    %v1151 = vpop.f32.mrb[0].mxu0
    %v1152 = vpop.f32.mrb[0].mxu0
    %v1153 = vadd.f32 %v1008, %v1152
    %v1154 = vpop.f32.mrb[0].mxu0
    %1155 = vmatprep.mubr.bf16.mxu0 0
    %1156 = vmatmul.mubr.bf16.gmra.mrb[0].mxu0 %v782
    %v1157 = vpop.f32.mrb[0].mxu0
    %v1158 = vadd.f32 %v1013, %v1157
    %v1159 = vpop.f32.mrb[0].mxu0
    %v1160 = vpop.f32.mrb[0].mxu0
    %v1161 = vadd.f32 %v1016, %v1160
    %v1162 = vpop.f32.mrb[0].mxu0
    %1163 = vmatprep.mubr.bf16.mxu0 0
    %1164 = vmatmul.mubr.bf16.gmra.mrb[0].mxu0 %v783
    %v1165 = vpop.f32.mrb[0].mxu0
    %v1166 = vadd.f32 %v1021, %v1165
    %v1167 = vpop.f32.mrb[0].mxu0
    %v1168 = vpop.f32.mrb[0].mxu0
    %v1169 = vadd.f32 %v1024, %v1168
    %v1170 = vpop.f32.mrb[0].mxu0
    %1171 = vdwg.mxu0
    %s1172 = scalar_lea.vmem [#allocation8], 128
    %v1173 = vld [vmem:[%s1172] sm:$0xf]
    %v1174 = vld [vmem:[%s1172 + $0x4] sm:$0xf]
    %v1175 = vld [vmem:[%s1172 + $0x8] sm:$0xf]
    %v1176 = vld [vmem:[%s1172 + $0xc] sm:$0xf]
    %v1177 = vld [vmem:[%s1172 + $0x10] sm:$0xf]
    %v1178 = vld [vmem:[%s1172 + $0x14] sm:$0xf]
    %v1179 = vld [vmem:[%s1172 + $0x18] sm:$0xf]
    %v1180 = vld [vmem:[%s1172 + $0x1c] sm:$0xf]
    %v1181 = vld [vmem:[%s1172 + $0x20] sm:$0xf]
    %v1182 = vld [vmem:[%s1172 + $0x24] sm:$0xf]
    %v1183 = vld [vmem:[%s1172 + $0x28] sm:$0xf]
    %v1184 = vld [vmem:[%s1172 + $0x2c] sm:$0xf]
    %v1185 = vld [vmem:[%s1172 + $0x30] sm:$0xf]
    %v1186 = vld [vmem:[%s1172 + $0x34] sm:$0xf]
    %v1187 = vld [vmem:[%s1172 + $0x38] sm:$0xf]
    %v1188 = vld [vmem:[%s1172 + $0x3c] sm:$0xf]
    %v1205 = vunpack.c.l.b16 %v1173
    %v1206 = vunpack.c.l.b16 %v1174
    %v1207 = vunpack.c.l.b16 %v1175
    %v1208 = vunpack.c.l.b16 %v1176
    %v1209 = vunpack.c.l.b16 %v1177
    %v1210 = vunpack.c.l.b16 %v1178
    %v1211 = vunpack.c.l.b16 %v1179
    %v1212 = vunpack.c.l.b16 %v1180
    %v1213 = vunpack.c.l.b16 %v1181
    %v1214 = vunpack.c.l.b16 %v1182
    %v1215 = vunpack.c.l.b16 %v1183
    %v1216 = vunpack.c.l.b16 %v1184
    %v1217 = vunpack.c.l.b16 %v1185
    %v1218 = vunpack.c.l.b16 %v1186
    %v1219 = vunpack.c.l.b16 %v1187
    %v1220 = vunpack.c.l.b16 %v1188
    %v1221 = vpack.c.b16 %v1206, %v1205
    %v1222 = vpack.c.b16 %v1208, %v1207
    %v1223 = vpack.c.b16 %v1210, %v1209
    %v1224 = vpack.c.b16 %v1212, %v1211
    %v1225 = vpack.c.b16 %v1214, %v1213
    %v1226 = vpack.c.b16 %v1216, %v1215
    %v1227 = vpack.c.b16 %v1218, %v1217
    %v1228 = vpack.c.b16 %v1220, %v1219
    %1237 = vmatprep.subr.bf16.mxu0 0
    %1238 = vmatpush1.bf16.msra.mxu0 %v1221
    %1239 = vmatprep.subr.bf16.mxu0 0
    %1240 = vmatpush1.bf16.msra.mxu0 %v1222
    %1241 = vmatprep.subr.bf16.mxu0 0
    %1242 = vmatpush1.bf16.msra.mxu0 %v1223
    %1243 = vmatprep.subr.bf16.mxu0 0
    %1244 = vmatpush1.bf16.msra.mxu0 %v1224
    %1245 = vmatprep.subr.bf16.mxu0 0
    %1246 = vmatpush1.bf16.msra.mxu0 %v1225
    %1247 = vmatprep.subr.bf16.mxu0 0
    %1248 = vmatpush1.bf16.msra.mxu0 %v1226
    %1249 = vmatprep.subr.bf16.mxu0 0
    %1250 = vmatpush1.bf16.msra.mxu0 %v1227
    %1251 = vmatprep.subr.bf16.mxu0 0
    %1252 = vmatpush1.bf16.msra.mxu0 %v1228
    %1253 = vmatprep.subr.bf16.mxu0 0
    %1254 = vmatpush1.bf16.msra.mxu0 0
    %1255 = vmatprep.subr.bf16.mxu0 0
    %1256 = vmatpush1.bf16.msra.mxu0 0
    %1257 = vmatprep.subr.bf16.mxu0 0
    %1258 = vmatpush1.bf16.msra.mxu0 0
    %1259 = vmatprep.subr.bf16.mxu0 0
    %1260 = vmatpush1.bf16.msra.mxu0 0
    %1261 = vmatprep.subr.bf16.mxu0 0
    %1262 = vmatpush1.bf16.msra.mxu0 0
    %1263 = vmatprep.subr.bf16.mxu0 0
    %1264 = vmatpush1.bf16.msra.mxu0 0
    %1265 = vmatprep.subr.bf16.mxu0 0
    %1266 = vmatpush1.bf16.msra.mxu0 0
    %1267 = vmatprep.subr.bf16.mxu0 0
    %1268 = vmatpush1.bf16.msra.mxu0 0
    %1269 = vmatprep.mubr.bf16.mxu0 0
    %1270 = vmatmul.mubr.bf16.gmra.mrb[0].mxu0 %v841
    %v1271 = vpop.f32.mrb[0].mxu0
    %v1272 = vadd.f32 0.0, %v1271
    %v1273 = vpop.f32.mrb[0].mxu0
    %v1274 = vpop.f32.mrb[0].mxu0
    %v1275 = vadd.f32 0.0, %v1274
    %v1276 = vpop.f32.mrb[0].mxu0
    %1277 = vmatprep.mubr.bf16.mxu0 0
    %1278 = vmatmul.mubr.bf16.gmra.mrb[0].mxu0 %v842
    %v1279 = vpop.f32.mrb[0].mxu0
    %v1280 = vadd.f32 0.0, %v1279
    %v1281 = vpop.f32.mrb[0].mxu0
    %v1282 = vpop.f32.mrb[0].mxu0
    %v1283 = vadd.f32 0.0, %v1282
    %v1284 = vpop.f32.mrb[0].mxu0
    %1285 = vmatprep.mubr.bf16.mxu0 0
    %1286 = vmatmul.mubr.bf16.gmra.mrb[0].mxu0 %v843
    %v1287 = vpop.f32.mrb[0].mxu0
    %v1288 = vadd.f32 0.0, %v1287
    %v1289 = vpop.f32.mrb[0].mxu0
    %v1290 = vpop.f32.mrb[0].mxu0
    %v1291 = vadd.f32 0.0, %v1290
    %v1292 = vpop.f32.mrb[0].mxu0
    %1293 = vmatprep.mubr.bf16.mxu0 0
    %1294 = vmatmul.mubr.bf16.gmra.mrb[0].mxu0 %v844
    %v1295 = vpop.f32.mrb[0].mxu0
    %v1296 = vadd.f32 0.0, %v1295
    %v1297 = vpop.f32.mrb[0].mxu0
    %v1298 = vpop.f32.mrb[0].mxu0
    %v1299 = vadd.f32 0.0, %v1298
    %v1300 = vpop.f32.mrb[0].mxu0
    %1301 = vmatprep.mubr.bf16.mxu0 0
    %1302 = vmatmul.mubr.bf16.gmra.mrb[0].mxu0 %v845
    %v1303 = vpop.f32.mrb[0].mxu0
    %v1304 = vadd.f32 0.0, %v1303
    %v1305 = vpop.f32.mrb[0].mxu0
    %v1306 = vpop.f32.mrb[0].mxu0
    %v1307 = vadd.f32 0.0, %v1306
    %v1308 = vpop.f32.mrb[0].mxu0
    %1309 = vmatprep.mubr.bf16.mxu0 0
    %1310 = vmatmul.mubr.bf16.gmra.mrb[0].mxu0 %v846
    %v1311 = vpop.f32.mrb[0].mxu0
    %v1312 = vadd.f32 0.0, %v1311
    %v1313 = vpop.f32.mrb[0].mxu0
    %v1314 = vpop.f32.mrb[0].mxu0
    %v1315 = vadd.f32 0.0, %v1314
    %v1316 = vpop.f32.mrb[0].mxu0
    %1317 = vmatprep.mubr.bf16.mxu0 0
    %1318 = vmatmul.mubr.bf16.gmra.mrb[0].mxu0 %v847
    %v1319 = vpop.f32.mrb[0].mxu0
    %v1320 = vadd.f32 0.0, %v1319
    %v1321 = vpop.f32.mrb[0].mxu0
    %v1322 = vpop.f32.mrb[0].mxu0
    %v1323 = vadd.f32 0.0, %v1322
    %v1324 = vpop.f32.mrb[0].mxu0
    %1325 = vmatprep.mubr.bf16.mxu0 0
    %1326 = vmatmul.mubr.bf16.gmra.mrb[0].mxu0 %v848
    %v1327 = vpop.f32.mrb[0].mxu0
    %v1328 = vadd.f32 0.0, %v1327
    %v1329 = vpop.f32.mrb[0].mxu0
    %v1330 = vpop.f32.mrb[0].mxu0
    %v1331 = vadd.f32 0.0, %v1330
    %v1332 = vpop.f32.mrb[0].mxu0
    %1333 = vdwg.mxu0
    %v1334 = vadd.f32 %v1110, %v1272
    %v1335 = vadd.f32 %v1113, %v1275
    %v1336 = vadd.f32 %v1118, %v1280
    %v1337 = vadd.f32 %v1121, %v1283
    %v1338 = vadd.f32 %v1126, %v1288
    %v1339 = vadd.f32 %v1129, %v1291
    %v1340 = vadd.f32 %v1134, %v1296
    %v1341 = vadd.f32 %v1137, %v1299
    %v1342 = vadd.f32 %v1142, %v1304
    %v1343 = vadd.f32 %v1145, %v1307
    %v1344 = vadd.f32 %v1150, %v1312
    %v1345 = vadd.f32 %v1153, %v1315
    %v1346 = vadd.f32 %v1158, %v1320
    %v1347 = vadd.f32 %v1161, %v1323
    %v1348 = vadd.f32 %v1166, %v1328
    %v1349 = vadd.f32 %v1169, %v1331
    %v1350 = vld [vmem:[#allocation10] sm:$0x1]
    %v1352 = vlaneseq
    %v1353 = vshrl.u32 %v1352, 7
    %v1354 = vsub.s32 0, %v1353
    %v1355 = vrot.slane %v1350, %v1354
    %v1357 = vadd.f32 %v1334, %v1355
    %v1358 = vadd.f32 %v1335, %v1355
    %v1359 = vadd.f32 %v1336, %v1355
    %v1360 = vadd.f32 %v1337, %v1355
    %v1361 = vadd.f32 %v1338, %v1355
    %v1362 = vadd.f32 %v1339, %v1355
    %v1363 = vadd.f32 %v1340, %v1355
    %v1364 = vadd.f32 %v1341, %v1355
    %v1365 = vadd.f32 %v1342, %v1355
    %v1366 = vadd.f32 %v1343, %v1355
    %v1367 = vadd.f32 %v1344, %v1355
    %v1368 = vadd.f32 %v1345, %v1355
    %v1369 = vadd.f32 %v1346, %v1355
    %v1370 = vadd.f32 %v1347, %v1355
    %v1371 = vadd.f32 %v1348, %v1355
    %v1372 = vadd.f32 %v1349, %v1355
    %v1373 = vmul.f32 %v1357, 0.5
    %v1374 = vmul.f32 %v1358, 0.5
    %v1375 = vmul.f32 %v1359, 0.5
    %v1376 = vmul.f32 %v1360, 0.5
    %v1377 = vmul.f32 %v1361, 0.5
    %v1378 = vmul.f32 %v1362, 0.5
    %v1379 = vmul.f32 %v1363, 0.5
    %v1380 = vmul.f32 %v1364, 0.5
    %v1381 = vmul.f32 %v1365, 0.5
    %v1382 = vmul.f32 %v1366, 0.5
    %v1383 = vmul.f32 %v1367, 0.5
    %v1384 = vmul.f32 %v1368, 0.5
    %v1385 = vmul.f32 %v1369, 0.5
    %v1386 = vmul.f32 %v1370, 0.5
    %v1387 = vmul.f32 %v1371, 0.5
    %v1388 = vmul.f32 %v1372, 0.5
    %v1389 = vmul.f32 %v1357, 0.044715
    %v1390 = vmul.f32 %v1358, 0.044715
    %v1391 = vmul.f32 %v1359, 0.044715
    %v1392 = vmul.f32 %v1360, 0.044715
    %v1393 = vmul.f32 %v1361, 0.044715
    %v1394 = vmul.f32 %v1362, 0.044715
    %v1395 = vmul.f32 %v1363, 0.044715
    %v1396 = vmul.f32 %v1364, 0.044715
    %v1397 = vmul.f32 %v1365, 0.044715
    %v1398 = vmul.f32 %v1366, 0.044715
    %v1399 = vmul.f32 %v1367, 0.044715
    %v1400 = vmul.f32 %v1368, 0.044715
    %v1401 = vmul.f32 %v1369, 0.044715
    %v1402 = vmul.f32 %v1370, 0.044715
    %v1403 = vmul.f32 %v1371, 0.044715
    %v1404 = vmul.f32 %v1372, 0.044715
    %v1405 = vmul.f32 %v1389, %v1357
    %v1406 = vmul.f32 %v1390, %v1358
    %v1407 = vmul.f32 %v1391, %v1359
    %v1408 = vmul.f32 %v1392, %v1360
    %v1409 = vmul.f32 %v1393, %v1361
    %v1410 = vmul.f32 %v1394, %v1362
    %v1411 = vmul.f32 %v1395, %v1363
    %v1412 = vmul.f32 %v1396, %v1364
    %v1413 = vmul.f32 %v1397, %v1365
    %v1414 = vmul.f32 %v1398, %v1366
    %v1415 = vmul.f32 %v1399, %v1367
    %v1416 = vmul.f32 %v1400, %v1368
    %v1417 = vmul.f32 %v1401, %v1369
    %v1418 = vmul.f32 %v1402, %v1370
    %v1419 = vmul.f32 %v1403, %v1371
    %v1420 = vmul.f32 %v1404, %v1372
    %v1421 = vmul.f32 %v1405, %v1357
    %v1422 = vmul.f32 %v1406, %v1358
    %v1423 = vmul.f32 %v1407, %v1359
    %v1424 = vmul.f32 %v1408, %v1360
    %v1425 = vmul.f32 %v1409, %v1361
    %v1426 = vmul.f32 %v1410, %v1362
    %v1427 = vmul.f32 %v1411, %v1363
    %v1428 = vmul.f32 %v1412, %v1364
    %v1429 = vmul.f32 %v1413, %v1365
    %v1430 = vmul.f32 %v1414, %v1366
    %v1431 = vmul.f32 %v1415, %v1367
    %v1432 = vmul.f32 %v1416, %v1368
    %v1433 = vmul.f32 %v1417, %v1369
    %v1434 = vmul.f32 %v1418, %v1370
    %v1435 = vmul.f32 %v1419, %v1371
    %v1436 = vmul.f32 %v1420, %v1372
    %v1437 = vadd.f32 %v1357, %v1421
    %v1438 = vadd.f32 %v1358, %v1422
    %v1439 = vadd.f32 %v1359, %v1423
    %v1440 = vadd.f32 %v1360, %v1424
    %v1441 = vadd.f32 %v1361, %v1425
    %v1442 = vadd.f32 %v1362, %v1426
    %v1443 = vadd.f32 %v1363, %v1427
    %v1444 = vadd.f32 %v1364, %v1428
    %v1445 = vadd.f32 %v1365, %v1429
    %v1446 = vadd.f32 %v1366, %v1430
    %v1447 = vadd.f32 %v1367, %v1431
    %v1448 = vadd.f32 %v1368, %v1432
    %v1449 = vadd.f32 %v1369, %v1433
    %v1450 = vadd.f32 %v1370, %v1434
    %v1451 = vadd.f32 %v1371, %v1435
    %v1452 = vadd.f32 %v1372, %v1436
    %v1453 = vmul.f32 %v1437, 0.7978846
    %v1454 = vmul.f32 %v1438, 0.7978846
    %v1455 = vmul.f32 %v1439, 0.7978846
    %v1456 = vmul.f32 %v1440, 0.7978846
    %v1457 = vmul.f32 %v1441, 0.7978846
    %v1458 = vmul.f32 %v1442, 0.7978846
    %v1459 = vmul.f32 %v1443, 0.7978846
    %v1460 = vmul.f32 %v1444, 0.7978846
    %v1461 = vmul.f32 %v1445, 0.7978846
    %v1462 = vmul.f32 %v1446, 0.7978846
    %v1463 = vmul.f32 %v1447, 0.7978846
    %v1464 = vmul.f32 %v1448, 0.7978846
    %v1465 = vmul.f32 %v1449, 0.7978846
    %v1466 = vmul.f32 %v1450, 0.7978846
    %v1467 = vmul.f32 %v1451, 0.7978846
    %v1468 = vmul.f32 %v1452, 0.7978846
    %v1469 = vtanh.pop %v1453
    %v1470 = vtanh.pop %v1454
    %v1471 = vtanh.pop %v1455
    %v1472 = vtanh.pop %v1456
    %v1473 = vtanh.pop %v1457
    %v1474 = vtanh.pop %v1458
    %v1475 = vtanh.pop %v1459
    %v1476 = vtanh.pop %v1460
    %v1477 = vtanh.pop %v1461
    %v1478 = vtanh.pop %v1462
    %v1479 = vtanh.pop %v1463
    %v1480 = vtanh.pop %v1464
    %v1481 = vtanh.pop %v1465
    %v1482 = vtanh.pop %v1466
    %v1483 = vtanh.pop %v1467
    %v1484 = vtanh.pop %v1468
    %v1485 = vadd.f32 %v1469, 1.0
    %v1486 = vadd.f32 %v1470, 1.0
    %v1487 = vadd.f32 %v1471, 1.0
    %v1488 = vadd.f32 %v1472, 1.0
    %v1489 = vadd.f32 %v1473, 1.0
    %v1490 = vadd.f32 %v1474, 1.0
    %v1491 = vadd.f32 %v1475, 1.0
    %v1492 = vadd.f32 %v1476, 1.0
    %v1493 = vadd.f32 %v1477, 1.0
    %v1494 = vadd.f32 %v1478, 1.0
    %v1495 = vadd.f32 %v1479, 1.0
    %v1496 = vadd.f32 %v1480, 1.0
    %v1497 = vadd.f32 %v1481, 1.0
    %v1498 = vadd.f32 %v1482, 1.0
    %v1499 = vadd.f32 %v1483, 1.0
    %v1500 = vadd.f32 %v1484, 1.0
    %v1501 = vmul.f32 %v1373, %v1485
    %v1502 = vmul.f32 %v1374, %v1486
    %v1503 = vmul.f32 %v1375, %v1487
    %v1504 = vmul.f32 %v1376, %v1488
    %v1505 = vmul.f32 %v1377, %v1489
    %v1506 = vmul.f32 %v1378, %v1490
    %v1507 = vmul.f32 %v1379, %v1491
    %v1508 = vmul.f32 %v1380, %v1492
    %v1509 = vmul.f32 %v1381, %v1493
    %v1510 = vmul.f32 %v1382, %v1494
    %v1511 = vmul.f32 %v1383, %v1495
    %v1512 = vmul.f32 %v1384, %v1496
    %v1513 = vmul.f32 %v1385, %v1497
    %v1514 = vmul.f32 %v1386, %v1498
    %v1515 = vmul.f32 %v1387, %v1499
    %v1516 = vmul.f32 %v1388, %v1500
    %v1517 = vpack.c.bf16 %v1502, %v1501
    %v1518 = vpack.c.bf16 %v1504, %v1503
    %v1519 = vpack.c.bf16 %v1506, %v1505
    %v1520 = vpack.c.bf16 %v1508, %v1507
    %v1521 = vpack.c.bf16 %v1510, %v1509
    %v1522 = vpack.c.bf16 %v1512, %v1511
    %v1523 = vpack.c.bf16 %v1514, %v1513
    %v1524 = vpack.c.bf16 %v1516, %v1515
    %v1525 = vld [vmem:[#allocation11] sm:$0xf]
    %v1526 = vld [vmem:[#allocation11 + $0x4] sm:$0xf]
    %v1527 = vld [vmem:[#allocation11 + $0x8] sm:$0xf]
    %v1528 = vld [vmem:[#allocation11 + $0xc] sm:$0xf]
    %v1529 = vld [vmem:[#allocation11 + $0x10] sm:$0xf]
    %v1530 = vld [vmem:[#allocation11 + $0x14] sm:$0xf]
    %v1531 = vld [vmem:[#allocation11 + $0x18] sm:$0xf]
    %v1532 = vld [vmem:[#allocation11 + $0x1c] sm:$0xf]
    %v1541 = vunpack.c.l.b16 %v1525
    %v1542 = vunpack.c.l.b16 %v1526
    %v1543 = vunpack.c.l.b16 %v1527
    %v1544 = vunpack.c.l.b16 %v1528
    %v1545 = vunpack.c.l.b16 %v1529
    %v1546 = vunpack.c.l.b16 %v1530
    %v1547 = vunpack.c.l.b16 %v1531
    %v1548 = vunpack.c.l.b16 %v1532
    %v1549 = vpack.c.b16 %v1542, %v1541
    %v1550 = vpack.c.b16 %v1544, %v1543
    %v1551 = vpack.c.b16 %v1546, %v1545
    %v1552 = vpack.c.b16 %v1548, %v1547
    %1557 = vmatprep.subr.bf16.mxu0 0
    %1558 = vmatpush1.bf16.msra.mxu0 %v1517
    %1559 = vmatprep.subr.bf16.mxu0 0
    %1560 = vmatpush1.bf16.msra.mxu0 %v1518
    %1561 = vmatprep.subr.bf16.mxu0 0
    %1562 = vmatpush1.bf16.msra.mxu0 %v1519
    %1563 = vmatprep.subr.bf16.mxu0 0
    %1564 = vmatpush1.bf16.msra.mxu0 %v1520
    %1565 = vmatprep.subr.bf16.mxu0 0
    %1566 = vmatpush1.bf16.msra.mxu0 %v1521
    %1567 = vmatprep.subr.bf16.mxu0 0
    %1568 = vmatpush1.bf16.msra.mxu0 %v1522
    %1569 = vmatprep.subr.bf16.mxu0 0
    %1570 = vmatpush1.bf16.msra.mxu0 %v1523
    %1571 = vmatprep.subr.bf16.mxu0 0
    %1572 = vmatpush1.bf16.msra.mxu0 %v1524
    %1573 = vmatprep.subr.bf16.mxu0 0
    %1574 = vmatpush1.bf16.msra.mxu0 0
    %1575 = vmatprep.subr.bf16.mxu0 0
    %1576 = vmatpush1.bf16.msra.mxu0 0
    %1577 = vmatprep.subr.bf16.mxu0 0
    %1578 = vmatpush1.bf16.msra.mxu0 0
    %1579 = vmatprep.subr.bf16.mxu0 0
    %1580 = vmatpush1.bf16.msra.mxu0 0
    %1581 = vmatprep.subr.bf16.mxu0 0
    %1582 = vmatpush1.bf16.msra.mxu0 0
    %1583 = vmatprep.subr.bf16.mxu0 0
    %1584 = vmatpush1.bf16.msra.mxu0 0
    %1585 = vmatprep.subr.bf16.mxu0 0
    %1586 = vmatpush1.bf16.msra.mxu0 0
    %1587 = vmatprep.subr.bf16.mxu0 0
    %1588 = vmatpush1.bf16.msra.mxu0 0
    %1589 = vmatprep.mubr.bf16.mxu0 0
    %1590 = vmatmul.mubr.bf16.gmra.mrb[0].mxu0 %v1549
    %v1591 = vpop.f32.mrb[0].mxu0
    %v1592 = vadd.f32 0.0, %v1591
    %v1593 = vpop.f32.mrb[0].mxu0
    %v1594 = vpop.f32.mrb[0].mxu0
    %v1595 = vadd.f32 0.0, %v1594
    %v1596 = vpop.f32.mrb[0].mxu0
    %1597 = vmatprep.mubr.bf16.mxu0 0
    %1598 = vmatmul.mubr.bf16.gmra.mrb[0].mxu0 %v1550
    %v1599 = vpop.f32.mrb[0].mxu0
    %v1600 = vadd.f32 0.0, %v1599
    %v1601 = vpop.f32.mrb[0].mxu0
    %v1602 = vpop.f32.mrb[0].mxu0
    %v1603 = vadd.f32 0.0, %v1602
    %v1604 = vpop.f32.mrb[0].mxu0
    %1605 = vmatprep.mubr.bf16.mxu0 0
    %1606 = vmatmul.mubr.bf16.gmra.mrb[0].mxu0 %v1551
    %v1607 = vpop.f32.mrb[0].mxu0
    %v1608 = vadd.f32 0.0, %v1607
    %v1609 = vpop.f32.mrb[0].mxu0
    %v1610 = vpop.f32.mrb[0].mxu0
    %v1611 = vadd.f32 0.0, %v1610
    %v1612 = vpop.f32.mrb[0].mxu0
    %1613 = vmatprep.mubr.bf16.mxu0 0
    %1614 = vmatmul.mubr.bf16.gmra.mrb[0].mxu0 %v1552
    %v1615 = vpop.f32.mrb[0].mxu0
    %v1616 = vadd.f32 0.0, %v1615
    %v1617 = vpop.f32.mrb[0].mxu0
    %v1618 = vpop.f32.mrb[0].mxu0
    %v1619 = vadd.f32 0.0, %v1618
    %v1620 = vpop.f32.mrb[0].mxu0
    %1621 = vdwg.mxu0
    %v1622 = vpack.c.bf16 %v1595, %v1592
    %v1623 = vpack.c.bf16 %v1603, %v1600
    %v1624 = vpack.c.bf16 %v1611, %v1608
    %v1625 = vpack.c.bf16 %v1619, %v1616
    %v1626 = vld [vmem:[#allocation13] sm:$0xf]
    %v1627 = vld [vmem:[#allocation13 + $0x4] sm:$0xf]
    %v1628 = vld [vmem:[#allocation13 + $0x8] sm:$0xf]
    %v1629 = vld [vmem:[#allocation13 + $0xc] sm:$0xf]
    %v1630 = vld [vmem:[#allocation13 + $0x10] sm:$0xf]
    %v1631 = vld [vmem:[#allocation13 + $0x14] sm:$0xf]
    %v1632 = vld [vmem:[#allocation13 + $0x18] sm:$0xf]
    %v1633 = vld [vmem:[#allocation13 + $0x1c] sm:$0xf]
    %v1634 = vld [vmem:[#allocation13 + $0x20] sm:$0xf]
    %v1635 = vld [vmem:[#allocation13 + $0x24] sm:$0xf]
    %v1636 = vld [vmem:[#allocation13 + $0x28] sm:$0xf]
    %v1637 = vld [vmem:[#allocation13 + $0x2c] sm:$0xf]
    %v1638 = vld [vmem:[#allocation13 + $0x30] sm:$0xf]
    %v1639 = vld [vmem:[#allocation13 + $0x34] sm:$0xf]
    %v1640 = vld [vmem:[#allocation13 + $0x38] sm:$0xf]
    %v1641 = vld [vmem:[#allocation13 + $0x3c] sm:$0xf]
    %s1642 = scalar_lea.vmem [#allocation11], 32
    %v1643 = vld [vmem:[%s1642] sm:$0xf]
    %v1644 = vld [vmem:[%s1642 + $0x4] sm:$0xf]
    %v1645 = vld [vmem:[%s1642 + $0x8] sm:$0xf]
    %v1646 = vld [vmem:[%s1642 + $0xc] sm:$0xf]
    %v1647 = vld [vmem:[%s1642 + $0x10] sm:$0xf]
    %v1648 = vld [vmem:[%s1642 + $0x14] sm:$0xf]
    %v1649 = vld [vmem:[%s1642 + $0x18] sm:$0xf]
    %v1650 = vld [vmem:[%s1642 + $0x1c] sm:$0xf]
    %v1659 = vunpack.c.l.b16 %v1643
    %v1660 = vunpack.c.l.b16 %v1644
    %v1661 = vunpack.c.l.b16 %v1645
    %v1662 = vunpack.c.l.b16 %v1646
    %v1663 = vunpack.c.l.b16 %v1647
    %v1664 = vunpack.c.l.b16 %v1648
    %v1665 = vunpack.c.l.b16 %v1649
    %v1666 = vunpack.c.l.b16 %v1650
    %v1667 = vpack.c.b16 %v1660, %v1659
    %v1668 = vpack.c.b16 %v1662, %v1661
    %v1669 = vpack.c.b16 %v1664, %v1663
    %v1670 = vpack.c.b16 %v1666, %v1665
    %1675 = vmatprep.subr.bf16.mxu0 0
    %1676 = vmatpush1.bf16.msra.mxu0 %v1517
    %1677 = vmatprep.subr.bf16.mxu0 0
    %1678 = vmatpush1.bf16.msra.mxu0 %v1518
    %1679 = vmatprep.subr.bf16.mxu0 0
    %1680 = vmatpush1.bf16.msra.mxu0 %v1519
    %1681 = vmatprep.subr.bf16.mxu0 0
    %1682 = vmatpush1.bf16.msra.mxu0 %v1520
    %1683 = vmatprep.subr.bf16.mxu0 0
    %1684 = vmatpush1.bf16.msra.mxu0 %v1521
    %1685 = vmatprep.subr.bf16.mxu0 0
    %1686 = vmatpush1.bf16.msra.mxu0 %v1522
    %1687 = vmatprep.subr.bf16.mxu0 0
    %1688 = vmatpush1.bf16.msra.mxu0 %v1523
    %1689 = vmatprep.subr.bf16.mxu0 0
    %1690 = vmatpush1.bf16.msra.mxu0 %v1524
    %1691 = vmatprep.subr.bf16.mxu0 0
    %1692 = vmatpush1.bf16.msra.mxu0 0
    %1693 = vmatprep.subr.bf16.mxu0 0
    %1694 = vmatpush1.bf16.msra.mxu0 0
    %1695 = vmatprep.subr.bf16.mxu0 0
    %1696 = vmatpush1.bf16.msra.mxu0 0
    %1697 = vmatprep.subr.bf16.mxu0 0
    %1698 = vmatpush1.bf16.msra.mxu0 0
    %1699 = vmatprep.subr.bf16.mxu0 0
    %1700 = vmatpush1.bf16.msra.mxu0 0
    %1701 = vmatprep.subr.bf16.mxu0 0
    %1702 = vmatpush1.bf16.msra.mxu0 0
    %1703 = vmatprep.subr.bf16.mxu0 0
    %1704 = vmatpush1.bf16.msra.mxu0 0
    %1705 = vmatprep.subr.bf16.mxu0 0
    %1706 = vmatpush1.bf16.msra.mxu0 0
    %1707 = vmatprep.mubr.bf16.mxu0 0
    %1708 = vmatmul.mubr.bf16.gmra.mrb[0].mxu0 %v1667
    %v1709 = vpop.f32.mrb[0].mxu0
    %v1710 = vadd.f32 0.0, %v1709
    %v1711 = vpop.f32.mrb[0].mxu0
    %v1712 = vpop.f32.mrb[0].mxu0
    %v1713 = vadd.f32 0.0, %v1712
    %v1714 = vpop.f32.mrb[0].mxu0
    %1715 = vmatprep.mubr.bf16.mxu0 0
    %1716 = vmatmul.mubr.bf16.gmra.mrb[0].mxu0 %v1668
    %v1717 = vpop.f32.mrb[0].mxu0
    %v1718 = vadd.f32 0.0, %v1717
    %v1719 = vpop.f32.mrb[0].mxu0
    %v1720 = vpop.f32.mrb[0].mxu0
    %v1721 = vadd.f32 0.0, %v1720
    %v1722 = vpop.f32.mrb[0].mxu0
    %1723 = vmatprep.mubr.bf16.mxu0 0
    %1724 = vmatmul.mubr.bf16.gmra.mrb[0].mxu0 %v1669
    %v1725 = vpop.f32.mrb[0].mxu0
    %v1726 = vadd.f32 0.0, %v1725
    %v1727 = vpop.f32.mrb[0].mxu0
    %v1728 = vpop.f32.mrb[0].mxu0
    %v1729 = vadd.f32 0.0, %v1728
    %v1730 = vpop.f32.mrb[0].mxu0
    %1731 = vmatprep.mubr.bf16.mxu0 0
    %1732 = vmatmul.mubr.bf16.gmra.mrb[0].mxu0 %v1670
    %v1733 = vpop.f32.mrb[0].mxu0
    %v1734 = vadd.f32 0.0, %v1733
    %v1735 = vpop.f32.mrb[0].mxu0
    %v1736 = vpop.f32.mrb[0].mxu0
    %v1737 = vadd.f32 0.0, %v1736
    %v1738 = vpop.f32.mrb[0].mxu0
    %1739 = vdwg.mxu0
    %v1740 = vpack.c.bf16 %v1713, %v1710
    %v1741 = vpack.c.bf16 %v1721, %v1718
    %v1742 = vpack.c.bf16 %v1729, %v1726
    %v1743 = vpack.c.bf16 %v1737, %v1734
    %s1744 = scalar_lea.vmem [#allocation13], 64
    %v1745 = vld [vmem:[%s1744] sm:$0xf]
    %v1746 = vld [vmem:[%s1744 + $0x4] sm:$0xf]
    %v1747 = vld [vmem:[%s1744 + $0x8] sm:$0xf]
    %v1748 = vld [vmem:[%s1744 + $0xc] sm:$0xf]
    %v1749 = vld [vmem:[%s1744 + $0x10] sm:$0xf]
    %v1750 = vld [vmem:[%s1744 + $0x14] sm:$0xf]
    %v1751 = vld [vmem:[%s1744 + $0x18] sm:$0xf]
    %v1752 = vld [vmem:[%s1744 + $0x1c] sm:$0xf]
    %v1753 = vld [vmem:[%s1744 + $0x20] sm:$0xf]
    %v1754 = vld [vmem:[%s1744 + $0x24] sm:$0xf]
    %v1755 = vld [vmem:[%s1744 + $0x28] sm:$0xf]
    %v1756 = vld [vmem:[%s1744 + $0x2c] sm:$0xf]
    %v1757 = vld [vmem:[%s1744 + $0x30] sm:$0xf]
    %v1758 = vld [vmem:[%s1744 + $0x34] sm:$0xf]
    %v1759 = vld [vmem:[%s1744 + $0x38] sm:$0xf]
    %v1760 = vld [vmem:[%s1744 + $0x3c] sm:$0xf]
    %v1777 = vunpack.c.l.b16 %v1745
    %v1778 = vunpack.c.l.b16 %v1746
    %v1779 = vunpack.c.l.b16 %v1747
    %v1780 = vunpack.c.l.b16 %v1748
    %v1781 = vunpack.c.l.b16 %v1749
    %v1782 = vunpack.c.l.b16 %v1750
    %v1783 = vunpack.c.l.b16 %v1751
    %v1784 = vunpack.c.l.b16 %v1752
    %v1785 = vunpack.c.l.b16 %v1753
    %v1786 = vunpack.c.l.b16 %v1754
    %v1787 = vunpack.c.l.b16 %v1755
    %v1788 = vunpack.c.l.b16 %v1756
    %v1789 = vunpack.c.l.b16 %v1757
    %v1790 = vunpack.c.l.b16 %v1758
    %v1791 = vunpack.c.l.b16 %v1759
    %v1792 = vunpack.c.l.b16 %v1760
    %v1793 = vpack.c.b16 %v1778, %v1777
    %v1794 = vpack.c.b16 %v1780, %v1779
    %v1795 = vpack.c.b16 %v1782, %v1781
    %v1796 = vpack.c.b16 %v1784, %v1783
    %v1797 = vpack.c.b16 %v1786, %v1785
    %v1798 = vpack.c.b16 %v1788, %v1787
    %v1799 = vpack.c.b16 %v1790, %v1789
    %v1800 = vpack.c.b16 %v1792, %v1791
    %1809 = vmatprep.subr.bf16.mxu0 0
    %1810 = vmatpush1.bf16.msra.mxu0 %v1793
    %1811 = vmatprep.subr.bf16.mxu0 0
    %1812 = vmatpush1.bf16.msra.mxu0 %v1794
    %1813 = vmatprep.subr.bf16.mxu0 0
    %1814 = vmatpush1.bf16.msra.mxu0 %v1795
    %1815 = vmatprep.subr.bf16.mxu0 0
    %1816 = vmatpush1.bf16.msra.mxu0 %v1796
    %1817 = vmatprep.subr.bf16.mxu0 0
    %1818 = vmatpush1.bf16.msra.mxu0 %v1797
    %1819 = vmatprep.subr.bf16.mxu0 0
    %1820 = vmatpush1.bf16.msra.mxu0 %v1798
    %1821 = vmatprep.subr.bf16.mxu0 0
    %1822 = vmatpush1.bf16.msra.mxu0 %v1799
    %1823 = vmatprep.subr.bf16.mxu0 0
    %1824 = vmatpush1.bf16.msra.mxu0 %v1800
    %1825 = vmatprep.subr.bf16.mxu0 0
    %1826 = vmatpush1.bf16.msra.mxu0 0
    %1827 = vmatprep.subr.bf16.mxu0 0
    %1828 = vmatpush1.bf16.msra.mxu0 0
    %1829 = vmatprep.subr.bf16.mxu0 0
    %1830 = vmatpush1.bf16.msra.mxu0 0
    %1831 = vmatprep.subr.bf16.mxu0 0
    %1832 = vmatpush1.bf16.msra.mxu0 0
    %1833 = vmatprep.subr.bf16.mxu0 0
    %1834 = vmatpush1.bf16.msra.mxu0 0
    %1835 = vmatprep.subr.bf16.mxu0 0
    %1836 = vmatpush1.bf16.msra.mxu0 0
    %1837 = vmatprep.subr.bf16.mxu0 0
    %1838 = vmatpush1.bf16.msra.mxu0 0
    %1839 = vmatprep.subr.bf16.mxu0 0
    %1840 = vmatpush1.bf16.msra.mxu0 0
    %1841 = vmatprep.mubr.bf16.mxu0 0
    %1842 = vmatmul.mubr.bf16.gmra.mrb[0].mxu0 %v1740
    %v1843 = vpop.f32.mrb[0].mxu0
    %v1844 = vadd.f32 0.0, %v1843
    %v1845 = vpop.f32.mrb[0].mxu0
    %v1846 = vpop.f32.mrb[0].mxu0
    %v1847 = vadd.f32 0.0, %v1846
    %v1848 = vpop.f32.mrb[0].mxu0
    %1849 = vmatprep.mubr.bf16.mxu0 0
    %1850 = vmatmul.mubr.bf16.gmra.mrb[0].mxu0 %v1741
    %v1851 = vpop.f32.mrb[0].mxu0
    %v1852 = vadd.f32 0.0, %v1851
    %v1853 = vpop.f32.mrb[0].mxu0
    %v1854 = vpop.f32.mrb[0].mxu0
    %v1855 = vadd.f32 0.0, %v1854
    %v1856 = vpop.f32.mrb[0].mxu0
    %1857 = vmatprep.mubr.bf16.mxu0 0
    %1858 = vmatmul.mubr.bf16.gmra.mrb[0].mxu0 %v1742
    %v1859 = vpop.f32.mrb[0].mxu0
    %v1860 = vadd.f32 0.0, %v1859
    %v1861 = vpop.f32.mrb[0].mxu0
    %v1862 = vpop.f32.mrb[0].mxu0
    %v1863 = vadd.f32 0.0, %v1862
    %v1864 = vpop.f32.mrb[0].mxu0
    %1865 = vmatprep.mubr.bf16.mxu0 0
    %1866 = vmatmul.mubr.bf16.gmra.mrb[0].mxu0 %v1743
    %v1867 = vpop.f32.mrb[0].mxu0
    %v1868 = vadd.f32 0.0, %v1867
    %v1869 = vpop.f32.mrb[0].mxu0
    %v1870 = vpop.f32.mrb[0].mxu0
    %v1871 = vadd.f32 0.0, %v1870
    %v1872 = vpop.f32.mrb[0].mxu0
    %1873 = vdwg.mxu0
    %v1890 = vunpack.c.l.b16 %v1626
    %v1891 = vunpack.c.l.b16 %v1627
    %v1892 = vunpack.c.l.b16 %v1628
    %v1893 = vunpack.c.l.b16 %v1629
    %v1894 = vunpack.c.l.b16 %v1630
    %v1895 = vunpack.c.l.b16 %v1631
    %v1896 = vunpack.c.l.b16 %v1632
    %v1897 = vunpack.c.l.b16 %v1633
    %v1898 = vunpack.c.l.b16 %v1634
    %v1899 = vunpack.c.l.b16 %v1635
    %v1900 = vunpack.c.l.b16 %v1636
    %v1901 = vunpack.c.l.b16 %v1637
    %v1902 = vunpack.c.l.b16 %v1638
    %v1903 = vunpack.c.l.b16 %v1639
    %v1904 = vunpack.c.l.b16 %v1640
    %v1905 = vunpack.c.l.b16 %v1641
    %v1906 = vpack.c.b16 %v1891, %v1890
    %v1907 = vpack.c.b16 %v1893, %v1892
    %v1908 = vpack.c.b16 %v1895, %v1894
    %v1909 = vpack.c.b16 %v1897, %v1896
    %v1910 = vpack.c.b16 %v1899, %v1898
    %v1911 = vpack.c.b16 %v1901, %v1900
    %v1912 = vpack.c.b16 %v1903, %v1902
    %v1913 = vpack.c.b16 %v1905, %v1904
    %1922 = vmatprep.subr.bf16.mxu0 0
    %1923 = vmatpush1.bf16.msra.mxu0 %v1906
    %1924 = vmatprep.subr.bf16.mxu0 0
    %1925 = vmatpush1.bf16.msra.mxu0 %v1907
    %1926 = vmatprep.subr.bf16.mxu0 0
    %1927 = vmatpush1.bf16.msra.mxu0 %v1908
    %1928 = vmatprep.subr.bf16.mxu0 0
    %1929 = vmatpush1.bf16.msra.mxu0 %v1909
    %1930 = vmatprep.subr.bf16.mxu0 0
    %1931 = vmatpush1.bf16.msra.mxu0 %v1910
    %1932 = vmatprep.subr.bf16.mxu0 0
    %1933 = vmatpush1.bf16.msra.mxu0 %v1911
    %1934 = vmatprep.subr.bf16.mxu0 0
    %1935 = vmatpush1.bf16.msra.mxu0 %v1912
    %1936 = vmatprep.subr.bf16.mxu0 0
    %1937 = vmatpush1.bf16.msra.mxu0 %v1913
    %1938 = vmatprep.subr.bf16.mxu0 0
    %1939 = vmatpush1.bf16.msra.mxu0 0
    %1940 = vmatprep.subr.bf16.mxu0 0
    %1941 = vmatpush1.bf16.msra.mxu0 0
    %1942 = vmatprep.subr.bf16.mxu0 0
    %1943 = vmatpush1.bf16.msra.mxu0 0
    %1944 = vmatprep.subr.bf16.mxu0 0
    %1945 = vmatpush1.bf16.msra.mxu0 0
    %1946 = vmatprep.subr.bf16.mxu0 0
    %1947 = vmatpush1.bf16.msra.mxu0 0
    %1948 = vmatprep.subr.bf16.mxu0 0
    %1949 = vmatpush1.bf16.msra.mxu0 0
    %1950 = vmatprep.subr.bf16.mxu0 0
    %1951 = vmatpush1.bf16.msra.mxu0 0
    %1952 = vmatprep.subr.bf16.mxu0 0
    %1953 = vmatpush1.bf16.msra.mxu0 0
    %1954 = vmatprep.mubr.bf16.mxu0 0
    %1955 = vmatmul.mubr.bf16.gmra.mrb[0].mxu0 %v1622
    %v1956 = vpop.f32.mrb[0].mxu0
    %v1957 = vadd.f32 %v1844, %v1956
    %v1958 = vpop.f32.mrb[0].mxu0
    %v1959 = vpop.f32.mrb[0].mxu0
    %v1960 = vadd.f32 %v1847, %v1959
    %v1961 = vpop.f32.mrb[0].mxu0
    %1962 = vmatprep.mubr.bf16.mxu0 0
    %1963 = vmatmul.mubr.bf16.gmra.mrb[0].mxu0 %v1623
    %v1964 = vpop.f32.mrb[0].mxu0
    %v1965 = vadd.f32 %v1852, %v1964
    %v1966 = vpop.f32.mrb[0].mxu0
    %v1967 = vpop.f32.mrb[0].mxu0
    %v1968 = vadd.f32 %v1855, %v1967
    %v1969 = vpop.f32.mrb[0].mxu0
    %1970 = vmatprep.mubr.bf16.mxu0 0
    %1971 = vmatmul.mubr.bf16.gmra.mrb[0].mxu0 %v1624
    %v1972 = vpop.f32.mrb[0].mxu0
    %v1973 = vadd.f32 %v1860, %v1972
    %v1974 = vpop.f32.mrb[0].mxu0
    %v1975 = vpop.f32.mrb[0].mxu0
    %v1976 = vadd.f32 %v1863, %v1975
    %v1977 = vpop.f32.mrb[0].mxu0
    %1978 = vmatprep.mubr.bf16.mxu0 0
    %1979 = vmatmul.mubr.bf16.gmra.mrb[0].mxu0 %v1625
    %v1980 = vpop.f32.mrb[0].mxu0
    %v1981 = vadd.f32 %v1868, %v1980
    %v1982 = vpop.f32.mrb[0].mxu0
    %v1983 = vpop.f32.mrb[0].mxu0
    %v1984 = vadd.f32 %v1871, %v1983
    %v1985 = vpop.f32.mrb[0].mxu0
    %1986 = vdwg.mxu0
    %s1987 = scalar_lea.vmem [#allocation11], 64
    %v1988 = vld [vmem:[%s1987] sm:$0xf]
    %v1989 = vld [vmem:[%s1987 + $0x4] sm:$0xf]
    %v1990 = vld [vmem:[%s1987 + $0x8] sm:$0xf]
    %v1991 = vld [vmem:[%s1987 + $0xc] sm:$0xf]
    %v1992 = vld [vmem:[%s1987 + $0x10] sm:$0xf]
    %v1993 = vld [vmem:[%s1987 + $0x14] sm:$0xf]
    %v1994 = vld [vmem:[%s1987 + $0x18] sm:$0xf]
    %v1995 = vld [vmem:[%s1987 + $0x1c] sm:$0xf]
    %v2004 = vunpack.c.l.b16 %v1988
    %v2005 = vunpack.c.l.b16 %v1989
    %v2006 = vunpack.c.l.b16 %v1990
    %v2007 = vunpack.c.l.b16 %v1991
    %v2008 = vunpack.c.l.b16 %v1992
    %v2009 = vunpack.c.l.b16 %v1993
    %v2010 = vunpack.c.l.b16 %v1994
    %v2011 = vunpack.c.l.b16 %v1995
    %v2012 = vpack.c.b16 %v2005, %v2004
    %v2013 = vpack.c.b16 %v2007, %v2006
    %v2014 = vpack.c.b16 %v2009, %v2008
    %v2015 = vpack.c.b16 %v2011, %v2010
    %2020 = vmatprep.subr.bf16.mxu0 0
    %2021 = vmatpush1.bf16.msra.mxu0 %v1517
    %2022 = vmatprep.subr.bf16.mxu0 0
    %2023 = vmatpush1.bf16.msra.mxu0 %v1518
    %2024 = vmatprep.subr.bf16.mxu0 0
    %2025 = vmatpush1.bf16.msra.mxu0 %v1519
    %2026 = vmatprep.subr.bf16.mxu0 0
    %2027 = vmatpush1.bf16.msra.mxu0 %v1520
    %2028 = vmatprep.subr.bf16.mxu0 0
    %2029 = vmatpush1.bf16.msra.mxu0 %v1521
    %2030 = vmatprep.subr.bf16.mxu0 0
    %2031 = vmatpush1.bf16.msra.mxu0 %v1522
    %2032 = vmatprep.subr.bf16.mxu0 0
    %2033 = vmatpush1.bf16.msra.mxu0 %v1523
    %2034 = vmatprep.subr.bf16.mxu0 0
    %2035 = vmatpush1.bf16.msra.mxu0 %v1524
    %2036 = vmatprep.subr.bf16.mxu0 0
    %2037 = vmatpush1.bf16.msra.mxu0 0
    %2038 = vmatprep.subr.bf16.mxu0 0
    %2039 = vmatpush1.bf16.msra.mxu0 0
    %2040 = vmatprep.subr.bf16.mxu0 0
    %2041 = vmatpush1.bf16.msra.mxu0 0
    %2042 = vmatprep.subr.bf16.mxu0 0
    %2043 = vmatpush1.bf16.msra.mxu0 0
    %2044 = vmatprep.subr.bf16.mxu0 0
    %2045 = vmatpush1.bf16.msra.mxu0 0
    %2046 = vmatprep.subr.bf16.mxu0 0
    %2047 = vmatpush1.bf16.msra.mxu0 0
    %2048 = vmatprep.subr.bf16.mxu0 0
    %2049 = vmatpush1.bf16.msra.mxu0 0
    %2050 = vmatprep.subr.bf16.mxu0 0
    %2051 = vmatpush1.bf16.msra.mxu0 0
    %2052 = vmatprep.mubr.bf16.mxu0 0
    %2053 = vmatmul.mubr.bf16.gmra.mrb[0].mxu0 %v2012
    %v2054 = vpop.f32.mrb[0].mxu0
    %v2055 = vadd.f32 0.0, %v2054
    %v2056 = vpop.f32.mrb[0].mxu0
    %v2057 = vpop.f32.mrb[0].mxu0
    %v2058 = vadd.f32 0.0, %v2057
    %v2059 = vpop.f32.mrb[0].mxu0
    %2060 = vmatprep.mubr.bf16.mxu0 0
    %2061 = vmatmul.mubr.bf16.gmra.mrb[0].mxu0 %v2013
    %v2062 = vpop.f32.mrb[0].mxu0
    %v2063 = vadd.f32 0.0, %v2062
    %v2064 = vpop.f32.mrb[0].mxu0
    %v2065 = vpop.f32.mrb[0].mxu0
    %v2066 = vadd.f32 0.0, %v2065
    %v2067 = vpop.f32.mrb[0].mxu0
    %2068 = vmatprep.mubr.bf16.mxu0 0
    %2069 = vmatmul.mubr.bf16.gmra.mrb[0].mxu0 %v2014
    %v2070 = vpop.f32.mrb[0].mxu0
    %v2071 = vadd.f32 0.0, %v2070
    %v2072 = vpop.f32.mrb[0].mxu0
    %v2073 = vpop.f32.mrb[0].mxu0
    %v2074 = vadd.f32 0.0, %v2073
    %v2075 = vpop.f32.mrb[0].mxu0
    %2076 = vmatprep.mubr.bf16.mxu0 0
    %2077 = vmatmul.mubr.bf16.gmra.mrb[0].mxu0 %v2015
    %v2078 = vpop.f32.mrb[0].mxu0
    %v2079 = vadd.f32 0.0, %v2078
    %v2080 = vpop.f32.mrb[0].mxu0
    %v2081 = vpop.f32.mrb[0].mxu0
    %v2082 = vadd.f32 0.0, %v2081
    %v2083 = vpop.f32.mrb[0].mxu0
    %2084 = vdwg.mxu0
    %v2085 = vpack.c.bf16 %v2058, %v2055
    %v2086 = vpack.c.bf16 %v2066, %v2063
    %v2087 = vpack.c.bf16 %v2074, %v2071
    %v2088 = vpack.c.bf16 %v2082, %v2079
    %s2089 = scalar_lea.vmem [#allocation13], 128
    %v2090 = vld [vmem:[%s2089] sm:$0xf]
    %v2091 = vld [vmem:[%s2089 + $0x4] sm:$0xf]
    %v2092 = vld [vmem:[%s2089 + $0x8] sm:$0xf]
    %v2093 = vld [vmem:[%s2089 + $0xc] sm:$0xf]
    %v2094 = vld [vmem:[%s2089 + $0x10] sm:$0xf]
    %v2095 = vld [vmem:[%s2089 + $0x14] sm:$0xf]
    %v2096 = vld [vmem:[%s2089 + $0x18] sm:$0xf]
    %v2097 = vld [vmem:[%s2089 + $0x1c] sm:$0xf]
    %v2098 = vld [vmem:[%s2089 + $0x20] sm:$0xf]
    %v2099 = vld [vmem:[%s2089 + $0x24] sm:$0xf]
    %v2100 = vld [vmem:[%s2089 + $0x28] sm:$0xf]
    %v2101 = vld [vmem:[%s2089 + $0x2c] sm:$0xf]
    %v2102 = vld [vmem:[%s2089 + $0x30] sm:$0xf]
    %v2103 = vld [vmem:[%s2089 + $0x34] sm:$0xf]
    %v2104 = vld [vmem:[%s2089 + $0x38] sm:$0xf]
    %v2105 = vld [vmem:[%s2089 + $0x3c] sm:$0xf]
    %v2122 = vunpack.c.l.b16 %v2090
    %v2123 = vunpack.c.l.b16 %v2091
    %v2124 = vunpack.c.l.b16 %v2092
    %v2125 = vunpack.c.l.b16 %v2093
    %v2126 = vunpack.c.l.b16 %v2094
    %v2127 = vunpack.c.l.b16 %v2095
    %v2128 = vunpack.c.l.b16 %v2096
    %v2129 = vunpack.c.l.b16 %v2097
    %v2130 = vunpack.c.l.b16 %v2098
    %v2131 = vunpack.c.l.b16 %v2099
    %v2132 = vunpack.c.l.b16 %v2100
    %v2133 = vunpack.c.l.b16 %v2101
    %v2134 = vunpack.c.l.b16 %v2102
    %v2135 = vunpack.c.l.b16 %v2103
    %v2136 = vunpack.c.l.b16 %v2104
    %v2137 = vunpack.c.l.b16 %v2105
    %v2138 = vpack.c.b16 %v2123, %v2122
    %v2139 = vpack.c.b16 %v2125, %v2124
    %v2140 = vpack.c.b16 %v2127, %v2126
    %v2141 = vpack.c.b16 %v2129, %v2128
    %v2142 = vpack.c.b16 %v2131, %v2130
    %v2143 = vpack.c.b16 %v2133, %v2132
    %v2144 = vpack.c.b16 %v2135, %v2134
    %v2145 = vpack.c.b16 %v2137, %v2136
    %2154 = vmatprep.subr.bf16.mxu0 0
    %2155 = vmatpush1.bf16.msra.mxu0 %v2138
    %2156 = vmatprep.subr.bf16.mxu0 0
    %2157 = vmatpush1.bf16.msra.mxu0 %v2139
    %2158 = vmatprep.subr.bf16.mxu0 0
    %2159 = vmatpush1.bf16.msra.mxu0 %v2140
    %2160 = vmatprep.subr.bf16.mxu0 0
    %2161 = vmatpush1.bf16.msra.mxu0 %v2141
    %2162 = vmatprep.subr.bf16.mxu0 0
    %2163 = vmatpush1.bf16.msra.mxu0 %v2142
    %2164 = vmatprep.subr.bf16.mxu0 0
    %2165 = vmatpush1.bf16.msra.mxu0 %v2143
    %2166 = vmatprep.subr.bf16.mxu0 0
    %2167 = vmatpush1.bf16.msra.mxu0 %v2144
    %2168 = vmatprep.subr.bf16.mxu0 0
    %2169 = vmatpush1.bf16.msra.mxu0 %v2145
    %2170 = vmatprep.subr.bf16.mxu0 0
    %2171 = vmatpush1.bf16.msra.mxu0 0
    %2172 = vmatprep.subr.bf16.mxu0 0
    %2173 = vmatpush1.bf16.msra.mxu0 0
    %2174 = vmatprep.subr.bf16.mxu0 0
    %2175 = vmatpush1.bf16.msra.mxu0 0
    %2176 = vmatprep.subr.bf16.mxu0 0
    %2177 = vmatpush1.bf16.msra.mxu0 0
    %2178 = vmatprep.subr.bf16.mxu0 0
    %2179 = vmatpush1.bf16.msra.mxu0 0
    %2180 = vmatprep.subr.bf16.mxu0 0
    %2181 = vmatpush1.bf16.msra.mxu0 0
    %2182 = vmatprep.subr.bf16.mxu0 0
    %2183 = vmatpush1.bf16.msra.mxu0 0
    %2184 = vmatprep.subr.bf16.mxu0 0
    %2185 = vmatpush1.bf16.msra.mxu0 0
    %2186 = vmatprep.mubr.bf16.mxu0 0
    %2187 = vmatmul.mubr.bf16.gmra.mrb[0].mxu0 %v2085
    %v2188 = vpop.f32.mrb[0].mxu0
    %v2189 = vadd.f32 0.0, %v2188
    %v2190 = vpop.f32.mrb[0].mxu0
    %v2191 = vpop.f32.mrb[0].mxu0
    %v2192 = vadd.f32 0.0, %v2191
    %v2193 = vpop.f32.mrb[0].mxu0
    %2194 = vmatprep.mubr.bf16.mxu0 0
    %2195 = vmatmul.mubr.bf16.gmra.mrb[0].mxu0 %v2086
    %v2196 = vpop.f32.mrb[0].mxu0
    %v2197 = vadd.f32 0.0, %v2196
    %v2198 = vpop.f32.mrb[0].mxu0
    %v2199 = vpop.f32.mrb[0].mxu0
    %v2200 = vadd.f32 0.0, %v2199
    %v2201 = vpop.f32.mrb[0].mxu0
    %2202 = vmatprep.mubr.bf16.mxu0 0
    %2203 = vmatmul.mubr.bf16.gmra.mrb[0].mxu0 %v2087
    %v2204 = vpop.f32.mrb[0].mxu0
    %v2205 = vadd.f32 0.0, %v2204
    %v2206 = vpop.f32.mrb[0].mxu0
    %v2207 = vpop.f32.mrb[0].mxu0
    %v2208 = vadd.f32 0.0, %v2207
    %v2209 = vpop.f32.mrb[0].mxu0
    %2210 = vmatprep.mubr.bf16.mxu0 0
    %2211 = vmatmul.mubr.bf16.gmra.mrb[0].mxu0 %v2088
    %v2212 = vpop.f32.mrb[0].mxu0
    %v2213 = vadd.f32 0.0, %v2212
    %v2214 = vpop.f32.mrb[0].mxu0
    %v2215 = vpop.f32.mrb[0].mxu0
    %v2216 = vadd.f32 0.0, %v2215
    %v2217 = vpop.f32.mrb[0].mxu0
    %2218 = vdwg.mxu0
    %v2219 = vadd.f32 %v1957, %v2189
    %v2220 = vadd.f32 %v1960, %v2192
    %v2221 = vadd.f32 %v1965, %v2197
    %v2222 = vadd.f32 %v1968, %v2200
    %v2223 = vadd.f32 %v1973, %v2205
    %v2224 = vadd.f32 %v1976, %v2208
    %v2225 = vadd.f32 %v1981, %v2213
    %v2226 = vadd.f32 %v1984, %v2216
    %v2227 = vld [vmem:[%s7] sm:$0x1]
    %v2229 = vlaneseq
    %v2230 = vshrl.u32 %v2229, 7
    %v2231 = vsub.s32 0, %v2230
    %v2232 = vrot.slane %v2227, %v2231
    %v2234 = vadd.f32 %v2219, %v2232
    %v2235 = vadd.f32 %v2220, %v2232
    %v2236 = vadd.f32 %v2221, %v2232
    %v2237 = vadd.f32 %v2222, %v2232
    %v2238 = vadd.f32 %v2223, %v2232
    %v2239 = vadd.f32 %v2224, %v2232
    %v2240 = vadd.f32 %v2225, %v2232
    %v2241 = vadd.f32 %v2226, %v2232
    %v2242 = vmul.f32 %v2234, 0.5
    %v2243 = vmul.f32 %v2235, 0.5
    %v2244 = vmul.f32 %v2236, 0.5
    %v2245 = vmul.f32 %v2237, 0.5
    %v2246 = vmul.f32 %v2238, 0.5
    %v2247 = vmul.f32 %v2239, 0.5
    %v2248 = vmul.f32 %v2240, 0.5
    %v2249 = vmul.f32 %v2241, 0.5
    %v2250 = vmul.f32 %v2234, 0.044715
    %v2251 = vmul.f32 %v2235, 0.044715
    %v2252 = vmul.f32 %v2236, 0.044715
    %v2253 = vmul.f32 %v2237, 0.044715
    %v2254 = vmul.f32 %v2238, 0.044715
    %v2255 = vmul.f32 %v2239, 0.044715
    %v2256 = vmul.f32 %v2240, 0.044715
    %v2257 = vmul.f32 %v2241, 0.044715
    %v2258 = vmul.f32 %v2250, %v2234
    %v2259 = vmul.f32 %v2251, %v2235
    %v2260 = vmul.f32 %v2252, %v2236
    %v2261 = vmul.f32 %v2253, %v2237
    %v2262 = vmul.f32 %v2254, %v2238
    %v2263 = vmul.f32 %v2255, %v2239
    %v2264 = vmul.f32 %v2256, %v2240
    %v2265 = vmul.f32 %v2257, %v2241
    %v2266 = vmul.f32 %v2258, %v2234
    %v2267 = vmul.f32 %v2259, %v2235
    %v2268 = vmul.f32 %v2260, %v2236
    %v2269 = vmul.f32 %v2261, %v2237
    %v2270 = vmul.f32 %v2262, %v2238
    %v2271 = vmul.f32 %v2263, %v2239
    %v2272 = vmul.f32 %v2264, %v2240
    %v2273 = vmul.f32 %v2265, %v2241
    %v2274 = vadd.f32 %v2234, %v2266
    %v2275 = vadd.f32 %v2235, %v2267
    %v2276 = vadd.f32 %v2236, %v2268
    %v2277 = vadd.f32 %v2237, %v2269
    %v2278 = vadd.f32 %v2238, %v2270
    %v2279 = vadd.f32 %v2239, %v2271
    %v2280 = vadd.f32 %v2240, %v2272
    %v2281 = vadd.f32 %v2241, %v2273
    %v2282 = vmul.f32 %v2274, 0.7978846
    %v2283 = vmul.f32 %v2275, 0.7978846
    %v2284 = vmul.f32 %v2276, 0.7978846
    %v2285 = vmul.f32 %v2277, 0.7978846
    %v2286 = vmul.f32 %v2278, 0.7978846
    %v2287 = vmul.f32 %v2279, 0.7978846
    %v2288 = vmul.f32 %v2280, 0.7978846
    %v2289 = vmul.f32 %v2281, 0.7978846
    %v2290 = vtanh.pop %v2282
    %v2291 = vtanh.pop %v2283
    %v2292 = vtanh.pop %v2284
    %v2293 = vtanh.pop %v2285
    %v2294 = vtanh.pop %v2286
    %v2295 = vtanh.pop %v2287
    %v2296 = vtanh.pop %v2288
    %v2297 = vtanh.pop %v2289
    %v2298 = vadd.f32 %v2290, 1.0
    %v2299 = vadd.f32 %v2291, 1.0
    %v2300 = vadd.f32 %v2292, 1.0
    %v2301 = vadd.f32 %v2293, 1.0
    %v2302 = vadd.f32 %v2294, 1.0
    %v2303 = vadd.f32 %v2295, 1.0
    %v2304 = vadd.f32 %v2296, 1.0
    %v2305 = vadd.f32 %v2297, 1.0
    %v2306 = vmul.f32 %v2242, %v2298
    %v2307 = vmul.f32 %v2243, %v2299
    %v2308 = vmul.f32 %v2244, %v2300
    %v2309 = vmul.f32 %v2245, %v2301
    %v2310 = vmul.f32 %v2246, %v2302
    %v2311 = vmul.f32 %v2247, %v2303
    %v2312 = vmul.f32 %v2248, %v2304
    %v2313 = vmul.f32 %v2249, %v2305
    %v2314 = vld [vmem:[#allocation14] sm:$0xff]
    %v2315 = vld [vmem:[#allocation14 + $0x8] sm:$0xff]
    %v2316 = vld [vmem:[#allocation14 + $0x10] sm:$0xff]
    %v2317 = vld [vmem:[#allocation14 + $0x18] sm:$0xff]
    %v2318 = vld [vmem:[#allocation14 + $0x20] sm:$0xff]
    %v2319 = vld [vmem:[#allocation14 + $0x28] sm:$0xff]
    %v2320 = vld [vmem:[#allocation14 + $0x30] sm:$0xff]
    %v2321 = vld [vmem:[#allocation14 + $0x38] sm:$0xff]
    %v2322 = vadd.f32 %v2306, %v2314
    %v2323 = vadd.f32 %v2307, %v2315
    %v2324 = vadd.f32 %v2308, %v2316
    %v2325 = vadd.f32 %v2309, %v2317
    %v2326 = vadd.f32 %v2310, %v2318
    %v2327 = vadd.f32 %v2311, %v2319
    %v2328 = vadd.f32 %v2312, %v2320
    %v2329 = vadd.f32 %v2313, %v2321
    %vm2330 = vcmp.ge.s32.totalorder %v519, 0
    %vm2331 = vcmp.ge.s32.totalorder %v520, 0
    %vm2332 = vcmp.ge.s32.totalorder %v521, 0
    %vm2333 = vcmp.ge.s32.totalorder %v522, 0
    %vm2334 = vcmp.ge.s32.totalorder %v523, 0
    %vm2335 = vcmp.ge.s32.totalorder %v524, 0
    %vm2336 = vcmp.ge.s32.totalorder %v525, 0
    %vm2337 = vcmp.ge.s32.totalorder %v526, 0
    %vm2338 = vcmp.lt.s32.totalorder %v519, 32
    %vm2339 = vcmp.lt.s32.totalorder %v520, 32
    %vm2340 = vcmp.lt.s32.totalorder %v521, 32
    %vm2341 = vcmp.lt.s32.totalorder %v522, 32
    %vm2342 = vcmp.lt.s32.totalorder %v523, 32
    %vm2343 = vcmp.lt.s32.totalorder %v524, 32
    %vm2344 = vcmp.lt.s32.totalorder %v525, 32
    %vm2345 = vcmp.lt.s32.totalorder %v526, 32
    %vm2346 = vmand %vm2330, %vm2338
    %vm2347 = vmand %vm2331, %vm2339
    %vm2348 = vmand %vm2332, %vm2340
    %vm2349 = vmand %vm2333, %vm2341
    %vm2350 = vmand %vm2334, %vm2342
    %vm2351 = vmand %vm2335, %vm2343
    %vm2352 = vmand %vm2336, %vm2344
    %vm2353 = vmand %vm2337, %vm2345
    %vm2354 = vcmp.ge.s32.totalorder %v258, 0
    %vm2355 = vmand %vm2354, %vm259
    %vm2356 = vmand %vm2346, %vm2355
    %vm2357 = vmand %vm2347, %vm2355
    %vm2358 = vmand %vm2348, %vm2355
    %vm2359 = vmand %vm2349, %vm2355
    %vm2360 = vmand %vm2350, %vm2355
    %vm2361 = vmand %vm2351, %vm2355
    %vm2362 = vmand %vm2352, %vm2355
    %vm2363 = vmand %vm2353, %vm2355
    %vm2364 = vcmp.ge.s32.totalorder %v519, 32
    %vm2365 = vcmp.ge.s32.totalorder %v520, 32
    %vm2366 = vcmp.ge.s32.totalorder %v521, 32
    %vm2367 = vcmp.ge.s32.totalorder %v522, 32
    %vm2368 = vcmp.ge.s32.totalorder %v523, 32
    %vm2369 = vcmp.ge.s32.totalorder %v524, 32
    %vm2370 = vcmp.ge.s32.totalorder %v525, 32
    %vm2371 = vcmp.ge.s32.totalorder %v526, 32
    %vm2372 = vcmp.lt.s32.totalorder %v519, 64
    %vm2373 = vcmp.lt.s32.totalorder %v520, 64
    %vm2374 = vcmp.lt.s32.totalorder %v521, 64
    %vm2375 = vcmp.lt.s32.totalorder %v522, 64
    %vm2376 = vcmp.lt.s32.totalorder %v523, 64
    %vm2377 = vcmp.lt.s32.totalorder %v524, 64
    %vm2378 = vcmp.lt.s32.totalorder %v525, 64
    %vm2379 = vcmp.lt.s32.totalorder %v526, 64
    %vm2380 = vmand %vm2364, %vm2372
    %vm2381 = vmand %vm2365, %vm2373
    %vm2382 = vmand %vm2366, %vm2374
    %vm2383 = vmand %vm2367, %vm2375
    %vm2384 = vmand %vm2368, %vm2376
    %vm2385 = vmand %vm2369, %vm2377
    %vm2386 = vmand %vm2370, %vm2378
    %vm2387 = vmand %vm2371, %vm2379
    %vm2388 = vcmp.ge.s32.totalorder %v258, 32
    %vm2389 = vcmp.lt.s32.totalorder %v258, 64
    %vm2390 = vmand %vm2388, %vm2389
    %vm2391 = vmand %vm2380, %vm2390
    %vm2392 = vmand %vm2381, %vm2390
    %vm2393 = vmand %vm2382, %vm2390
    %vm2394 = vmand %vm2383, %vm2390
    %vm2395 = vmand %vm2384, %vm2390
    %vm2396 = vmand %vm2385, %vm2390
    %vm2397 = vmand %vm2386, %vm2390
    %vm2398 = vmand %vm2387, %vm2390
    %vm2399 = vmor %vm2356, %vm2391
    %vm2400 = vmor %vm2357, %vm2392
    %vm2401 = vmor %vm2358, %vm2393
    %vm2402 = vmor %vm2359, %vm2394
    %vm2403 = vmor %vm2360, %vm2395
    %vm2404 = vmor %vm2361, %vm2396
    %vm2405 = vmor %vm2362, %vm2397
    %vm2406 = vmor %vm2363, %vm2398
    %v2407 = vsel %vm2399, 0.0, -1e+30
    %v2408 = vsel %vm2400, 0.0, -1e+30
    %v2409 = vsel %vm2401, 0.0, -1e+30
    %v2410 = vsel %vm2402, 0.0, -1e+30
    %v2411 = vsel %vm2403, 0.0, -1e+30
    %v2412 = vsel %vm2404, 0.0, -1e+30
    %v2413 = vsel %vm2405, 0.0, -1e+30
    %v2414 = vsel %vm2406, 0.0, -1e+30
    loop: start=0, step=1, limit=2
    $region158: #{tpu_custom_call.1} parent=1 // loop_pre_header
      _
    $region159: #{tpu_custom_call.1} parent=1 // loop_header
      %s2416 = sphi 0, %s2420
      %p2417 = scmp.ge.s32.totalorder %s2416, 2
      %v2421 = vphi %v2322, %v4870
      %v2422 = vphi %v2323, %v4871
      %v2423 = vphi %v2324, %v4872
      %v2424 = vphi %v2325, %v4873
      %v2425 = vphi %v2326, %v4874
      %v2426 = vphi %v2327, %v4875
      %v2427 = vphi %v2328, %v4876
      %v2428 = vphi %v2329, %v4877
    $region160: #{tpu_custom_call.1} parent=1 // loop_header_branch
      %2419 = sbr.rel (%p2417) target = $region164
    $region161: #{tpu_custom_call.1} parent=1 // loop_body
      %s2429 = scalar_lea.vmem %s9, %s2416
      %v2430 = vld [vmem:[%s2429] sm:$0x1]
      %s2431 = scalar_lea.vmem %s10, %s2416
      %v2432 = vld [vmem:[%s2431] sm:$0x1]
      %v2433 = vmul.f32 %v2421, %v261
      %v2434 = vmul.f32 %v2422, %v261
      %v2435 = vmul.f32 %v2423, %v261
      %v2436 = vmul.f32 %v2424, %v261
      %v2437 = vmul.f32 %v2425, %v261
      %v2438 = vmul.f32 %v2426, %v261
      %v2439 = vmul.f32 %v2427, %v261
      %v2440 = vmul.f32 %v2428, %v261
      %2441 = vadd.xlane.f32.xlu0 %v2433
      %v2442 = vpop.xlane.xlu0 %2441
      %2443 = vadd.xlane.f32.xlu0 %v2434
      %v2444 = vpop.xlane.xlu0 %2443
      %2445 = vadd.xlane.f32.xlu0 %v2435
      %v2446 = vpop.xlane.xlu0 %2445
      %2447 = vadd.xlane.f32.xlu0 %v2436
      %v2448 = vpop.xlane.xlu0 %2447
      %2449 = vadd.xlane.f32.xlu0 %v2437
      %v2450 = vpop.xlane.xlu0 %2449
      %2451 = vadd.xlane.f32.xlu0 %v2438
      %v2452 = vpop.xlane.xlu0 %2451
      %2453 = vadd.xlane.f32.xlu0 %v2439
      %v2454 = vpop.xlane.xlu0 %2453
      %2455 = vadd.xlane.f32.xlu0 %v2440
      %v2456 = vpop.xlane.xlu0 %2455
      %v2457 = vmul.f32 %v2442, 0.03125
      %v2458 = vmul.f32 %v2444, 0.03125
      %v2459 = vmul.f32 %v2446, 0.03125
      %v2460 = vmul.f32 %v2448, 0.03125
      %v2461 = vmul.f32 %v2450, 0.03125
      %v2462 = vmul.f32 %v2452, 0.03125
      %v2463 = vmul.f32 %v2454, 0.03125
      %v2464 = vmul.f32 %v2456, 0.03125
      %v2465 = vsub.f32 %v2421, %v2457
      %v2466 = vsub.f32 %v2422, %v2458
      %v2467 = vsub.f32 %v2423, %v2459
      %v2468 = vsub.f32 %v2424, %v2460
      %v2469 = vsub.f32 %v2425, %v2461
      %v2470 = vsub.f32 %v2426, %v2462
      %v2471 = vsub.f32 %v2427, %v2463
      %v2472 = vsub.f32 %v2428, %v2464
      %v2473 = vmul.f32 %v2465, %v261
      %v2474 = vmul.f32 %v2466, %v261
      %v2475 = vmul.f32 %v2467, %v261
      %v2476 = vmul.f32 %v2468, %v261
      %v2477 = vmul.f32 %v2469, %v261
      %v2478 = vmul.f32 %v2470, %v261
      %v2479 = vmul.f32 %v2471, %v261
      %v2480 = vmul.f32 %v2472, %v261
      %v2481 = vmul.f32 %v2473, %v2473
      %v2482 = vmul.f32 %v2474, %v2474
      %v2483 = vmul.f32 %v2475, %v2475
      %v2484 = vmul.f32 %v2476, %v2476
      %v2485 = vmul.f32 %v2477, %v2477
      %v2486 = vmul.f32 %v2478, %v2478
      %v2487 = vmul.f32 %v2479, %v2479
      %v2488 = vmul.f32 %v2480, %v2480
      %2489 = vadd.xlane.f32.xlu0 %v2481
      %v2490 = vpop.xlane.xlu0 %2489
      %2491 = vadd.xlane.f32.xlu0 %v2482
      %v2492 = vpop.xlane.xlu0 %2491
      %2493 = vadd.xlane.f32.xlu0 %v2483
      %v2494 = vpop.xlane.xlu0 %2493
      %2495 = vadd.xlane.f32.xlu0 %v2484
      %v2496 = vpop.xlane.xlu0 %2495
      %2497 = vadd.xlane.f32.xlu0 %v2485
      %v2498 = vpop.xlane.xlu0 %2497
      %2499 = vadd.xlane.f32.xlu0 %v2486
      %v2500 = vpop.xlane.xlu0 %2499
      %2501 = vadd.xlane.f32.xlu0 %v2487
      %v2502 = vpop.xlane.xlu0 %2501
      %2503 = vadd.xlane.f32.xlu0 %v2488
      %v2504 = vpop.xlane.xlu0 %2503
      %v2505 = vmul.f32 %v2490, 0.03125
      %v2506 = vmul.f32 %v2492, 0.03125
      %v2507 = vmul.f32 %v2494, 0.03125
      %v2508 = vmul.f32 %v2496, 0.03125
      %v2509 = vmul.f32 %v2498, 0.03125
      %v2510 = vmul.f32 %v2500, 0.03125
      %v2511 = vmul.f32 %v2502, 0.03125
      %v2512 = vmul.f32 %v2504, 0.03125
      %v2513 = vadd.f32 %v2505, 1e-05
      %v2514 = vadd.f32 %v2506, 1e-05
      %v2515 = vadd.f32 %v2507, 1e-05
      %v2516 = vadd.f32 %v2508, 1e-05
      %v2517 = vadd.f32 %v2509, 1e-05
      %v2518 = vadd.f32 %v2510, 1e-05
      %v2519 = vadd.f32 %v2511, 1e-05
      %v2520 = vadd.f32 %v2512, 1e-05
      %v2521 = vrsqrt.pop %v2513
      %v2522 = vrsqrt.pop %v2514
      %v2523 = vrsqrt.pop %v2515
      %v2524 = vrsqrt.pop %v2516
      %v2525 = vrsqrt.pop %v2517
      %v2526 = vrsqrt.pop %v2518
      %v2527 = vrsqrt.pop %v2519
      %v2528 = vrsqrt.pop %v2520
      %v2529 = vmul.f32 %v2473, %v2521
      %v2530 = vmul.f32 %v2474, %v2522
      %v2531 = vmul.f32 %v2475, %v2523
      %v2532 = vmul.f32 %v2476, %v2524
      %v2533 = vmul.f32 %v2477, %v2525
      %v2534 = vmul.f32 %v2478, %v2526
      %v2535 = vmul.f32 %v2479, %v2527
      %v2536 = vmul.f32 %v2480, %v2528
      %v2538 = vlaneseq
      %v2539 = vshrl.u32 %v2538, 7
      %v2540 = vsub.s32 0, %v2539
      %v2541 = vrot.slane %v2430, %v2540
      %v2543 = vmul.f32 %v2529, %v2541
      %v2544 = vmul.f32 %v2530, %v2541
      %v2545 = vmul.f32 %v2531, %v2541
      %v2546 = vmul.f32 %v2532, %v2541
      %v2547 = vmul.f32 %v2533, %v2541
      %v2548 = vmul.f32 %v2534, %v2541
      %v2549 = vmul.f32 %v2535, %v2541
      %v2550 = vmul.f32 %v2536, %v2541
      %v2552 = vlaneseq
      %v2553 = vshrl.u32 %v2552, 7
      %v2554 = vsub.s32 0, %v2553
      %v2555 = vrot.slane %v2432, %v2554
      %v2557 = vadd.f32 %v2543, %v2555
      %v2558 = vadd.f32 %v2544, %v2555
      %v2559 = vadd.f32 %v2545, %v2555
      %v2560 = vadd.f32 %v2546, %v2555
      %v2561 = vadd.f32 %v2547, %v2555
      %v2562 = vadd.f32 %v2548, %v2555
      %v2563 = vadd.f32 %v2549, %v2555
      %v2564 = vadd.f32 %v2550, %v2555
      %v2565 = vpack.c.bf16 %v2558, %v2557
      %v2566 = vpack.c.bf16 %v2560, %v2559
      %v2567 = vpack.c.bf16 %v2562, %v2561
      %v2568 = vpack.c.bf16 %v2564, %v2563
      %s2569 = smul.u32 %s2416, 16
      %s2570 = smul.addr %s2569, 4
      %s2571 = scalar_lea.vmem [#allocation16], %s2570
      %v2572 = vld [vmem:[%s2571] sm:$0xf]
      %v2573 = vld [vmem:[%s2571 + $0x4] sm:$0xf]
      %v2574 = vld [vmem:[%s2571 + $0x8] sm:$0xf]
      %v2575 = vld [vmem:[%s2571 + $0xc] sm:$0xf]
      %v2576 = vld [vmem:[%s2571 + $0x10] sm:$0xf]
      %v2577 = vld [vmem:[%s2571 + $0x14] sm:$0xf]
      %v2578 = vld [vmem:[%s2571 + $0x18] sm:$0xf]
      %v2579 = vld [vmem:[%s2571 + $0x1c] sm:$0xf]
      %v2580 = vld [vmem:[%s2571 + $0x20] sm:$0xf]
      %v2581 = vld [vmem:[%s2571 + $0x24] sm:$0xf]
      %v2582 = vld [vmem:[%s2571 + $0x28] sm:$0xf]
      %v2583 = vld [vmem:[%s2571 + $0x2c] sm:$0xf]
      %v2584 = vld [vmem:[%s2571 + $0x30] sm:$0xf]
      %v2585 = vld [vmem:[%s2571 + $0x34] sm:$0xf]
      %v2586 = vld [vmem:[%s2571 + $0x38] sm:$0xf]
      %v2587 = vld [vmem:[%s2571 + $0x3c] sm:$0xf]
      %s2588 = scalar_lea.vmem %s12, %s2416
      %v2589 = vld [vmem:[%s2588] sm:$0x1]
      %v2591 = vlaneseq
      %v2592 = vshrl.u32 %v2591, 7
      %v2593 = vsub.s32 0, %v2592
      %v2594 = vrot.slane %v2589, %v2593
      %v2612 = vunpack.c.l.b16 %v2572
      %v2613 = vunpack.c.l.b16 %v2573
      %v2614 = vunpack.c.l.b16 %v2574
      %v2615 = vunpack.c.l.b16 %v2575
      %v2616 = vunpack.c.l.b16 %v2576
      %v2617 = vunpack.c.l.b16 %v2577
      %v2618 = vunpack.c.l.b16 %v2578
      %v2619 = vunpack.c.l.b16 %v2579
      %v2620 = vunpack.c.l.b16 %v2580
      %v2621 = vunpack.c.l.b16 %v2581
      %v2622 = vunpack.c.l.b16 %v2582
      %v2623 = vunpack.c.l.b16 %v2583
      %v2624 = vunpack.c.l.b16 %v2584
      %v2625 = vunpack.c.l.b16 %v2585
      %v2626 = vunpack.c.l.b16 %v2586
      %v2627 = vunpack.c.l.b16 %v2587
      %v2628 = vpack.c.b16 %v2613, %v2612
      %v2629 = vpack.c.b16 %v2615, %v2614
      %v2630 = vpack.c.b16 %v2617, %v2616
      %v2631 = vpack.c.b16 %v2619, %v2618
      %v2632 = vpack.c.b16 %v2621, %v2620
      %v2633 = vpack.c.b16 %v2623, %v2622
      %v2634 = vpack.c.b16 %v2625, %v2624
      %v2635 = vpack.c.b16 %v2627, %v2626
      %2644 = vmatprep.subr.bf16.mxu0 0
      %2645 = vmatpush1.bf16.msra.mxu0 %v2628
      %2646 = vmatprep.subr.bf16.mxu0 0
      %2647 = vmatpush1.bf16.msra.mxu0 %v2629
      %2648 = vmatprep.subr.bf16.mxu0 0
      %2649 = vmatpush1.bf16.msra.mxu0 %v2630
      %2650 = vmatprep.subr.bf16.mxu0 0
      %2651 = vmatpush1.bf16.msra.mxu0 %v2631
      %2652 = vmatprep.subr.bf16.mxu0 0
      %2653 = vmatpush1.bf16.msra.mxu0 %v2632
      %2654 = vmatprep.subr.bf16.mxu0 0
      %2655 = vmatpush1.bf16.msra.mxu0 %v2633
      %2656 = vmatprep.subr.bf16.mxu0 0
      %2657 = vmatpush1.bf16.msra.mxu0 %v2634
      %2658 = vmatprep.subr.bf16.mxu0 0
      %2659 = vmatpush1.bf16.msra.mxu0 %v2635
      %2660 = vmatprep.subr.bf16.mxu0 0
      %2661 = vmatpush1.bf16.msra.mxu0 0
      %2662 = vmatprep.subr.bf16.mxu0 0
      %2663 = vmatpush1.bf16.msra.mxu0 0
      %2664 = vmatprep.subr.bf16.mxu0 0
      %2665 = vmatpush1.bf16.msra.mxu0 0
      %2666 = vmatprep.subr.bf16.mxu0 0
      %2667 = vmatpush1.bf16.msra.mxu0 0
      %2668 = vmatprep.subr.bf16.mxu0 0
      %2669 = vmatpush1.bf16.msra.mxu0 0
      %2670 = vmatprep.subr.bf16.mxu0 0
      %2671 = vmatpush1.bf16.msra.mxu0 0
      %2672 = vmatprep.subr.bf16.mxu0 0
      %2673 = vmatpush1.bf16.msra.mxu0 0
      %2674 = vmatprep.subr.bf16.mxu0 0
      %2675 = vmatpush1.bf16.msra.mxu0 0
      %2676 = vmatprep.mubr.bf16.mxu0 0
      %2677 = vmatmul.mubr.bf16.gmra.mrb[0].mxu0 %v2565
      %v2678 = vpop.f32.mrb[0].mxu0
      %v2679 = vadd.f32 %v2594, %v2678
      %v2680 = vpop.f32.mrb[0].mxu0
      %v2681 = vpop.f32.mrb[0].mxu0
      %v2682 = vadd.f32 %v2594, %v2681
      %v2683 = vpop.f32.mrb[0].mxu0
      %2684 = vmatprep.mubr.bf16.mxu0 0
      %2685 = vmatmul.mubr.bf16.gmra.mrb[0].mxu0 %v2566
      %v2686 = vpop.f32.mrb[0].mxu0
      %v2687 = vadd.f32 %v2594, %v2686
      %v2688 = vpop.f32.mrb[0].mxu0
      %v2689 = vpop.f32.mrb[0].mxu0
      %v2690 = vadd.f32 %v2594, %v2689
      %v2691 = vpop.f32.mrb[0].mxu0
      %2692 = vmatprep.mubr.bf16.mxu0 0
      %2693 = vmatmul.mubr.bf16.gmra.mrb[0].mxu0 %v2567
      %v2694 = vpop.f32.mrb[0].mxu0
      %v2695 = vadd.f32 %v2594, %v2694
      %v2696 = vpop.f32.mrb[0].mxu0
      %v2697 = vpop.f32.mrb[0].mxu0
      %v2698 = vadd.f32 %v2594, %v2697
      %v2699 = vpop.f32.mrb[0].mxu0
      %2700 = vmatprep.mubr.bf16.mxu0 0
      %2701 = vmatmul.mubr.bf16.gmra.mrb[0].mxu0 %v2568
      %v2702 = vpop.f32.mrb[0].mxu0
      %v2703 = vadd.f32 %v2594, %v2702
      %v2704 = vpop.f32.mrb[0].mxu0
      %v2705 = vpop.f32.mrb[0].mxu0
      %v2706 = vadd.f32 %v2594, %v2705
      %v2707 = vpop.f32.mrb[0].mxu0
      %2708 = vdwg.mxu0
      %v2709 = vpack.c.bf16 %v2682, %v2679
      %v2710 = vpack.c.bf16 %v2690, %v2687
      %v2711 = vpack.c.bf16 %v2698, %v2695
      %v2712 = vpack.c.bf16 %v2706, %v2703
      %s2713 = smul.addr %s2569, 4
      %s2714 = scalar_lea.vmem [#allocation17], %s2713
      %v2715 = vld [vmem:[%s2714] sm:$0xf]
      %v2716 = vld [vmem:[%s2714 + $0x4] sm:$0xf]
      %v2717 = vld [vmem:[%s2714 + $0x8] sm:$0xf]
      %v2718 = vld [vmem:[%s2714 + $0xc] sm:$0xf]
      %v2719 = vld [vmem:[%s2714 + $0x10] sm:$0xf]
      %v2720 = vld [vmem:[%s2714 + $0x14] sm:$0xf]
      %v2721 = vld [vmem:[%s2714 + $0x18] sm:$0xf]
      %v2722 = vld [vmem:[%s2714 + $0x1c] sm:$0xf]
      %v2723 = vld [vmem:[%s2714 + $0x20] sm:$0xf]
      %v2724 = vld [vmem:[%s2714 + $0x24] sm:$0xf]
      %v2725 = vld [vmem:[%s2714 + $0x28] sm:$0xf]
      %v2726 = vld [vmem:[%s2714 + $0x2c] sm:$0xf]
      %v2727 = vld [vmem:[%s2714 + $0x30] sm:$0xf]
      %v2728 = vld [vmem:[%s2714 + $0x34] sm:$0xf]
      %v2729 = vld [vmem:[%s2714 + $0x38] sm:$0xf]
      %v2730 = vld [vmem:[%s2714 + $0x3c] sm:$0xf]
      %v2747 = vunpack.c.l.b16 %v2715
      %v2748 = vunpack.c.l.b16 %v2716
      %v2749 = vunpack.c.l.b16 %v2717
      %v2750 = vunpack.c.l.b16 %v2718
      %v2751 = vunpack.c.l.b16 %v2719
      %v2752 = vunpack.c.l.b16 %v2720
      %v2753 = vunpack.c.l.b16 %v2721
      %v2754 = vunpack.c.l.b16 %v2722
      %v2755 = vunpack.c.l.b16 %v2723
      %v2756 = vunpack.c.l.b16 %v2724
      %v2757 = vunpack.c.l.b16 %v2725
      %v2758 = vunpack.c.l.b16 %v2726
      %v2759 = vunpack.c.l.b16 %v2727
      %v2760 = vunpack.c.l.b16 %v2728
      %v2761 = vunpack.c.l.b16 %v2729
      %v2762 = vunpack.c.l.b16 %v2730
      %v2763 = vpack.c.b16 %v2748, %v2747
      %v2764 = vpack.c.b16 %v2750, %v2749
      %v2765 = vpack.c.b16 %v2752, %v2751
      %v2766 = vpack.c.b16 %v2754, %v2753
      %v2767 = vpack.c.b16 %v2756, %v2755
      %v2768 = vpack.c.b16 %v2758, %v2757
      %v2769 = vpack.c.b16 %v2760, %v2759
      %v2770 = vpack.c.b16 %v2762, %v2761
      %2779 = vmatprep.subr.bf16.mxu0 0
      %2780 = vmatpush1.bf16.msra.mxu0 %v2763
      %2781 = vmatprep.subr.bf16.mxu0 0
      %2782 = vmatpush1.bf16.msra.mxu0 %v2764
      %2783 = vmatprep.subr.bf16.mxu0 0
      %2784 = vmatpush1.bf16.msra.mxu0 %v2765
      %2785 = vmatprep.subr.bf16.mxu0 0
      %2786 = vmatpush1.bf16.msra.mxu0 %v2766
      %2787 = vmatprep.subr.bf16.mxu0 0
      %2788 = vmatpush1.bf16.msra.mxu0 %v2767
      %2789 = vmatprep.subr.bf16.mxu0 0
      %2790 = vmatpush1.bf16.msra.mxu0 %v2768
      %2791 = vmatprep.subr.bf16.mxu0 0
      %2792 = vmatpush1.bf16.msra.mxu0 %v2769
      %2793 = vmatprep.subr.bf16.mxu0 0
      %2794 = vmatpush1.bf16.msra.mxu0 %v2770
      %2795 = vmatprep.subr.bf16.mxu0 0
      %2796 = vmatpush1.bf16.msra.mxu0 0
      %2797 = vmatprep.subr.bf16.mxu0 0
      %2798 = vmatpush1.bf16.msra.mxu0 0
      %2799 = vmatprep.subr.bf16.mxu0 0
      %2800 = vmatpush1.bf16.msra.mxu0 0
      %2801 = vmatprep.subr.bf16.mxu0 0
      %2802 = vmatpush1.bf16.msra.mxu0 0
      %2803 = vmatprep.subr.bf16.mxu0 0
      %2804 = vmatpush1.bf16.msra.mxu0 0
      %2805 = vmatprep.subr.bf16.mxu0 0
      %2806 = vmatpush1.bf16.msra.mxu0 0
      %2807 = vmatprep.subr.bf16.mxu0 0
      %2808 = vmatpush1.bf16.msra.mxu0 0
      %2809 = vmatprep.subr.bf16.mxu0 0
      %2810 = vmatpush1.bf16.msra.mxu0 0
      %2811 = vmatprep.mubr.bf16.mxu0 0
      %2812 = vmatmul.mubr.bf16.gmra.mrb[0].mxu0 %v2565
      %v2813 = vpop.f32.mrb[0].mxu0
      %v2814 = vadd.f32 0.0, %v2813
      %v2815 = vpop.f32.mrb[0].mxu0
      %v2816 = vpop.f32.mrb[0].mxu0
      %v2817 = vadd.f32 0.0, %v2816
      %v2818 = vpop.f32.mrb[0].mxu0
      %2819 = vmatprep.mubr.bf16.mxu0 0
      %2820 = vmatmul.mubr.bf16.gmra.mrb[0].mxu0 %v2566
      %v2821 = vpop.f32.mrb[0].mxu0
      %v2822 = vadd.f32 0.0, %v2821
      %v2823 = vpop.f32.mrb[0].mxu0
      %v2824 = vpop.f32.mrb[0].mxu0
      %v2825 = vadd.f32 0.0, %v2824
      %v2826 = vpop.f32.mrb[0].mxu0
      %2827 = vmatprep.mubr.bf16.mxu0 0
      %2828 = vmatmul.mubr.bf16.gmra.mrb[0].mxu0 %v2567
      %v2829 = vpop.f32.mrb[0].mxu0
      %v2830 = vadd.f32 0.0, %v2829
      %v2831 = vpop.f32.mrb[0].mxu0
      %v2832 = vpop.f32.mrb[0].mxu0
      %v2833 = vadd.f32 0.0, %v2832
      %v2834 = vpop.f32.mrb[0].mxu0
      %2835 = vmatprep.mubr.bf16.mxu0 0
      %2836 = vmatmul.mubr.bf16.gmra.mrb[0].mxu0 %v2568
      %v2837 = vpop.f32.mrb[0].mxu0
      %v2838 = vadd.f32 0.0, %v2837
      %v2839 = vpop.f32.mrb[0].mxu0
      %v2840 = vpop.f32.mrb[0].mxu0
      %v2841 = vadd.f32 0.0, %v2840
      %v2842 = vpop.f32.mrb[0].mxu0
      %2843 = vdwg.mxu0
      %v2844 = vpack.c.bf16 %v2817, %v2814
      %v2845 = vpack.c.bf16 %v2825, %v2822
      %v2846 = vpack.c.bf16 %v2833, %v2830
      %v2847 = vpack.c.bf16 %v2841, %v2838
      %s2848 = smul.addr %s2569, 4
      %s2849 = scalar_lea.vmem [#allocation19], %s2848
      %v2850 = vld [vmem:[%s2849] sm:$0xf]
      %v2851 = vld [vmem:[%s2849 + $0x4] sm:$0xf]
      %v2852 = vld [vmem:[%s2849 + $0x8] sm:$0xf]
      %v2853 = vld [vmem:[%s2849 + $0xc] sm:$0xf]
      %v2854 = vld [vmem:[%s2849 + $0x10] sm:$0xf]
      %v2855 = vld [vmem:[%s2849 + $0x14] sm:$0xf]
      %v2856 = vld [vmem:[%s2849 + $0x18] sm:$0xf]
      %v2857 = vld [vmem:[%s2849 + $0x1c] sm:$0xf]
      %v2858 = vld [vmem:[%s2849 + $0x20] sm:$0xf]
      %v2859 = vld [vmem:[%s2849 + $0x24] sm:$0xf]
      %v2860 = vld [vmem:[%s2849 + $0x28] sm:$0xf]
      %v2861 = vld [vmem:[%s2849 + $0x2c] sm:$0xf]
      %v2862 = vld [vmem:[%s2849 + $0x30] sm:$0xf]
      %v2863 = vld [vmem:[%s2849 + $0x34] sm:$0xf]
      %v2864 = vld [vmem:[%s2849 + $0x38] sm:$0xf]
      %v2865 = vld [vmem:[%s2849 + $0x3c] sm:$0xf]
      %s2866 = scalar_lea.vmem %s15, %s2416
      %v2867 = vld [vmem:[%s2866] sm:$0x1]
      %v2869 = vlaneseq
      %v2870 = vshrl.u32 %v2869, 7
      %v2871 = vsub.s32 0, %v2870
      %v2872 = vrot.slane %v2867, %v2871
      %v2890 = vunpack.c.l.b16 %v2850
      %v2891 = vunpack.c.l.b16 %v2851
      %v2892 = vunpack.c.l.b16 %v2852
      %v2893 = vunpack.c.l.b16 %v2853
      %v2894 = vunpack.c.l.b16 %v2854
      %v2895 = vunpack.c.l.b16 %v2855
      %v2896 = vunpack.c.l.b16 %v2856
      %v2897 = vunpack.c.l.b16 %v2857
      %v2898 = vunpack.c.l.b16 %v2858
      %v2899 = vunpack.c.l.b16 %v2859
      %v2900 = vunpack.c.l.b16 %v2860
      %v2901 = vunpack.c.l.b16 %v2861
      %v2902 = vunpack.c.l.b16 %v2862
      %v2903 = vunpack.c.l.b16 %v2863
      %v2904 = vunpack.c.l.b16 %v2864
      %v2905 = vunpack.c.l.b16 %v2865
      %v2906 = vpack.c.b16 %v2891, %v2890
      %v2907 = vpack.c.b16 %v2893, %v2892
      %v2908 = vpack.c.b16 %v2895, %v2894
      %v2909 = vpack.c.b16 %v2897, %v2896
      %v2910 = vpack.c.b16 %v2899, %v2898
      %v2911 = vpack.c.b16 %v2901, %v2900
      %v2912 = vpack.c.b16 %v2903, %v2902
      %v2913 = vpack.c.b16 %v2905, %v2904
      %2922 = vmatprep.subr.bf16.mxu0 0
      %2923 = vmatpush1.bf16.msra.mxu0 %v2906
      %2924 = vmatprep.subr.bf16.mxu0 0
      %2925 = vmatpush1.bf16.msra.mxu0 %v2907
      %2926 = vmatprep.subr.bf16.mxu0 0
      %2927 = vmatpush1.bf16.msra.mxu0 %v2908
      %2928 = vmatprep.subr.bf16.mxu0 0
      %2929 = vmatpush1.bf16.msra.mxu0 %v2909
      %2930 = vmatprep.subr.bf16.mxu0 0
      %2931 = vmatpush1.bf16.msra.mxu0 %v2910
      %2932 = vmatprep.subr.bf16.mxu0 0
      %2933 = vmatpush1.bf16.msra.mxu0 %v2911
      %2934 = vmatprep.subr.bf16.mxu0 0
      %2935 = vmatpush1.bf16.msra.mxu0 %v2912
      %2936 = vmatprep.subr.bf16.mxu0 0
      %2937 = vmatpush1.bf16.msra.mxu0 %v2913
      %2938 = vmatprep.subr.bf16.mxu0 0
      %2939 = vmatpush1.bf16.msra.mxu0 0
      %2940 = vmatprep.subr.bf16.mxu0 0
      %2941 = vmatpush1.bf16.msra.mxu0 0
      %2942 = vmatprep.subr.bf16.mxu0 0
      %2943 = vmatpush1.bf16.msra.mxu0 0
      %2944 = vmatprep.subr.bf16.mxu0 0
      %2945 = vmatpush1.bf16.msra.mxu0 0
      %2946 = vmatprep.subr.bf16.mxu0 0
      %2947 = vmatpush1.bf16.msra.mxu0 0
      %2948 = vmatprep.subr.bf16.mxu0 0
      %2949 = vmatpush1.bf16.msra.mxu0 0
      %2950 = vmatprep.subr.bf16.mxu0 0
      %2951 = vmatpush1.bf16.msra.mxu0 0
      %2952 = vmatprep.subr.bf16.mxu0 0
      %2953 = vmatpush1.bf16.msra.mxu0 0
      %2954 = vmatprep.mubr.bf16.mxu0 0
      %2955 = vmatmul.mubr.bf16.gmra.mrb[0].mxu0 %v2565
      %v2956 = vpop.f32.mrb[0].mxu0
      %v2957 = vadd.f32 %v2872, %v2956
      %v2958 = vpop.f32.mrb[0].mxu0
      %v2959 = vpop.f32.mrb[0].mxu0
      %v2960 = vadd.f32 %v2872, %v2959
      %v2961 = vpop.f32.mrb[0].mxu0
      %2962 = vmatprep.mubr.bf16.mxu0 0
      %2963 = vmatmul.mubr.bf16.gmra.mrb[0].mxu0 %v2566
      %v2964 = vpop.f32.mrb[0].mxu0
      %v2965 = vadd.f32 %v2872, %v2964
      %v2966 = vpop.f32.mrb[0].mxu0
      %v2967 = vpop.f32.mrb[0].mxu0
      %v2968 = vadd.f32 %v2872, %v2967
      %v2969 = vpop.f32.mrb[0].mxu0
      %2970 = vmatprep.mubr.bf16.mxu0 0
      %2971 = vmatmul.mubr.bf16.gmra.mrb[0].mxu0 %v2567
      %v2972 = vpop.f32.mrb[0].mxu0
      %v2973 = vadd.f32 %v2872, %v2972
      %v2974 = vpop.f32.mrb[0].mxu0
      %v2975 = vpop.f32.mrb[0].mxu0
      %v2976 = vadd.f32 %v2872, %v2975
      %v2977 = vpop.f32.mrb[0].mxu0
      %2978 = vmatprep.mubr.bf16.mxu0 0
      %2979 = vmatmul.mubr.bf16.gmra.mrb[0].mxu0 %v2568
      %v2980 = vpop.f32.mrb[0].mxu0
      %v2981 = vadd.f32 %v2872, %v2980
      %v2982 = vpop.f32.mrb[0].mxu0
      %v2983 = vpop.f32.mrb[0].mxu0
      %v2984 = vadd.f32 %v2872, %v2983
      %v2985 = vpop.f32.mrb[0].mxu0
      %2986 = vdwg.mxu0
      %v2987 = vpack.c.bf16 %v2960, %v2957
      %v2988 = vpack.c.bf16 %v2968, %v2965
      %v2989 = vpack.c.bf16 %v2976, %v2973
      %v2990 = vpack.c.bf16 %v2984, %v2981
      %vm2991 = vcmask 64512
      %v2993 = vsel %vm2991, %v2709, 0
      %v2996 = vsel %vm2991, %v2710, 0
      %v2999 = vsel %vm2991, %v2711, 0
      %v3002 = vsel %vm2991, %v2712, 0
      %v3005 = vsel %vm2991, %v2844, 0
      %v3008 = vsel %vm2991, %v2845, 0
      %v3011 = vsel %vm2991, %v2846, 0
      %v3014 = vsel %vm2991, %v2847, 0
      %3016 = vmatprep.subr.bf16.mxu0 0
      %3017 = vmatpush1.bf16.xpose.msra.mxu0 %v3005
      %3018 = vmatprep.subr.bf16.mxu0 0
      %3019 = vmatpush1.bf16.xpose.msra.mxu0 %v3008
      %3020 = vmatprep.subr.bf16.mxu0 0
      %3021 = vmatpush1.bf16.xpose.msra.mxu0 %v3011
      %3022 = vmatprep.subr.bf16.mxu0 0
      %3023 = vmatpush1.bf16.xpose.msra.mxu0 %v3014
      %3024 = vmatprep.subr.bf16.mxu0 0
      %3025 = vmatpush1.bf16.xpose.msra.mxu0 0
      %3026 = vmatprep.subr.bf16.mxu0 0
      %3027 = vmatpush1.bf16.xpose.msra.mxu0 0
      %3028 = vmatprep.subr.bf16.mxu0 0
      %3029 = vmatpush1.bf16.xpose.msra.mxu0 0
      %3030 = vmatprep.subr.bf16.mxu0 0
      %3031 = vmatpush1.bf16.xpose.msra.mxu0 0
      %3032 = vmatprep.subr.bf16.mxu0 0
      %3033 = vmatpush1.bf16.xpose.msra.mxu0 0
      %3034 = vmatprep.subr.bf16.mxu0 0
      %3035 = vmatpush1.bf16.xpose.msra.mxu0 0
      %3036 = vmatprep.subr.bf16.mxu0 0
      %3037 = vmatpush1.bf16.xpose.msra.mxu0 0
      %3038 = vmatprep.subr.bf16.mxu0 0
      %3039 = vmatpush1.bf16.xpose.msra.mxu0 0
      %3040 = vmatprep.subr.bf16.mxu0 0
      %3041 = vmatpush1.bf16.xpose.msra.mxu0 0
      %3042 = vmatprep.subr.bf16.mxu0 0
      %3043 = vmatpush1.bf16.xpose.msra.mxu0 0
      %3044 = vmatprep.subr.bf16.mxu0 0
      %3045 = vmatpush1.bf16.xpose.msra.mxu0 0
      %3046 = vmatprep.subr.bf16.mxu0 0
      %3047 = vmatpush1.bf16.xpose.msra.mxu0 0
      %3048 = vmatprep.mubr.bf16.mxu0 0
      %3049 = vmatmul.mubr.bf16.gmra.mrb[0].mxu0 %v2993
      %v3050 = vpop.f32.mrb[0].mxu0
      %v3051 = vadd.f32 %v2407, %v3050
      %v3052 = vpop.f32.mrb[0].mxu0
      %v3053 = vpop.f32.mrb[0].mxu0
      %v3054 = vadd.f32 %v2408, %v3053
      %v3055 = vpop.f32.mrb[0].mxu0
      %3056 = vmatprep.mubr.bf16.mxu0 0
      %3057 = vmatmul.mubr.bf16.gmra.mrb[0].mxu0 %v2996
      %v3058 = vpop.f32.mrb[0].mxu0
      %v3059 = vadd.f32 %v2409, %v3058
      %v3060 = vpop.f32.mrb[0].mxu0
      %v3061 = vpop.f32.mrb[0].mxu0
      %v3062 = vadd.f32 %v2410, %v3061
      %v3063 = vpop.f32.mrb[0].mxu0
      %3064 = vmatprep.mubr.bf16.mxu0 0
      %3065 = vmatmul.mubr.bf16.gmra.mrb[0].mxu0 %v2999
      %v3066 = vpop.f32.mrb[0].mxu0
      %v3067 = vadd.f32 %v2411, %v3066
      %v3068 = vpop.f32.mrb[0].mxu0
      %v3069 = vpop.f32.mrb[0].mxu0
      %v3070 = vadd.f32 %v2412, %v3069
      %v3071 = vpop.f32.mrb[0].mxu0
      %3072 = vmatprep.mubr.bf16.mxu0 0
      %3073 = vmatmul.mubr.bf16.gmra.mrb[0].mxu0 %v3002
      %v3074 = vpop.f32.mrb[0].mxu0
      %v3075 = vadd.f32 %v2413, %v3074
      %v3076 = vpop.f32.mrb[0].mxu0
      %v3077 = vpop.f32.mrb[0].mxu0
      %v3078 = vadd.f32 %v2414, %v3077
      %v3079 = vpop.f32.mrb[0].mxu0
      %3080 = vdwg.mxu0
      %vm3081 = vcmask 523264
      %v3082 = vsel %vm3081, %v3051, -inf
      %3083 = vmax.xlane.f32.xlu0 %v3082
      %v3084 = vpop.xlane.xlu0 %3083
      %v3085 = vsel %vm3081, %v3054, -inf
      %3086 = vmax.xlane.f32.xlu0 %v3085
      %v3087 = vpop.xlane.xlu0 %3086
      %v3088 = vsel %vm3081, %v3059, -inf
      %3089 = vmax.xlane.f32.xlu0 %v3088
      %v3090 = vpop.xlane.xlu0 %3089
      %v3091 = vsel %vm3081, %v3062, -inf
      %3092 = vmax.xlane.f32.xlu0 %v3091
      %v3093 = vpop.xlane.xlu0 %3092
      %v3094 = vsel %vm3081, %v3067, -inf
      %3095 = vmax.xlane.f32.xlu0 %v3094
      %v3096 = vpop.xlane.xlu0 %3095
      %v3097 = vsel %vm3081, %v3070, -inf
      %3098 = vmax.xlane.f32.xlu0 %v3097
      %v3099 = vpop.xlane.xlu0 %3098
      %v3100 = vsel %vm3081, %v3075, -inf
      %3101 = vmax.xlane.f32.xlu0 %v3100
      %v3102 = vpop.xlane.xlu0 %3101
      %v3103 = vsel %vm3081, %v3078, -inf
      %3104 = vmax.xlane.f32.xlu0 %v3103
      %v3105 = vpop.xlane.xlu0 %3104
      %v3106 = vsub.f32 %v3051, %v3084
      %v3107 = vsub.f32 %v3054, %v3087
      %v3108 = vsub.f32 %v3059, %v3090
      %v3109 = vsub.f32 %v3062, %v3093
      %v3110 = vsub.f32 %v3067, %v3096
      %v3111 = vsub.f32 %v3070, %v3099
      %v3112 = vsub.f32 %v3075, %v3102
      %v3113 = vsub.f32 %v3078, %v3105
      %v3114 = vmul.f32 %v3106, 1.442695
      %v3115 = vpow.pop %v3114
      %v3116 = vmul.f32 %v3107, 1.442695
      %v3117 = vpow.pop %v3116
      %v3118 = vmul.f32 %v3108, 1.442695
      %v3119 = vpow.pop %v3118
      %v3120 = vmul.f32 %v3109, 1.442695
      %v3121 = vpow.pop %v3120
      %v3122 = vmul.f32 %v3110, 1.442695
      %v3123 = vpow.pop %v3122
      %v3124 = vmul.f32 %v3111, 1.442695
      %v3125 = vpow.pop %v3124
      %v3126 = vmul.f32 %v3112, 1.442695
      %v3127 = vpow.pop %v3126
      %v3128 = vmul.f32 %v3113, 1.442695
      %v3129 = vpow.pop %v3128
      %v3130 = vsel %vm3081, %v3115, 0.0
      %3131 = vadd.xlane.f32.xlu0 %v3130
      %v3132 = vpop.xlane.xlu0 %3131
      %v3133 = vsel %vm3081, %v3117, 0.0
      %3134 = vadd.xlane.f32.xlu0 %v3133
      %v3135 = vpop.xlane.xlu0 %3134
      %v3136 = vsel %vm3081, %v3119, 0.0
      %3137 = vadd.xlane.f32.xlu0 %v3136
      %v3138 = vpop.xlane.xlu0 %3137
      %v3139 = vsel %vm3081, %v3121, 0.0
      %3140 = vadd.xlane.f32.xlu0 %v3139
      %v3141 = vpop.xlane.xlu0 %3140
      %v3142 = vsel %vm3081, %v3123, 0.0
      %3143 = vadd.xlane.f32.xlu0 %v3142
      %v3144 = vpop.xlane.xlu0 %3143
      %v3145 = vsel %vm3081, %v3125, 0.0
      %3146 = vadd.xlane.f32.xlu0 %v3145
      %v3147 = vpop.xlane.xlu0 %3146
      %v3148 = vsel %vm3081, %v3127, 0.0
      %3149 = vadd.xlane.f32.xlu0 %v3148
      %v3150 = vpop.xlane.xlu0 %3149
      %v3151 = vsel %vm3081, %v3129, 0.0
      %3152 = vadd.xlane.f32.xlu0 %v3151
      %v3153 = vpop.xlane.xlu0 %3152
      %v3154 = vrcp.pop %v3132
      %v3155 = vrcp.pop %v3135
      %v3156 = vrcp.pop %v3138
      %v3157 = vrcp.pop %v3141
      %v3158 = vrcp.pop %v3144
      %v3159 = vrcp.pop %v3147
      %v3160 = vrcp.pop %v3150
      %v3161 = vrcp.pop %v3153
      %v3162 = vmul.f32 %v3115, %v3154
      %v3163 = vmul.f32 %v3117, %v3155
      %v3164 = vmul.f32 %v3119, %v3156
      %v3165 = vmul.f32 %v3121, %v3157
      %v3166 = vmul.f32 %v3123, %v3158
      %v3167 = vmul.f32 %v3125, %v3159
      %v3168 = vmul.f32 %v3127, %v3160
      %v3169 = vmul.f32 %v3129, %v3161
      %v3170 = vpack.c.bf16 %v3163, %v3162
      %v3171 = vpack.c.bf16 %v3165, %v3164
      %v3172 = vpack.c.bf16 %v3167, %v3166
      %v3173 = vpack.c.bf16 %v3169, %v3168
      %v3175 = vsel %vm3081, %v3170, 0
      %v3178 = vsel %vm3081, %v3171, 0
      %v3181 = vsel %vm3081, %v3172, 0
      %v3184 = vsel %vm3081, %v3173, 0
      %3186 = vmatprep.subr.bf16.mxu0 0
      %3187 = vmatpush1.bf16.msra.mxu0 %v2987
      %3188 = vmatprep.subr.bf16.mxu0 0
      %3189 = vmatpush1.bf16.msra.mxu0 %v2988
      %3190 = vmatprep.subr.bf16.mxu0 0
      %3191 = vmatpush1.bf16.msra.mxu0 %v2989
      %3192 = vmatprep.subr.bf16.mxu0 0
      %3193 = vmatpush1.bf16.msra.mxu0 %v2990
      %3194 = vmatprep.subr.bf16.mxu0 0
      %3195 = vmatpush1.bf16.msra.mxu0 0
      %3196 = vmatprep.subr.bf16.mxu0 0
      %3197 = vmatpush1.bf16.msra.mxu0 0
      %3198 = vmatprep.subr.bf16.mxu0 0
      %3199 = vmatpush1.bf16.msra.mxu0 0
      %3200 = vmatprep.subr.bf16.mxu0 0
      %3201 = vmatpush1.bf16.msra.mxu0 0
      %3202 = vmatprep.subr.bf16.mxu0 0
      %3203 = vmatpush1.bf16.msra.mxu0 0
      %3204 = vmatprep.subr.bf16.mxu0 0
      %3205 = vmatpush1.bf16.msra.mxu0 0
      %3206 = vmatprep.subr.bf16.mxu0 0
      %3207 = vmatpush1.bf16.msra.mxu0 0
      %3208 = vmatprep.subr.bf16.mxu0 0
      %3209 = vmatpush1.bf16.msra.mxu0 0
      %3210 = vmatprep.subr.bf16.mxu0 0
      %3211 = vmatpush1.bf16.msra.mxu0 0
      %3212 = vmatprep.subr.bf16.mxu0 0
      %3213 = vmatpush1.bf16.msra.mxu0 0
      %3214 = vmatprep.subr.bf16.mxu0 0
      %3215 = vmatpush1.bf16.msra.mxu0 0
      %3216 = vmatprep.subr.bf16.mxu0 0
      %3217 = vmatpush1.bf16.msra.mxu0 0
      %3218 = vmatprep.mubr.bf16.mxu0 0
      %3219 = vmatmul.mubr.bf16.gmra.mrb[0].mxu0 %v3175
      %v3220 = vpop.f32.mrb[0].mxu0
      %v3221 = vadd.f32 0.0, %v3220
      %v3222 = vpop.f32.mrb[0].mxu0
      %v3223 = vpop.f32.mrb[0].mxu0
      %v3224 = vadd.f32 0.0, %v3223
      %v3225 = vpop.f32.mrb[0].mxu0
      %3226 = vmatprep.mubr.bf16.mxu0 0
      %3227 = vmatmul.mubr.bf16.gmra.mrb[0].mxu0 %v3178
      %v3228 = vpop.f32.mrb[0].mxu0
      %v3229 = vadd.f32 0.0, %v3228
      %v3230 = vpop.f32.mrb[0].mxu0
      %v3231 = vpop.f32.mrb[0].mxu0
      %v3232 = vadd.f32 0.0, %v3231
      %v3233 = vpop.f32.mrb[0].mxu0
      %3234 = vmatprep.mubr.bf16.mxu0 0
      %3235 = vmatmul.mubr.bf16.gmra.mrb[0].mxu0 %v3181
      %v3236 = vpop.f32.mrb[0].mxu0
      %v3237 = vadd.f32 0.0, %v3236
      %v3238 = vpop.f32.mrb[0].mxu0
      %v3239 = vpop.f32.mrb[0].mxu0
      %v3240 = vadd.f32 0.0, %v3239
      %v3241 = vpop.f32.mrb[0].mxu0
      %3242 = vmatprep.mubr.bf16.mxu0 0
      %3243 = vmatmul.mubr.bf16.gmra.mrb[0].mxu0 %v3184
      %v3244 = vpop.f32.mrb[0].mxu0
      %v3245 = vadd.f32 0.0, %v3244
      %v3246 = vpop.f32.mrb[0].mxu0
      %v3247 = vpop.f32.mrb[0].mxu0
      %v3248 = vadd.f32 0.0, %v3247
      %v3249 = vpop.f32.mrb[0].mxu0
      %3250 = vdwg.mxu0
      %3255 = vrot.lane.b32.xlu0 %v2709, 120
      %v3256 = vpop.permute.xlu0 %3255
      %3257 = vrot.lane.b32.xlu0 %v2710, 120
      %v3258 = vpop.permute.xlu0 %3257
      %3259 = vrot.lane.b32.xlu0 %v2711, 120
      %v3260 = vpop.permute.xlu0 %3259
      %3261 = vrot.lane.b32.xlu0 %v2712, 120
      %v3262 = vpop.permute.xlu0 %3261
      %3267 = vrot.lane.b32.xlu0 %v2844, 120
      %v3268 = vpop.permute.xlu0 %3267
      %3269 = vrot.lane.b32.xlu0 %v2845, 120
      %v3270 = vpop.permute.xlu0 %3269
      %3271 = vrot.lane.b32.xlu0 %v2846, 120
      %v3272 = vpop.permute.xlu0 %3271
      %3273 = vrot.lane.b32.xlu0 %v2847, 120
      %v3274 = vpop.permute.xlu0 %3273
      %v3276 = vsel %vm2991, %v3256, 0
      %v3279 = vsel %vm2991, %v3258, 0
      %v3282 = vsel %vm2991, %v3260, 0
      %v3285 = vsel %vm2991, %v3262, 0
      %v3288 = vsel %vm2991, %v3268, 0
      %v3291 = vsel %vm2991, %v3270, 0
      %v3294 = vsel %vm2991, %v3272, 0
      %v3297 = vsel %vm2991, %v3274, 0
      %3299 = vmatprep.subr.bf16.mxu0 0
      %3300 = vmatpush1.bf16.xpose.msra.mxu0 %v3288
      %3301 = vmatprep.subr.bf16.mxu0 0
      %3302 = vmatpush1.bf16.xpose.msra.mxu0 %v3291
      %3303 = vmatprep.subr.bf16.mxu0 0
      %3304 = vmatpush1.bf16.xpose.msra.mxu0 %v3294
      %3305 = vmatprep.subr.bf16.mxu0 0
      %3306 = vmatpush1.bf16.xpose.msra.mxu0 %v3297
      %3307 = vmatprep.subr.bf16.mxu0 0
      %3308 = vmatpush1.bf16.xpose.msra.mxu0 0
      %3309 = vmatprep.subr.bf16.mxu0 0
      %3310 = vmatpush1.bf16.xpose.msra.mxu0 0
      %3311 = vmatprep.subr.bf16.mxu0 0
      %3312 = vmatpush1.bf16.xpose.msra.mxu0 0
      %3313 = vmatprep.subr.bf16.mxu0 0
      %3314 = vmatpush1.bf16.xpose.msra.mxu0 0
      %3315 = vmatprep.subr.bf16.mxu0 0
      %3316 = vmatpush1.bf16.xpose.msra.mxu0 0
      %3317 = vmatprep.subr.bf16.mxu0 0
      %3318 = vmatpush1.bf16.xpose.msra.mxu0 0
      %3319 = vmatprep.subr.bf16.mxu0 0
      %3320 = vmatpush1.bf16.xpose.msra.mxu0 0
      %3321 = vmatprep.subr.bf16.mxu0 0
      %3322 = vmatpush1.bf16.xpose.msra.mxu0 0
      %3323 = vmatprep.subr.bf16.mxu0 0
      %3324 = vmatpush1.bf16.xpose.msra.mxu0 0
      %3325 = vmatprep.subr.bf16.mxu0 0
      %3326 = vmatpush1.bf16.xpose.msra.mxu0 0
      %3327 = vmatprep.subr.bf16.mxu0 0
      %3328 = vmatpush1.bf16.xpose.msra.mxu0 0
      %3329 = vmatprep.subr.bf16.mxu0 0
      %3330 = vmatpush1.bf16.xpose.msra.mxu0 0
      %3331 = vmatprep.mubr.bf16.mxu0 0
      %3332 = vmatmul.mubr.bf16.gmra.mrb[0].mxu0 %v3276
      %v3333 = vpop.f32.mrb[0].mxu0
      %v3334 = vadd.f32 %v2407, %v3333
      %v3335 = vpop.f32.mrb[0].mxu0
      %v3336 = vpop.f32.mrb[0].mxu0
      %v3337 = vadd.f32 %v2408, %v3336
      %v3338 = vpop.f32.mrb[0].mxu0
      %3339 = vmatprep.mubr.bf16.mxu0 0
      %3340 = vmatmul.mubr.bf16.gmra.mrb[0].mxu0 %v3279
      %v3341 = vpop.f32.mrb[0].mxu0
      %v3342 = vadd.f32 %v2409, %v3341
      %v3343 = vpop.f32.mrb[0].mxu0
      %v3344 = vpop.f32.mrb[0].mxu0
      %v3345 = vadd.f32 %v2410, %v3344
      %v3346 = vpop.f32.mrb[0].mxu0
      %3347 = vmatprep.mubr.bf16.mxu0 0
      %3348 = vmatmul.mubr.bf16.gmra.mrb[0].mxu0 %v3282
      %v3349 = vpop.f32.mrb[0].mxu0
      %v3350 = vadd.f32 %v2411, %v3349
      %v3351 = vpop.f32.mrb[0].mxu0
      %v3352 = vpop.f32.mrb[0].mxu0
      %v3353 = vadd.f32 %v2412, %v3352
      %v3354 = vpop.f32.mrb[0].mxu0
      %3355 = vmatprep.mubr.bf16.mxu0 0
      %3356 = vmatmul.mubr.bf16.gmra.mrb[0].mxu0 %v3285
      %v3357 = vpop.f32.mrb[0].mxu0
      %v3358 = vadd.f32 %v2413, %v3357
      %v3359 = vpop.f32.mrb[0].mxu0
      %v3360 = vpop.f32.mrb[0].mxu0
      %v3361 = vadd.f32 %v2414, %v3360
      %v3362 = vpop.f32.mrb[0].mxu0
      %3363 = vdwg.mxu0
      %v3364 = vsel %vm3081, %v3334, -inf
      %3365 = vmax.xlane.f32.xlu0 %v3364
      %v3366 = vpop.xlane.xlu0 %3365
      %v3367 = vsel %vm3081, %v3337, -inf
      %3368 = vmax.xlane.f32.xlu0 %v3367
      %v3369 = vpop.xlane.xlu0 %3368
      %v3370 = vsel %vm3081, %v3342, -inf
      %3371 = vmax.xlane.f32.xlu0 %v3370
      %v3372 = vpop.xlane.xlu0 %3371
      %v3373 = vsel %vm3081, %v3345, -inf
      %3374 = vmax.xlane.f32.xlu0 %v3373
      %v3375 = vpop.xlane.xlu0 %3374
      %v3376 = vsel %vm3081, %v3350, -inf
      %3377 = vmax.xlane.f32.xlu0 %v3376
      %v3378 = vpop.xlane.xlu0 %3377
      %v3379 = vsel %vm3081, %v3353, -inf
      %3380 = vmax.xlane.f32.xlu0 %v3379
      %v3381 = vpop.xlane.xlu0 %3380
      %v3382 = vsel %vm3081, %v3358, -inf
      %3383 = vmax.xlane.f32.xlu0 %v3382
      %v3384 = vpop.xlane.xlu0 %3383
      %v3385 = vsel %vm3081, %v3361, -inf
      %3386 = vmax.xlane.f32.xlu0 %v3385
      %v3387 = vpop.xlane.xlu0 %3386
      %v3388 = vsub.f32 %v3334, %v3366
      %v3389 = vsub.f32 %v3337, %v3369
      %v3390 = vsub.f32 %v3342, %v3372
      %v3391 = vsub.f32 %v3345, %v3375
      %v3392 = vsub.f32 %v3350, %v3378
      %v3393 = vsub.f32 %v3353, %v3381
      %v3394 = vsub.f32 %v3358, %v3384
      %v3395 = vsub.f32 %v3361, %v3387
      %v3396 = vmul.f32 %v3388, 1.442695
      %v3397 = vpow.pop %v3396
      %v3398 = vmul.f32 %v3389, 1.442695
      %v3399 = vpow.pop %v3398
      %v3400 = vmul.f32 %v3390, 1.442695
      %v3401 = vpow.pop %v3400
      %v3402 = vmul.f32 %v3391, 1.442695
      %v3403 = vpow.pop %v3402
      %v3404 = vmul.f32 %v3392, 1.442695
      %v3405 = vpow.pop %v3404
      %v3406 = vmul.f32 %v3393, 1.442695
      %v3407 = vpow.pop %v3406
      %v3408 = vmul.f32 %v3394, 1.442695
      %v3409 = vpow.pop %v3408
      %v3410 = vmul.f32 %v3395, 1.442695
      %v3411 = vpow.pop %v3410
      %v3412 = vsel %vm3081, %v3397, 0.0
      %3413 = vadd.xlane.f32.xlu0 %v3412
      %v3414 = vpop.xlane.xlu0 %3413
      %v3415 = vsel %vm3081, %v3399, 0.0
      %3416 = vadd.xlane.f32.xlu0 %v3415
      %v3417 = vpop.xlane.xlu0 %3416
      %v3418 = vsel %vm3081, %v3401, 0.0
      %3419 = vadd.xlane.f32.xlu0 %v3418
      %v3420 = vpop.xlane.xlu0 %3419
      %v3421 = vsel %vm3081, %v3403, 0.0
      %3422 = vadd.xlane.f32.xlu0 %v3421
      %v3423 = vpop.xlane.xlu0 %3422
      %v3424 = vsel %vm3081, %v3405, 0.0
      %3425 = vadd.xlane.f32.xlu0 %v3424
      %v3426 = vpop.xlane.xlu0 %3425
      %v3427 = vsel %vm3081, %v3407, 0.0
      %3428 = vadd.xlane.f32.xlu0 %v3427
      %v3429 = vpop.xlane.xlu0 %3428
      %v3430 = vsel %vm3081, %v3409, 0.0
      %3431 = vadd.xlane.f32.xlu0 %v3430
      %v3432 = vpop.xlane.xlu0 %3431
      %v3433 = vsel %vm3081, %v3411, 0.0
      %3434 = vadd.xlane.f32.xlu0 %v3433
      %v3435 = vpop.xlane.xlu0 %3434
      %v3436 = vrcp.pop %v3414
      %v3437 = vrcp.pop %v3417
      %v3438 = vrcp.pop %v3420
      %v3439 = vrcp.pop %v3423
      %v3440 = vrcp.pop %v3426
      %v3441 = vrcp.pop %v3429
      %v3442 = vrcp.pop %v3432
      %v3443 = vrcp.pop %v3435
      %v3444 = vmul.f32 %v3397, %v3436
      %v3445 = vmul.f32 %v3399, %v3437
      %v3446 = vmul.f32 %v3401, %v3438
      %v3447 = vmul.f32 %v3403, %v3439
      %v3448 = vmul.f32 %v3405, %v3440
      %v3449 = vmul.f32 %v3407, %v3441
      %v3450 = vmul.f32 %v3409, %v3442
      %v3451 = vmul.f32 %v3411, %v3443
      %v3452 = vpack.c.bf16 %v3445, %v3444
      %v3453 = vpack.c.bf16 %v3447, %v3446
      %v3454 = vpack.c.bf16 %v3449, %v3448
      %v3455 = vpack.c.bf16 %v3451, %v3450
      %3460 = vrot.lane.b32.xlu0 %v2987, 120
      %v3461 = vpop.permute.xlu0 %3460
      %3462 = vrot.lane.b32.xlu0 %v2988, 120
      %v3463 = vpop.permute.xlu0 %3462
      %3464 = vrot.lane.b32.xlu0 %v2989, 120
      %v3465 = vpop.permute.xlu0 %3464
      %3466 = vrot.lane.b32.xlu0 %v2990, 120
      %v3467 = vpop.permute.xlu0 %3466
      %v3473 = vsel %vm3081, %v3452, 0
      %v3476 = vsel %vm3081, %v3453, 0
      %v3479 = vsel %vm3081, %v3454, 0
      %v3482 = vsel %vm3081, %v3455, 0
      %3484 = vmatprep.subr.bf16.mxu0 0
      %3485 = vmatpush1.bf16.msra.mxu0 %v3461
      %3486 = vmatprep.subr.bf16.mxu0 0
      %3487 = vmatpush1.bf16.msra.mxu0 %v3463
      %3488 = vmatprep.subr.bf16.mxu0 0
      %3489 = vmatpush1.bf16.msra.mxu0 %v3465
      %3490 = vmatprep.subr.bf16.mxu0 0
      %3491 = vmatpush1.bf16.msra.mxu0 %v3467
      %3492 = vmatprep.subr.bf16.mxu0 0
      %3493 = vmatpush1.bf16.msra.mxu0 0
      %3494 = vmatprep.subr.bf16.mxu0 0
      %3495 = vmatpush1.bf16.msra.mxu0 0
      %3496 = vmatprep.subr.bf16.mxu0 0
      %3497 = vmatpush1.bf16.msra.mxu0 0
      %3498 = vmatprep.subr.bf16.mxu0 0
      %3499 = vmatpush1.bf16.msra.mxu0 0
      %3500 = vmatprep.subr.bf16.mxu0 0
      %3501 = vmatpush1.bf16.msra.mxu0 0
      %3502 = vmatprep.subr.bf16.mxu0 0
      %3503 = vmatpush1.bf16.msra.mxu0 0
      %3504 = vmatprep.subr.bf16.mxu0 0
      %3505 = vmatpush1.bf16.msra.mxu0 0
      %3506 = vmatprep.subr.bf16.mxu0 0
      %3507 = vmatpush1.bf16.msra.mxu0 0
      %3508 = vmatprep.subr.bf16.mxu0 0
      %3509 = vmatpush1.bf16.msra.mxu0 0
      %3510 = vmatprep.subr.bf16.mxu0 0
      %3511 = vmatpush1.bf16.msra.mxu0 0
      %3512 = vmatprep.subr.bf16.mxu0 0
      %3513 = vmatpush1.bf16.msra.mxu0 0
      %3514 = vmatprep.subr.bf16.mxu0 0
      %3515 = vmatpush1.bf16.msra.mxu0 0
      %3516 = vmatprep.mubr.bf16.mxu0 0
      %3517 = vmatmul.mubr.bf16.gmra.mrb[0].mxu0 %v3473
      %v3518 = vpop.f32.mrb[0].mxu0
      %v3519 = vadd.f32 0.0, %v3518
      %v3520 = vpop.f32.mrb[0].mxu0
      %v3521 = vpop.f32.mrb[0].mxu0
      %v3522 = vadd.f32 0.0, %v3521
      %v3523 = vpop.f32.mrb[0].mxu0
      %3524 = vmatprep.mubr.bf16.mxu0 0
      %3525 = vmatmul.mubr.bf16.gmra.mrb[0].mxu0 %v3476
      %v3526 = vpop.f32.mrb[0].mxu0
      %v3527 = vadd.f32 0.0, %v3526
      %v3528 = vpop.f32.mrb[0].mxu0
      %v3529 = vpop.f32.mrb[0].mxu0
      %v3530 = vadd.f32 0.0, %v3529
      %v3531 = vpop.f32.mrb[0].mxu0
      %3532 = vmatprep.mubr.bf16.mxu0 0
      %3533 = vmatmul.mubr.bf16.gmra.mrb[0].mxu0 %v3479
      %v3534 = vpop.f32.mrb[0].mxu0
      %v3535 = vadd.f32 0.0, %v3534
      %v3536 = vpop.f32.mrb[0].mxu0
      %v3537 = vpop.f32.mrb[0].mxu0
      %v3538 = vadd.f32 0.0, %v3537
      %v3539 = vpop.f32.mrb[0].mxu0
      %3540 = vmatprep.mubr.bf16.mxu0 0
      %3541 = vmatmul.mubr.bf16.gmra.mrb[0].mxu0 %v3482
      %v3542 = vpop.f32.mrb[0].mxu0
      %v3543 = vadd.f32 0.0, %v3542
      %v3544 = vpop.f32.mrb[0].mxu0
      %v3545 = vpop.f32.mrb[0].mxu0
      %v3546 = vadd.f32 0.0, %v3545
      %v3547 = vpop.f32.mrb[0].mxu0
      %3548 = vdwg.mxu0
      %3549 = vrot.lane.b32.xlu0 %v2709, 112
      %v3550 = vpop.permute.xlu0 %3549
      %3551 = vrot.lane.b32.xlu0 %v2710, 112
      %v3552 = vpop.permute.xlu0 %3551
      %3553 = vrot.lane.b32.xlu0 %v2711, 112
      %v3554 = vpop.permute.xlu0 %3553
      %3555 = vrot.lane.b32.xlu0 %v2712, 112
      %v3556 = vpop.permute.xlu0 %3555
      %3557 = vrot.lane.b32.xlu0 %v2844, 112
      %v3558 = vpop.permute.xlu0 %3557
      %3559 = vrot.lane.b32.xlu0 %v2845, 112
      %v3560 = vpop.permute.xlu0 %3559
      %3561 = vrot.lane.b32.xlu0 %v2846, 112
      %v3562 = vpop.permute.xlu0 %3561
      %3563 = vrot.lane.b32.xlu0 %v2847, 112
      %v3564 = vpop.permute.xlu0 %3563
      %v3566 = vsel %vm2991, %v3550, 0
      %v3569 = vsel %vm2991, %v3552, 0
      %v3572 = vsel %vm2991, %v3554, 0
      %v3575 = vsel %vm2991, %v3556, 0
      %v3578 = vsel %vm2991, %v3558, 0
      %v3581 = vsel %vm2991, %v3560, 0
      %v3584 = vsel %vm2991, %v3562, 0
      %v3587 = vsel %vm2991, %v3564, 0
      %3589 = vmatprep.subr.bf16.mxu0 0
      %3590 = vmatpush1.bf16.xpose.msra.mxu0 %v3578
      %3591 = vmatprep.subr.bf16.mxu0 0
      %3592 = vmatpush1.bf16.xpose.msra.mxu0 %v3581
      %3593 = vmatprep.subr.bf16.mxu0 0
      %3594 = vmatpush1.bf16.xpose.msra.mxu0 %v3584
      %3595 = vmatprep.subr.bf16.mxu0 0
      %3596 = vmatpush1.bf16.xpose.msra.mxu0 %v3587
      %3597 = vmatprep.subr.bf16.mxu0 0
      %3598 = vmatpush1.bf16.xpose.msra.mxu0 0
      %3599 = vmatprep.subr.bf16.mxu0 0
      %3600 = vmatpush1.bf16.xpose.msra.mxu0 0
      %3601 = vmatprep.subr.bf16.mxu0 0
      %3602 = vmatpush1.bf16.xpose.msra.mxu0 0
      %3603 = vmatprep.subr.bf16.mxu0 0
      %3604 = vmatpush1.bf16.xpose.msra.mxu0 0
      %3605 = vmatprep.subr.bf16.mxu0 0
      %3606 = vmatpush1.bf16.xpose.msra.mxu0 0
      %3607 = vmatprep.subr.bf16.mxu0 0
      %3608 = vmatpush1.bf16.xpose.msra.mxu0 0
      %3609 = vmatprep.subr.bf16.mxu0 0
      %3610 = vmatpush1.bf16.xpose.msra.mxu0 0
      %3611 = vmatprep.subr.bf16.mxu0 0
      %3612 = vmatpush1.bf16.xpose.msra.mxu0 0
      %3613 = vmatprep.subr.bf16.mxu0 0
      %3614 = vmatpush1.bf16.xpose.msra.mxu0 0
      %3615 = vmatprep.subr.bf16.mxu0 0
      %3616 = vmatpush1.bf16.xpose.msra.mxu0 0
      %3617 = vmatprep.subr.bf16.mxu0 0
      %3618 = vmatpush1.bf16.xpose.msra.mxu0 0
      %3619 = vmatprep.subr.bf16.mxu0 0
      %3620 = vmatpush1.bf16.xpose.msra.mxu0 0
      %3621 = vmatprep.mubr.bf16.mxu0 0
      %3622 = vmatmul.mubr.bf16.gmra.mrb[0].mxu0 %v3566
      %v3623 = vpop.f32.mrb[0].mxu0
      %v3624 = vadd.f32 %v2407, %v3623
      %v3625 = vpop.f32.mrb[0].mxu0
      %v3626 = vpop.f32.mrb[0].mxu0
      %v3627 = vadd.f32 %v2408, %v3626
      %v3628 = vpop.f32.mrb[0].mxu0
      %3629 = vmatprep.mubr.bf16.mxu0 0
      %3630 = vmatmul.mubr.bf16.gmra.mrb[0].mxu0 %v3569
      %v3631 = vpop.f32.mrb[0].mxu0
      %v3632 = vadd.f32 %v2409, %v3631
      %v3633 = vpop.f32.mrb[0].mxu0
      %v3634 = vpop.f32.mrb[0].mxu0
      %v3635 = vadd.f32 %v2410, %v3634
      %v3636 = vpop.f32.mrb[0].mxu0
      %3637 = vmatprep.mubr.bf16.mxu0 0
      %3638 = vmatmul.mubr.bf16.gmra.mrb[0].mxu0 %v3572
      %v3639 = vpop.f32.mrb[0].mxu0
      %v3640 = vadd.f32 %v2411, %v3639
      %v3641 = vpop.f32.mrb[0].mxu0
      %v3642 = vpop.f32.mrb[0].mxu0
      %v3643 = vadd.f32 %v2412, %v3642
      %v3644 = vpop.f32.mrb[0].mxu0
      %3645 = vmatprep.mubr.bf16.mxu0 0
      %3646 = vmatmul.mubr.bf16.gmra.mrb[0].mxu0 %v3575
      %v3647 = vpop.f32.mrb[0].mxu0
      %v3648 = vadd.f32 %v2413, %v3647
      %v3649 = vpop.f32.mrb[0].mxu0
      %v3650 = vpop.f32.mrb[0].mxu0
      %v3651 = vadd.f32 %v2414, %v3650
      %v3652 = vpop.f32.mrb[0].mxu0
      %3653 = vdwg.mxu0
      %v3654 = vsel %vm3081, %v3624, -inf
      %3655 = vmax.xlane.f32.xlu0 %v3654
      %v3656 = vpop.xlane.xlu0 %3655
      %v3657 = vsel %vm3081, %v3627, -inf
      %3658 = vmax.xlane.f32.xlu0 %v3657
      %v3659 = vpop.xlane.xlu0 %3658
      %v3660 = vsel %vm3081, %v3632, -inf
      %3661 = vmax.xlane.f32.xlu0 %v3660
      %v3662 = vpop.xlane.xlu0 %3661
      %v3663 = vsel %vm3081, %v3635, -inf
      %3664 = vmax.xlane.f32.xlu0 %v3663
      %v3665 = vpop.xlane.xlu0 %3664
      %v3666 = vsel %vm3081, %v3640, -inf
      %3667 = vmax.xlane.f32.xlu0 %v3666
      %v3668 = vpop.xlane.xlu0 %3667
      %v3669 = vsel %vm3081, %v3643, -inf
      %3670 = vmax.xlane.f32.xlu0 %v3669
      %v3671 = vpop.xlane.xlu0 %3670
      %v3672 = vsel %vm3081, %v3648, -inf
      %3673 = vmax.xlane.f32.xlu0 %v3672
      %v3674 = vpop.xlane.xlu0 %3673
      %v3675 = vsel %vm3081, %v3651, -inf
      %3676 = vmax.xlane.f32.xlu0 %v3675
      %v3677 = vpop.xlane.xlu0 %3676
      %v3678 = vsub.f32 %v3624, %v3656
      %v3679 = vsub.f32 %v3627, %v3659
      %v3680 = vsub.f32 %v3632, %v3662
      %v3681 = vsub.f32 %v3635, %v3665
      %v3682 = vsub.f32 %v3640, %v3668
      %v3683 = vsub.f32 %v3643, %v3671
      %v3684 = vsub.f32 %v3648, %v3674
      %v3685 = vsub.f32 %v3651, %v3677
      %v3686 = vmul.f32 %v3678, 1.442695
      %v3687 = vpow.pop %v3686
      %v3688 = vmul.f32 %v3679, 1.442695
      %v3689 = vpow.pop %v3688
      %v3690 = vmul.f32 %v3680, 1.442695
      %v3691 = vpow.pop %v3690
      %v3692 = vmul.f32 %v3681, 1.442695
      %v3693 = vpow.pop %v3692
      %v3694 = vmul.f32 %v3682, 1.442695
      %v3695 = vpow.pop %v3694
      %v3696 = vmul.f32 %v3683, 1.442695
      %v3697 = vpow.pop %v3696
      %v3698 = vmul.f32 %v3684, 1.442695
      %v3699 = vpow.pop %v3698
      %v3700 = vmul.f32 %v3685, 1.442695
      %v3701 = vpow.pop %v3700
      %v3702 = vsel %vm3081, %v3687, 0.0
      %3703 = vadd.xlane.f32.xlu0 %v3702
      %v3704 = vpop.xlane.xlu0 %3703
      %v3705 = vsel %vm3081, %v3689, 0.0
      %3706 = vadd.xlane.f32.xlu0 %v3705
      %v3707 = vpop.xlane.xlu0 %3706
      %v3708 = vsel %vm3081, %v3691, 0.0
      %3709 = vadd.xlane.f32.xlu0 %v3708
      %v3710 = vpop.xlane.xlu0 %3709
      %v3711 = vsel %vm3081, %v3693, 0.0
      %3712 = vadd.xlane.f32.xlu0 %v3711
      %v3713 = vpop.xlane.xlu0 %3712
      %v3714 = vsel %vm3081, %v3695, 0.0
      %3715 = vadd.xlane.f32.xlu0 %v3714
      %v3716 = vpop.xlane.xlu0 %3715
      %v3717 = vsel %vm3081, %v3697, 0.0
      %3718 = vadd.xlane.f32.xlu0 %v3717
      %v3719 = vpop.xlane.xlu0 %3718
      %v3720 = vsel %vm3081, %v3699, 0.0
      %3721 = vadd.xlane.f32.xlu0 %v3720
      %v3722 = vpop.xlane.xlu0 %3721
      %v3723 = vsel %vm3081, %v3701, 0.0
      %3724 = vadd.xlane.f32.xlu0 %v3723
      %v3725 = vpop.xlane.xlu0 %3724
      %v3726 = vrcp.pop %v3704
      %v3727 = vrcp.pop %v3707
      %v3728 = vrcp.pop %v3710
      %v3729 = vrcp.pop %v3713
      %v3730 = vrcp.pop %v3716
      %v3731 = vrcp.pop %v3719
      %v3732 = vrcp.pop %v3722
      %v3733 = vrcp.pop %v3725
      %v3734 = vmul.f32 %v3687, %v3726
      %v3735 = vmul.f32 %v3689, %v3727
      %v3736 = vmul.f32 %v3691, %v3728
      %v3737 = vmul.f32 %v3693, %v3729
      %v3738 = vmul.f32 %v3695, %v3730
      %v3739 = vmul.f32 %v3697, %v3731
      %v3740 = vmul.f32 %v3699, %v3732
      %v3741 = vmul.f32 %v3701, %v3733
      %v3742 = vpack.c.bf16 %v3735, %v3734
      %v3743 = vpack.c.bf16 %v3737, %v3736
      %v3744 = vpack.c.bf16 %v3739, %v3738
      %v3745 = vpack.c.bf16 %v3741, %v3740
      %3746 = vrot.lane.b32.xlu0 %v2987, 112
      %v3747 = vpop.permute.xlu0 %3746
      %3748 = vrot.lane.b32.xlu0 %v2988, 112
      %v3749 = vpop.permute.xlu0 %3748
      %3750 = vrot.lane.b32.xlu0 %v2989, 112
      %v3751 = vpop.permute.xlu0 %3750
      %3752 = vrot.lane.b32.xlu0 %v2990, 112
      %v3753 = vpop.permute.xlu0 %3752
      %v3759 = vsel %vm3081, %v3742, 0
      %v3762 = vsel %vm3081, %v3743, 0
      %v3765 = vsel %vm3081, %v3744, 0
      %v3768 = vsel %vm3081, %v3745, 0
      %3770 = vmatprep.subr.bf16.mxu0 0
      %3771 = vmatpush1.bf16.msra.mxu0 %v3747
      %3772 = vmatprep.subr.bf16.mxu0 0
      %3773 = vmatpush1.bf16.msra.mxu0 %v3749
      %3774 = vmatprep.subr.bf16.mxu0 0
      %3775 = vmatpush1.bf16.msra.mxu0 %v3751
      %3776 = vmatprep.subr.bf16.mxu0 0
      %3777 = vmatpush1.bf16.msra.mxu0 %v3753
      %3778 = vmatprep.subr.bf16.mxu0 0
      %3779 = vmatpush1.bf16.msra.mxu0 0
      %3780 = vmatprep.subr.bf16.mxu0 0
      %3781 = vmatpush1.bf16.msra.mxu0 0
      %3782 = vmatprep.subr.bf16.mxu0 0
      %3783 = vmatpush1.bf16.msra.mxu0 0
      %3784 = vmatprep.subr.bf16.mxu0 0
      %3785 = vmatpush1.bf16.msra.mxu0 0
      %3786 = vmatprep.subr.bf16.mxu0 0
      %3787 = vmatpush1.bf16.msra.mxu0 0
      %3788 = vmatprep.subr.bf16.mxu0 0
      %3789 = vmatpush1.bf16.msra.mxu0 0
      %3790 = vmatprep.subr.bf16.mxu0 0
      %3791 = vmatpush1.bf16.msra.mxu0 0
      %3792 = vmatprep.subr.bf16.mxu0 0
      %3793 = vmatpush1.bf16.msra.mxu0 0
      %3794 = vmatprep.subr.bf16.mxu0 0
      %3795 = vmatpush1.bf16.msra.mxu0 0
      %3796 = vmatprep.subr.bf16.mxu0 0
      %3797 = vmatpush1.bf16.msra.mxu0 0
      %3798 = vmatprep.subr.bf16.mxu0 0
      %3799 = vmatpush1.bf16.msra.mxu0 0
      %3800 = vmatprep.subr.bf16.mxu0 0
      %3801 = vmatpush1.bf16.msra.mxu0 0
      %3802 = vmatprep.mubr.bf16.mxu0 0
      %3803 = vmatmul.mubr.bf16.gmra.mrb[0].mxu0 %v3759
      %v3804 = vpop.f32.mrb[0].mxu0
      %v3805 = vadd.f32 0.0, %v3804
      %v3806 = vpop.f32.mrb[0].mxu0
      %v3807 = vpop.f32.mrb[0].mxu0
      %v3808 = vadd.f32 0.0, %v3807
      %v3809 = vpop.f32.mrb[0].mxu0
      %3810 = vmatprep.mubr.bf16.mxu0 0
      %3811 = vmatmul.mubr.bf16.gmra.mrb[0].mxu0 %v3762
      %v3812 = vpop.f32.mrb[0].mxu0
      %v3813 = vadd.f32 0.0, %v3812
      %v3814 = vpop.f32.mrb[0].mxu0
      %v3815 = vpop.f32.mrb[0].mxu0
      %v3816 = vadd.f32 0.0, %v3815
      %v3817 = vpop.f32.mrb[0].mxu0
      %3818 = vmatprep.mubr.bf16.mxu0 0
      %3819 = vmatmul.mubr.bf16.gmra.mrb[0].mxu0 %v3765
      %v3820 = vpop.f32.mrb[0].mxu0
      %v3821 = vadd.f32 0.0, %v3820
      %v3822 = vpop.f32.mrb[0].mxu0
      %v3823 = vpop.f32.mrb[0].mxu0
      %v3824 = vadd.f32 0.0, %v3823
      %v3825 = vpop.f32.mrb[0].mxu0
      %3826 = vmatprep.mubr.bf16.mxu0 0
      %3827 = vmatmul.mubr.bf16.gmra.mrb[0].mxu0 %v3768
      %v3828 = vpop.f32.mrb[0].mxu0
      %v3829 = vadd.f32 0.0, %v3828
      %v3830 = vpop.f32.mrb[0].mxu0
      %v3831 = vpop.f32.mrb[0].mxu0
      %v3832 = vadd.f32 0.0, %v3831
      %v3833 = vpop.f32.mrb[0].mxu0
      %3834 = vdwg.mxu0
      %3835 = vrot.lane.b32.xlu0 %v2709, 104
      %v3836 = vpop.permute.xlu0 %3835
      %3837 = vrot.lane.b32.xlu0 %v2710, 104
      %v3838 = vpop.permute.xlu0 %3837
      %3839 = vrot.lane.b32.xlu0 %v2711, 104
      %v3840 = vpop.permute.xlu0 %3839
      %3841 = vrot.lane.b32.xlu0 %v2712, 104
      %v3842 = vpop.permute.xlu0 %3841
      %3843 = vrot.lane.b32.xlu0 %v2844, 104
      %v3844 = vpop.permute.xlu0 %3843
      %3845 = vrot.lane.b32.xlu0 %v2845, 104
      %v3846 = vpop.permute.xlu0 %3845
      %3847 = vrot.lane.b32.xlu0 %v2846, 104
      %v3848 = vpop.permute.xlu0 %3847
      %3849 = vrot.lane.b32.xlu0 %v2847, 104
      %v3850 = vpop.permute.xlu0 %3849
      %v3852 = vsel %vm2991, %v3836, 0
      %v3855 = vsel %vm2991, %v3838, 0
      %v3858 = vsel %vm2991, %v3840, 0
      %v3861 = vsel %vm2991, %v3842, 0
      %v3864 = vsel %vm2991, %v3844, 0
      %v3867 = vsel %vm2991, %v3846, 0
      %v3870 = vsel %vm2991, %v3848, 0
      %v3873 = vsel %vm2991, %v3850, 0
      %3875 = vmatprep.subr.bf16.mxu0 0
      %3876 = vmatpush1.bf16.xpose.msra.mxu0 %v3864
      %3877 = vmatprep.subr.bf16.mxu0 0
      %3878 = vmatpush1.bf16.xpose.msra.mxu0 %v3867
      %3879 = vmatprep.subr.bf16.mxu0 0
      %3880 = vmatpush1.bf16.xpose.msra.mxu0 %v3870
      %3881 = vmatprep.subr.bf16.mxu0 0
      %3882 = vmatpush1.bf16.xpose.msra.mxu0 %v3873
      %3883 = vmatprep.subr.bf16.mxu0 0
      %3884 = vmatpush1.bf16.xpose.msra.mxu0 0
      %3885 = vmatprep.subr.bf16.mxu0 0
      %3886 = vmatpush1.bf16.xpose.msra.mxu0 0
      %3887 = vmatprep.subr.bf16.mxu0 0
      %3888 = vmatpush1.bf16.xpose.msra.mxu0 0
      %3889 = vmatprep.subr.bf16.mxu0 0
      %3890 = vmatpush1.bf16.xpose.msra.mxu0 0
      %3891 = vmatprep.subr.bf16.mxu0 0
      %3892 = vmatpush1.bf16.xpose.msra.mxu0 0
      %3893 = vmatprep.subr.bf16.mxu0 0
      %3894 = vmatpush1.bf16.xpose.msra.mxu0 0
      %3895 = vmatprep.subr.bf16.mxu0 0
      %3896 = vmatpush1.bf16.xpose.msra.mxu0 0
      %3897 = vmatprep.subr.bf16.mxu0 0
      %3898 = vmatpush1.bf16.xpose.msra.mxu0 0
      %3899 = vmatprep.subr.bf16.mxu0 0
      %3900 = vmatpush1.bf16.xpose.msra.mxu0 0
      %3901 = vmatprep.subr.bf16.mxu0 0
      %3902 = vmatpush1.bf16.xpose.msra.mxu0 0
      %3903 = vmatprep.subr.bf16.mxu0 0
      %3904 = vmatpush1.bf16.xpose.msra.mxu0 0
      %3905 = vmatprep.subr.bf16.mxu0 0
      %3906 = vmatpush1.bf16.xpose.msra.mxu0 0
      %3907 = vmatprep.mubr.bf16.mxu0 0
      %3908 = vmatmul.mubr.bf16.gmra.mrb[0].mxu0 %v3852
      %v3909 = vpop.f32.mrb[0].mxu0
      %v3910 = vadd.f32 %v2407, %v3909
      %v3911 = vpop.f32.mrb[0].mxu0
      %v3912 = vpop.f32.mrb[0].mxu0
      %v3913 = vadd.f32 %v2408, %v3912
      %v3914 = vpop.f32.mrb[0].mxu0
      %3915 = vmatprep.mubr.bf16.mxu0 0
      %3916 = vmatmul.mubr.bf16.gmra.mrb[0].mxu0 %v3855
      %v3917 = vpop.f32.mrb[0].mxu0
      %v3918 = vadd.f32 %v2409, %v3917
      %v3919 = vpop.f32.mrb[0].mxu0
      %v3920 = vpop.f32.mrb[0].mxu0
      %v3921 = vadd.f32 %v2410, %v3920
      %v3922 = vpop.f32.mrb[0].mxu0
      %3923 = vmatprep.mubr.bf16.mxu0 0
      %3924 = vmatmul.mubr.bf16.gmra.mrb[0].mxu0 %v3858
      %v3925 = vpop.f32.mrb[0].mxu0
      %v3926 = vadd.f32 %v2411, %v3925
      %v3927 = vpop.f32.mrb[0].mxu0
      %v3928 = vpop.f32.mrb[0].mxu0
      %v3929 = vadd.f32 %v2412, %v3928
      %v3930 = vpop.f32.mrb[0].mxu0
      %3931 = vmatprep.mubr.bf16.mxu0 0
      %3932 = vmatmul.mubr.bf16.gmra.mrb[0].mxu0 %v3861
      %v3933 = vpop.f32.mrb[0].mxu0
      %v3934 = vadd.f32 %v2413, %v3933
      %v3935 = vpop.f32.mrb[0].mxu0
      %v3936 = vpop.f32.mrb[0].mxu0
      %v3937 = vadd.f32 %v2414, %v3936
      %v3938 = vpop.f32.mrb[0].mxu0
      %3939 = vdwg.mxu0
      %v3940 = vsel %vm3081, %v3910, -inf
      %3941 = vmax.xlane.f32.xlu0 %v3940
      %v3942 = vpop.xlane.xlu0 %3941
      %v3943 = vsel %vm3081, %v3913, -inf
      %3944 = vmax.xlane.f32.xlu0 %v3943
      %v3945 = vpop.xlane.xlu0 %3944
      %v3946 = vsel %vm3081, %v3918, -inf
      %3947 = vmax.xlane.f32.xlu0 %v3946
      %v3948 = vpop.xlane.xlu0 %3947
      %v3949 = vsel %vm3081, %v3921, -inf
      %3950 = vmax.xlane.f32.xlu0 %v3949
      %v3951 = vpop.xlane.xlu0 %3950
      %v3952 = vsel %vm3081, %v3926, -inf
      %3953 = vmax.xlane.f32.xlu0 %v3952
      %v3954 = vpop.xlane.xlu0 %3953
      %v3955 = vsel %vm3081, %v3929, -inf
      %3956 = vmax.xlane.f32.xlu0 %v3955
      %v3957 = vpop.xlane.xlu0 %3956
      %v3958 = vsel %vm3081, %v3934, -inf
      %3959 = vmax.xlane.f32.xlu0 %v3958
      %v3960 = vpop.xlane.xlu0 %3959
      %v3961 = vsel %vm3081, %v3937, -inf
      %3962 = vmax.xlane.f32.xlu0 %v3961
      %v3963 = vpop.xlane.xlu0 %3962
      %v3964 = vsub.f32 %v3910, %v3942
      %v3965 = vsub.f32 %v3913, %v3945
      %v3966 = vsub.f32 %v3918, %v3948
      %v3967 = vsub.f32 %v3921, %v3951
      %v3968 = vsub.f32 %v3926, %v3954
      %v3969 = vsub.f32 %v3929, %v3957
      %v3970 = vsub.f32 %v3934, %v3960
      %v3971 = vsub.f32 %v3937, %v3963
      %v3972 = vmul.f32 %v3964, 1.442695
      %v3973 = vpow.pop %v3972
      %v3974 = vmul.f32 %v3965, 1.442695
      %v3975 = vpow.pop %v3974
      %v3976 = vmul.f32 %v3966, 1.442695
      %v3977 = vpow.pop %v3976
      %v3978 = vmul.f32 %v3967, 1.442695
      %v3979 = vpow.pop %v3978
      %v3980 = vmul.f32 %v3968, 1.442695
      %v3981 = vpow.pop %v3980
      %v3982 = vmul.f32 %v3969, 1.442695
      %v3983 = vpow.pop %v3982
      %v3984 = vmul.f32 %v3970, 1.442695
      %v3985 = vpow.pop %v3984
      %v3986 = vmul.f32 %v3971, 1.442695
      %v3987 = vpow.pop %v3986
      %v3988 = vsel %vm3081, %v3973, 0.0
      %3989 = vadd.xlane.f32.xlu0 %v3988
      %v3990 = vpop.xlane.xlu0 %3989
      %v3991 = vsel %vm3081, %v3975, 0.0
      %3992 = vadd.xlane.f32.xlu0 %v3991
      %v3993 = vpop.xlane.xlu0 %3992
      %v3994 = vsel %vm3081, %v3977, 0.0
      %3995 = vadd.xlane.f32.xlu0 %v3994
      %v3996 = vpop.xlane.xlu0 %3995
      %v3997 = vsel %vm3081, %v3979, 0.0
      %3998 = vadd.xlane.f32.xlu0 %v3997
      %v3999 = vpop.xlane.xlu0 %3998
      %v4000 = vsel %vm3081, %v3981, 0.0
      %4001 = vadd.xlane.f32.xlu0 %v4000
      %v4002 = vpop.xlane.xlu0 %4001
      %v4003 = vsel %vm3081, %v3983, 0.0
      %4004 = vadd.xlane.f32.xlu0 %v4003
      %v4005 = vpop.xlane.xlu0 %4004
      %v4006 = vsel %vm3081, %v3985, 0.0
      %4007 = vadd.xlane.f32.xlu0 %v4006
      %v4008 = vpop.xlane.xlu0 %4007
      %v4009 = vsel %vm3081, %v3987, 0.0
      %4010 = vadd.xlane.f32.xlu0 %v4009
      %v4011 = vpop.xlane.xlu0 %4010
      %v4012 = vrcp.pop %v3990
      %v4013 = vrcp.pop %v3993
      %v4014 = vrcp.pop %v3996
      %v4015 = vrcp.pop %v3999
      %v4016 = vrcp.pop %v4002
      %v4017 = vrcp.pop %v4005
      %v4018 = vrcp.pop %v4008
      %v4019 = vrcp.pop %v4011
      %v4020 = vmul.f32 %v3973, %v4012
      %v4021 = vmul.f32 %v3975, %v4013
      %v4022 = vmul.f32 %v3977, %v4014
      %v4023 = vmul.f32 %v3979, %v4015
      %v4024 = vmul.f32 %v3981, %v4016
      %v4025 = vmul.f32 %v3983, %v4017
      %v4026 = vmul.f32 %v3985, %v4018
      %v4027 = vmul.f32 %v3987, %v4019
      %v4028 = vpack.c.bf16 %v4021, %v4020
      %v4029 = vpack.c.bf16 %v4023, %v4022
      %v4030 = vpack.c.bf16 %v4025, %v4024
      %v4031 = vpack.c.bf16 %v4027, %v4026
      %4032 = vrot.lane.b32.xlu0 %v2987, 104
      %v4033 = vpop.permute.xlu0 %4032
      %4034 = vrot.lane.b32.xlu0 %v2988, 104
      %v4035 = vpop.permute.xlu0 %4034
      %4036 = vrot.lane.b32.xlu0 %v2989, 104
      %v4037 = vpop.permute.xlu0 %4036
      %4038 = vrot.lane.b32.xlu0 %v2990, 104
      %v4039 = vpop.permute.xlu0 %4038
      %v4045 = vsel %vm3081, %v4028, 0
      %v4048 = vsel %vm3081, %v4029, 0
      %v4051 = vsel %vm3081, %v4030, 0
      %v4054 = vsel %vm3081, %v4031, 0
      %4056 = vmatprep.subr.bf16.mxu0 0
      %4057 = vmatpush1.bf16.msra.mxu0 %v4033
      %4058 = vmatprep.subr.bf16.mxu0 0
      %4059 = vmatpush1.bf16.msra.mxu0 %v4035
      %4060 = vmatprep.subr.bf16.mxu0 0
      %4061 = vmatpush1.bf16.msra.mxu0 %v4037
      %4062 = vmatprep.subr.bf16.mxu0 0
      %4063 = vmatpush1.bf16.msra.mxu0 %v4039
      %4064 = vmatprep.subr.bf16.mxu0 0
      %4065 = vmatpush1.bf16.msra.mxu0 0
      %4066 = vmatprep.subr.bf16.mxu0 0
      %4067 = vmatpush1.bf16.msra.mxu0 0
      %4068 = vmatprep.subr.bf16.mxu0 0
      %4069 = vmatpush1.bf16.msra.mxu0 0
      %4070 = vmatprep.subr.bf16.mxu0 0
      %4071 = vmatpush1.bf16.msra.mxu0 0
      %4072 = vmatprep.subr.bf16.mxu0 0
      %4073 = vmatpush1.bf16.msra.mxu0 0
      %4074 = vmatprep.subr.bf16.mxu0 0
      %4075 = vmatpush1.bf16.msra.mxu0 0
      %4076 = vmatprep.subr.bf16.mxu0 0
      %4077 = vmatpush1.bf16.msra.mxu0 0
      %4078 = vmatprep.subr.bf16.mxu0 0
      %4079 = vmatpush1.bf16.msra.mxu0 0
      %4080 = vmatprep.subr.bf16.mxu0 0
      %4081 = vmatpush1.bf16.msra.mxu0 0
      %4082 = vmatprep.subr.bf16.mxu0 0
      %4083 = vmatpush1.bf16.msra.mxu0 0
      %4084 = vmatprep.subr.bf16.mxu0 0
      %4085 = vmatpush1.bf16.msra.mxu0 0
      %4086 = vmatprep.subr.bf16.mxu0 0
      %4087 = vmatpush1.bf16.msra.mxu0 0
      %4088 = vmatprep.mubr.bf16.mxu0 0
      %4089 = vmatmul.mubr.bf16.gmra.mrb[0].mxu0 %v4045
      %v4090 = vpop.f32.mrb[0].mxu0
      %v4091 = vadd.f32 0.0, %v4090
      %v4092 = vpop.f32.mrb[0].mxu0
      %v4093 = vpop.f32.mrb[0].mxu0
      %v4094 = vadd.f32 0.0, %v4093
      %v4095 = vpop.f32.mrb[0].mxu0
      %4096 = vmatprep.mubr.bf16.mxu0 0
      %4097 = vmatmul.mubr.bf16.gmra.mrb[0].mxu0 %v4048
      %v4098 = vpop.f32.mrb[0].mxu0
      %v4099 = vadd.f32 0.0, %v4098
      %v4100 = vpop.f32.mrb[0].mxu0
      %v4101 = vpop.f32.mrb[0].mxu0
      %v4102 = vadd.f32 0.0, %v4101
      %v4103 = vpop.f32.mrb[0].mxu0
      %4104 = vmatprep.mubr.bf16.mxu0 0
      %4105 = vmatmul.mubr.bf16.gmra.mrb[0].mxu0 %v4051
      %v4106 = vpop.f32.mrb[0].mxu0
      %v4107 = vadd.f32 0.0, %v4106
      %v4108 = vpop.f32.mrb[0].mxu0
      %v4109 = vpop.f32.mrb[0].mxu0
      %v4110 = vadd.f32 0.0, %v4109
      %v4111 = vpop.f32.mrb[0].mxu0
      %4112 = vmatprep.mubr.bf16.mxu0 0
      %4113 = vmatmul.mubr.bf16.gmra.mrb[0].mxu0 %v4054
      %v4114 = vpop.f32.mrb[0].mxu0
      %v4115 = vadd.f32 0.0, %v4114
      %v4116 = vpop.f32.mrb[0].mxu0
      %v4117 = vpop.f32.mrb[0].mxu0
      %v4118 = vadd.f32 0.0, %v4117
      %v4119 = vpop.f32.mrb[0].mxu0
      %4120 = vdwg.mxu0
      %4129 = vrot.lane.b32.xlu0 %v3519, 8
      %v4130 = vpop.permute.xlu0 %4129
      %4131 = vrot.lane.b32.xlu0 %v3522, 8
      %v4132 = vpop.permute.xlu0 %4131
      %4133 = vrot.lane.b32.xlu0 %v3527, 8
      %v4134 = vpop.permute.xlu0 %4133
      %4135 = vrot.lane.b32.xlu0 %v3530, 8
      %v4136 = vpop.permute.xlu0 %4135
      %4137 = vrot.lane.b32.xlu0 %v3535, 8
      %v4138 = vpop.permute.xlu0 %4137
      %4139 = vrot.lane.b32.xlu0 %v3538, 8
      %v4140 = vpop.permute.xlu0 %4139
      %4141 = vrot.lane.b32.xlu0 %v3543, 8
      %v4142 = vpop.permute.xlu0 %4141
      %4143 = vrot.lane.b32.xlu0 %v3546, 8
      %v4144 = vpop.permute.xlu0 %4143
      %4161 = vrot.lane.b32.xlu0 %v3805, 16
      %v4162 = vpop.permute.xlu0 %4161
      %4163 = vrot.lane.b32.xlu0 %v3808, 16
      %v4164 = vpop.permute.xlu0 %4163
      %4165 = vrot.lane.b32.xlu0 %v3813, 16
      %v4166 = vpop.permute.xlu0 %4165
      %4167 = vrot.lane.b32.xlu0 %v3816, 16
      %v4168 = vpop.permute.xlu0 %4167
      %4169 = vrot.lane.b32.xlu0 %v3821, 16
      %v4170 = vpop.permute.xlu0 %4169
      %4171 = vrot.lane.b32.xlu0 %v3824, 16
      %v4172 = vpop.permute.xlu0 %4171
      %4173 = vrot.lane.b32.xlu0 %v3829, 16
      %v4174 = vpop.permute.xlu0 %4173
      %4175 = vrot.lane.b32.xlu0 %v3832, 16
      %v4176 = vpop.permute.xlu0 %4175
      %4193 = vrot.lane.b32.xlu0 %v4091, 24
      %v4194 = vpop.permute.xlu0 %4193
      %4195 = vrot.lane.b32.xlu0 %v4094, 24
      %v4196 = vpop.permute.xlu0 %4195
      %4197 = vrot.lane.b32.xlu0 %v4099, 24
      %v4198 = vpop.permute.xlu0 %4197
      %4199 = vrot.lane.b32.xlu0 %v4102, 24
      %v4200 = vpop.permute.xlu0 %4199
      %4201 = vrot.lane.b32.xlu0 %v4107, 24
      %v4202 = vpop.permute.xlu0 %4201
      %4203 = vrot.lane.b32.xlu0 %v4110, 24
      %v4204 = vpop.permute.xlu0 %4203
      %4205 = vrot.lane.b32.xlu0 %v4115, 24
      %v4206 = vpop.permute.xlu0 %4205
      %4207 = vrot.lane.b32.xlu0 %v4118, 24
      %v4208 = vpop.permute.xlu0 %4207
      %v4217 = vsel %vm2991, %v3221, %v4130
      %v4218 = vsel %vm2991, %v3224, %v4132
      %v4219 = vsel %vm2991, %v3229, %v4134
      %v4220 = vsel %vm2991, %v3232, %v4136
      %v4221 = vsel %vm2991, %v3237, %v4138
      %v4222 = vsel %vm2991, %v3240, %v4140
      %v4223 = vsel %vm2991, %v3245, %v4142
      %v4224 = vsel %vm2991, %v3248, %v4144
      %vm4225 = vcmask 130048
      %v4226 = vsel %vm4225, %v4217, %v4162
      %v4227 = vsel %vm4225, %v4218, %v4164
      %v4228 = vsel %vm4225, %v4219, %v4166
      %v4229 = vsel %vm4225, %v4220, %v4168
      %v4230 = vsel %vm4225, %v4221, %v4170
      %v4231 = vsel %vm4225, %v4222, %v4172
      %v4232 = vsel %vm4225, %v4223, %v4174
      %v4233 = vsel %vm4225, %v4224, %v4176
      %vm4234 = vcmask 195584
      %v4235 = vsel %vm4234, %v4226, %v4194
      %v4236 = vsel %vm4234, %v4227, %v4196
      %v4237 = vsel %vm4234, %v4228, %v4198
      %v4238 = vsel %vm4234, %v4229, %v4200
      %v4239 = vsel %vm4234, %v4230, %v4202
      %v4240 = vsel %vm4234, %v4231, %v4204
      %v4241 = vsel %vm4234, %v4232, %v4206
      %v4242 = vsel %vm4234, %v4233, %v4208
      %v4243 = vpack.c.bf16 %v4236, %v4235
      %v4244 = vpack.c.bf16 %v4238, %v4237
      %v4245 = vpack.c.bf16 %v4240, %v4239
      %v4246 = vpack.c.bf16 %v4242, %v4241
      %s4247 = smul.u32 %s2416, 4
      %s4248 = smul.addr %s4247, 4
      %s4249 = scalar_lea.vmem %s16, %s4248
      %v4250 = vld [vmem:[%s4249] sm:$0xf]
      %v4251 = vld [vmem:[%s4249 + $0x4] sm:$0xf]
      %v4252 = vld [vmem:[%s4249 + $0x8] sm:$0xf]
      %v4253 = vld [vmem:[%s4249 + $0xc] sm:$0xf]
      %v4258 = vunpack.c.l.b16 %v4250
      %v4259 = vunpack.c.l.b16 %v4251
      %v4260 = vunpack.c.l.b16 %v4252
      %v4261 = vunpack.c.l.b16 %v4253
      %v4262 = vpack.c.b16 %v4259, %v4258
      %v4263 = vpack.c.b16 %v4261, %v4260
      %vm4266 = vcmask 261120
      %v4268 = vsel %vm4266, %v4243, 0
      %v4271 = vsel %vm4266, %v4244, 0
      %v4274 = vsel %vm4266, %v4245, 0
      %v4277 = vsel %vm4266, %v4246, 0
      %4279 = vmatprep.subr.bf16.mxu0 0
      %4280 = vmatpush1.bf16.msra.mxu0 %v4262
      %4281 = vmatprep.subr.bf16.mxu0 0
      %4282 = vmatpush1.bf16.msra.mxu0 %v4263
      %4283 = vmatprep.subr.bf16.mxu0 0
      %4284 = vmatpush1.bf16.msra.mxu0 0
      %4285 = vmatprep.subr.bf16.mxu0 0
      %4286 = vmatpush1.bf16.msra.mxu0 0
      %4287 = vmatprep.subr.bf16.mxu0 0
      %4288 = vmatpush1.bf16.msra.mxu0 0
      %4289 = vmatprep.subr.bf16.mxu0 0
      %4290 = vmatpush1.bf16.msra.mxu0 0
      %4291 = vmatprep.subr.bf16.mxu0 0
      %4292 = vmatpush1.bf16.msra.mxu0 0
      %4293 = vmatprep.subr.bf16.mxu0 0
      %4294 = vmatpush1.bf16.msra.mxu0 0
      %4295 = vmatprep.subr.bf16.mxu0 0
      %4296 = vmatpush1.bf16.msra.mxu0 0
      %4297 = vmatprep.subr.bf16.mxu0 0
      %4298 = vmatpush1.bf16.msra.mxu0 0
      %4299 = vmatprep.subr.bf16.mxu0 0
      %4300 = vmatpush1.bf16.msra.mxu0 0
      %4301 = vmatprep.subr.bf16.mxu0 0
      %4302 = vmatpush1.bf16.msra.mxu0 0
      %4303 = vmatprep.subr.bf16.mxu0 0
      %4304 = vmatpush1.bf16.msra.mxu0 0
      %4305 = vmatprep.subr.bf16.mxu0 0
      %4306 = vmatpush1.bf16.msra.mxu0 0
      %4307 = vmatprep.subr.bf16.mxu0 0
      %4308 = vmatpush1.bf16.msra.mxu0 0
      %4309 = vmatprep.subr.bf16.mxu0 0
      %4310 = vmatpush1.bf16.msra.mxu0 0
      %4311 = vmatprep.mubr.bf16.mxu0 0
      %4312 = vmatmul.mubr.bf16.gmra.mrb[0].mxu0 %v4268
      %v4313 = vpop.f32.mrb[0].mxu0
      %v4314 = vadd.f32 0.0, %v4313
      %v4315 = vpop.f32.mrb[0].mxu0
      %v4316 = vpop.f32.mrb[0].mxu0
      %v4317 = vadd.f32 0.0, %v4316
      %v4318 = vpop.f32.mrb[0].mxu0
      %4319 = vmatprep.mubr.bf16.mxu0 0
      %4320 = vmatmul.mubr.bf16.gmra.mrb[0].mxu0 %v4271
      %v4321 = vpop.f32.mrb[0].mxu0
      %v4322 = vadd.f32 0.0, %v4321
      %v4323 = vpop.f32.mrb[0].mxu0
      %v4324 = vpop.f32.mrb[0].mxu0
      %v4325 = vadd.f32 0.0, %v4324
      %v4326 = vpop.f32.mrb[0].mxu0
      %4327 = vmatprep.mubr.bf16.mxu0 0
      %4328 = vmatmul.mubr.bf16.gmra.mrb[0].mxu0 %v4274
      %v4329 = vpop.f32.mrb[0].mxu0
      %v4330 = vadd.f32 0.0, %v4329
      %v4331 = vpop.f32.mrb[0].mxu0
      %v4332 = vpop.f32.mrb[0].mxu0
      %v4333 = vadd.f32 0.0, %v4332
      %v4334 = vpop.f32.mrb[0].mxu0
      %4335 = vmatprep.mubr.bf16.mxu0 0
      %4336 = vmatmul.mubr.bf16.gmra.mrb[0].mxu0 %v4277
      %v4337 = vpop.f32.mrb[0].mxu0
      %v4338 = vadd.f32 0.0, %v4337
      %v4339 = vpop.f32.mrb[0].mxu0
      %v4340 = vpop.f32.mrb[0].mxu0
      %v4341 = vadd.f32 0.0, %v4340
      %v4342 = vpop.f32.mrb[0].mxu0
      %4343 = vdwg.mxu0
      %v4344 = vadd.f32 %v2421, %v4314
      %v4345 = vadd.f32 %v2422, %v4317
      %v4346 = vadd.f32 %v2423, %v4322
      %v4347 = vadd.f32 %v2424, %v4325
      %v4348 = vadd.f32 %v2425, %v4330
      %v4349 = vadd.f32 %v2426, %v4333
      %v4350 = vadd.f32 %v2427, %v4338
      %v4351 = vadd.f32 %v2428, %v4341
      %s4352 = scalar_lea.vmem %s17, %s2416
      %v4353 = vld [vmem:[%s4352] sm:$0x1]
      %v4355 = vlaneseq
      %v4356 = vshrl.u32 %v4355, 7
      %v4357 = vsub.s32 0, %v4356
      %v4358 = vrot.slane %v4353, %v4357
      %v4360 = vadd.f32 %v4344, %v4358
      %v4361 = vadd.f32 %v4345, %v4358
      %v4362 = vadd.f32 %v4346, %v4358
      %v4363 = vadd.f32 %v4347, %v4358
      %v4364 = vadd.f32 %v4348, %v4358
      %v4365 = vadd.f32 %v4349, %v4358
      %v4366 = vadd.f32 %v4350, %v4358
      %v4367 = vadd.f32 %v4351, %v4358
      %s4368 = scalar_lea.vmem %s18, %s2416
      %v4369 = vld [vmem:[%s4368] sm:$0x1]
      %s4370 = scalar_lea.vmem %s19, %s2416
      %v4371 = vld [vmem:[%s4370] sm:$0x1]
      %v4372 = vmul.f32 %v4360, %v261
      %v4373 = vmul.f32 %v4361, %v261
      %v4374 = vmul.f32 %v4362, %v261
      %v4375 = vmul.f32 %v4363, %v261
      %v4376 = vmul.f32 %v4364, %v261
      %v4377 = vmul.f32 %v4365, %v261
      %v4378 = vmul.f32 %v4366, %v261
      %v4379 = vmul.f32 %v4367, %v261
      %4380 = vadd.xlane.f32.xlu0 %v4372
      %v4381 = vpop.xlane.xlu0 %4380
      %4382 = vadd.xlane.f32.xlu0 %v4373
      %v4383 = vpop.xlane.xlu0 %4382
      %4384 = vadd.xlane.f32.xlu0 %v4374
      %v4385 = vpop.xlane.xlu0 %4384
      %4386 = vadd.xlane.f32.xlu0 %v4375
      %v4387 = vpop.xlane.xlu0 %4386
      %4388 = vadd.xlane.f32.xlu0 %v4376
      %v4389 = vpop.xlane.xlu0 %4388
      %4390 = vadd.xlane.f32.xlu0 %v4377
      %v4391 = vpop.xlane.xlu0 %4390
      %4392 = vadd.xlane.f32.xlu0 %v4378
      %v4393 = vpop.xlane.xlu0 %4392
      %4394 = vadd.xlane.f32.xlu0 %v4379
      %v4395 = vpop.xlane.xlu0 %4394
      %v4396 = vmul.f32 %v4381, 0.03125
      %v4397 = vmul.f32 %v4383, 0.03125
      %v4398 = vmul.f32 %v4385, 0.03125
      %v4399 = vmul.f32 %v4387, 0.03125
      %v4400 = vmul.f32 %v4389, 0.03125
      %v4401 = vmul.f32 %v4391, 0.03125
      %v4402 = vmul.f32 %v4393, 0.03125
      %v4403 = vmul.f32 %v4395, 0.03125
      %v4404 = vsub.f32 %v4360, %v4396
      %v4405 = vsub.f32 %v4361, %v4397
      %v4406 = vsub.f32 %v4362, %v4398
      %v4407 = vsub.f32 %v4363, %v4399
      %v4408 = vsub.f32 %v4364, %v4400
      %v4409 = vsub.f32 %v4365, %v4401
      %v4410 = vsub.f32 %v4366, %v4402
      %v4411 = vsub.f32 %v4367, %v4403
      %v4412 = vmul.f32 %v4404, %v261
      %v4413 = vmul.f32 %v4405, %v261
      %v4414 = vmul.f32 %v4406, %v261
      %v4415 = vmul.f32 %v4407, %v261
      %v4416 = vmul.f32 %v4408, %v261
      %v4417 = vmul.f32 %v4409, %v261
      %v4418 = vmul.f32 %v4410, %v261
      %v4419 = vmul.f32 %v4411, %v261
      %v4420 = vmul.f32 %v4412, %v4412
      %v4421 = vmul.f32 %v4413, %v4413
      %v4422 = vmul.f32 %v4414, %v4414
      %v4423 = vmul.f32 %v4415, %v4415
      %v4424 = vmul.f32 %v4416, %v4416
      %v4425 = vmul.f32 %v4417, %v4417
      %v4426 = vmul.f32 %v4418, %v4418
      %v4427 = vmul.f32 %v4419, %v4419
      %4428 = vadd.xlane.f32.xlu0 %v4420
      %v4429 = vpop.xlane.xlu0 %4428
      %4430 = vadd.xlane.f32.xlu0 %v4421
      %v4431 = vpop.xlane.xlu0 %4430
      %4432 = vadd.xlane.f32.xlu0 %v4422
      %v4433 = vpop.xlane.xlu0 %4432
      %4434 = vadd.xlane.f32.xlu0 %v4423
      %v4435 = vpop.xlane.xlu0 %4434
      %4436 = vadd.xlane.f32.xlu0 %v4424
      %v4437 = vpop.xlane.xlu0 %4436
      %4438 = vadd.xlane.f32.xlu0 %v4425
      %v4439 = vpop.xlane.xlu0 %4438
      %4440 = vadd.xlane.f32.xlu0 %v4426
      %v4441 = vpop.xlane.xlu0 %4440
      %4442 = vadd.xlane.f32.xlu0 %v4427
      %v4443 = vpop.xlane.xlu0 %4442
      %v4444 = vmul.f32 %v4429, 0.03125
      %v4445 = vmul.f32 %v4431, 0.03125
      %v4446 = vmul.f32 %v4433, 0.03125
      %v4447 = vmul.f32 %v4435, 0.03125
      %v4448 = vmul.f32 %v4437, 0.03125
      %v4449 = vmul.f32 %v4439, 0.03125
      %v4450 = vmul.f32 %v4441, 0.03125
      %v4451 = vmul.f32 %v4443, 0.03125
      %v4452 = vadd.f32 %v4444, 1e-05
      %v4453 = vadd.f32 %v4445, 1e-05
      %v4454 = vadd.f32 %v4446, 1e-05
      %v4455 = vadd.f32 %v4447, 1e-05
      %v4456 = vadd.f32 %v4448, 1e-05
      %v4457 = vadd.f32 %v4449, 1e-05
      %v4458 = vadd.f32 %v4450, 1e-05
      %v4459 = vadd.f32 %v4451, 1e-05
      %v4460 = vrsqrt.pop %v4452
      %v4461 = vrsqrt.pop %v4453
      %v4462 = vrsqrt.pop %v4454
      %v4463 = vrsqrt.pop %v4455
      %v4464 = vrsqrt.pop %v4456
      %v4465 = vrsqrt.pop %v4457
      %v4466 = vrsqrt.pop %v4458
      %v4467 = vrsqrt.pop %v4459
      %v4468 = vmul.f32 %v4412, %v4460
      %v4469 = vmul.f32 %v4413, %v4461
      %v4470 = vmul.f32 %v4414, %v4462
      %v4471 = vmul.f32 %v4415, %v4463
      %v4472 = vmul.f32 %v4416, %v4464
      %v4473 = vmul.f32 %v4417, %v4465
      %v4474 = vmul.f32 %v4418, %v4466
      %v4475 = vmul.f32 %v4419, %v4467
      %v4477 = vlaneseq
      %v4478 = vshrl.u32 %v4477, 7
      %v4479 = vsub.s32 0, %v4478
      %v4480 = vrot.slane %v4369, %v4479
      %v4482 = vmul.f32 %v4468, %v4480
      %v4483 = vmul.f32 %v4469, %v4480
      %v4484 = vmul.f32 %v4470, %v4480
      %v4485 = vmul.f32 %v4471, %v4480
      %v4486 = vmul.f32 %v4472, %v4480
      %v4487 = vmul.f32 %v4473, %v4480
      %v4488 = vmul.f32 %v4474, %v4480
      %v4489 = vmul.f32 %v4475, %v4480
      %v4491 = vlaneseq
      %v4492 = vshrl.u32 %v4491, 7
      %v4493 = vsub.s32 0, %v4492
      %v4494 = vrot.slane %v4371, %v4493
      %v4496 = vadd.f32 %v4482, %v4494
      %v4497 = vadd.f32 %v4483, %v4494
      %v4498 = vadd.f32 %v4484, %v4494
      %v4499 = vadd.f32 %v4485, %v4494
      %v4500 = vadd.f32 %v4486, %v4494
      %v4501 = vadd.f32 %v4487, %v4494
      %v4502 = vadd.f32 %v4488, %v4494
      %v4503 = vadd.f32 %v4489, %v4494
      %v4504 = vpack.c.bf16 %v4497, %v4496
      %v4505 = vpack.c.bf16 %v4499, %v4498
      %v4506 = vpack.c.bf16 %v4501, %v4500
      %v4507 = vpack.c.bf16 %v4503, %v4502
      %s4508 = smul.addr %s2569, 4
      %s4509 = scalar_lea.vmem [#allocation20], %s4508
      %v4510 = vld [vmem:[%s4509] sm:$0xf]
      %v4511 = vld [vmem:[%s4509 + $0x4] sm:$0xf]
      %v4512 = vld [vmem:[%s4509 + $0x8] sm:$0xf]
      %v4513 = vld [vmem:[%s4509 + $0xc] sm:$0xf]
      %v4514 = vld [vmem:[%s4509 + $0x10] sm:$0xf]
      %v4515 = vld [vmem:[%s4509 + $0x14] sm:$0xf]
      %v4516 = vld [vmem:[%s4509 + $0x18] sm:$0xf]
      %v4517 = vld [vmem:[%s4509 + $0x1c] sm:$0xf]
      %v4518 = vld [vmem:[%s4509 + $0x20] sm:$0xf]
      %v4519 = vld [vmem:[%s4509 + $0x24] sm:$0xf]
      %v4520 = vld [vmem:[%s4509 + $0x28] sm:$0xf]
      %v4521 = vld [vmem:[%s4509 + $0x2c] sm:$0xf]
      %v4522 = vld [vmem:[%s4509 + $0x30] sm:$0xf]
      %v4523 = vld [vmem:[%s4509 + $0x34] sm:$0xf]
      %v4524 = vld [vmem:[%s4509 + $0x38] sm:$0xf]
      %v4525 = vld [vmem:[%s4509 + $0x3c] sm:$0xf]
      %s4526 = scalar_lea.vmem %s21, %s2416
      %v4527 = vld [vmem:[%s4526] sm:$0x1]
      %v4529 = vlaneseq
      %v4530 = vshrl.u32 %v4529, 7
      %v4531 = vsub.s32 0, %v4530
      %v4532 = vrot.slane %v4527, %v4531
      %v4550 = vunpack.c.l.b16 %v4510
      %v4551 = vunpack.c.l.b16 %v4511
      %v4552 = vunpack.c.l.b16 %v4512
      %v4553 = vunpack.c.l.b16 %v4513
      %v4554 = vunpack.c.l.b16 %v4514
      %v4555 = vunpack.c.l.b16 %v4515
      %v4556 = vunpack.c.l.b16 %v4516
      %v4557 = vunpack.c.l.b16 %v4517
      %v4558 = vunpack.c.l.b16 %v4518
      %v4559 = vunpack.c.l.b16 %v4519
      %v4560 = vunpack.c.l.b16 %v4520
      %v4561 = vunpack.c.l.b16 %v4521
      %v4562 = vunpack.c.l.b16 %v4522
      %v4563 = vunpack.c.l.b16 %v4523
      %v4564 = vunpack.c.l.b16 %v4524
      %v4565 = vunpack.c.l.b16 %v4525
      %v4566 = vpack.c.b16 %v4551, %v4550
      %v4567 = vpack.c.b16 %v4553, %v4552
      %v4568 = vpack.c.b16 %v4555, %v4554
      %v4569 = vpack.c.b16 %v4557, %v4556
      %v4570 = vpack.c.b16 %v4559, %v4558
      %v4571 = vpack.c.b16 %v4561, %v4560
      %v4572 = vpack.c.b16 %v4563, %v4562
      %v4573 = vpack.c.b16 %v4565, %v4564
      %4582 = vmatprep.subr.bf16.mxu0 0
      %4583 = vmatpush1.bf16.msra.mxu0 %v4566
      %4584 = vmatprep.subr.bf16.mxu0 0
      %4585 = vmatpush1.bf16.msra.mxu0 %v4567
      %4586 = vmatprep.subr.bf16.mxu0 0
      %4587 = vmatpush1.bf16.msra.mxu0 %v4568
      %4588 = vmatprep.subr.bf16.mxu0 0
      %4589 = vmatpush1.bf16.msra.mxu0 %v4569
      %4590 = vmatprep.subr.bf16.mxu0 0
      %4591 = vmatpush1.bf16.msra.mxu0 %v4570
      %4592 = vmatprep.subr.bf16.mxu0 0
      %4593 = vmatpush1.bf16.msra.mxu0 %v4571
      %4594 = vmatprep.subr.bf16.mxu0 0
      %4595 = vmatpush1.bf16.msra.mxu0 %v4572
      %4596 = vmatprep.subr.bf16.mxu0 0
      %4597 = vmatpush1.bf16.msra.mxu0 %v4573
      %4598 = vmatprep.subr.bf16.mxu0 0
      %4599 = vmatpush1.bf16.msra.mxu0 0
      %4600 = vmatprep.subr.bf16.mxu0 0
      %4601 = vmatpush1.bf16.msra.mxu0 0
      %4602 = vmatprep.subr.bf16.mxu0 0
      %4603 = vmatpush1.bf16.msra.mxu0 0
      %4604 = vmatprep.subr.bf16.mxu0 0
      %4605 = vmatpush1.bf16.msra.mxu0 0
      %4606 = vmatprep.subr.bf16.mxu0 0
      %4607 = vmatpush1.bf16.msra.mxu0 0
      %4608 = vmatprep.subr.bf16.mxu0 0
      %4609 = vmatpush1.bf16.msra.mxu0 0
      %4610 = vmatprep.subr.bf16.mxu0 0
      %4611 = vmatpush1.bf16.msra.mxu0 0
      %4612 = vmatprep.subr.bf16.mxu0 0
      %4613 = vmatpush1.bf16.msra.mxu0 0
      %4614 = vmatprep.mubr.bf16.mxu0 0
      %4615 = vmatmul.mubr.bf16.gmra.mrb[0].mxu0 %v4504
      %v4616 = vpop.f32.mrb[0].mxu0
      %v4617 = vadd.f32 %v4532, %v4616
      %v4618 = vpop.f32.mrb[0].mxu0
      %v4619 = vpop.f32.mrb[0].mxu0
      %v4620 = vadd.f32 %v4532, %v4619
      %v4621 = vpop.f32.mrb[0].mxu0
      %4622 = vmatprep.mubr.bf16.mxu0 0
      %4623 = vmatmul.mubr.bf16.gmra.mrb[0].mxu0 %v4505
      %v4624 = vpop.f32.mrb[0].mxu0
      %v4625 = vadd.f32 %v4532, %v4624
      %v4626 = vpop.f32.mrb[0].mxu0
      %v4627 = vpop.f32.mrb[0].mxu0
      %v4628 = vadd.f32 %v4532, %v4627
      %v4629 = vpop.f32.mrb[0].mxu0
      %4630 = vmatprep.mubr.bf16.mxu0 0
      %4631 = vmatmul.mubr.bf16.gmra.mrb[0].mxu0 %v4506
      %v4632 = vpop.f32.mrb[0].mxu0
      %v4633 = vadd.f32 %v4532, %v4632
      %v4634 = vpop.f32.mrb[0].mxu0
      %v4635 = vpop.f32.mrb[0].mxu0
      %v4636 = vadd.f32 %v4532, %v4635
      %v4637 = vpop.f32.mrb[0].mxu0
      %4638 = vmatprep.mubr.bf16.mxu0 0
      %4639 = vmatmul.mubr.bf16.gmra.mrb[0].mxu0 %v4507
      %v4640 = vpop.f32.mrb[0].mxu0
      %v4641 = vadd.f32 %v4532, %v4640
      %v4642 = vpop.f32.mrb[0].mxu0
      %v4643 = vpop.f32.mrb[0].mxu0
      %v4644 = vadd.f32 %v4532, %v4643
      %v4645 = vpop.f32.mrb[0].mxu0
      %4646 = vdwg.mxu0
      %v4647 = vmul.f32 %v4617, 0.5
      %v4648 = vmul.f32 %v4620, 0.5
      %v4649 = vmul.f32 %v4625, 0.5
      %v4650 = vmul.f32 %v4628, 0.5
      %v4651 = vmul.f32 %v4633, 0.5
      %v4652 = vmul.f32 %v4636, 0.5
      %v4653 = vmul.f32 %v4641, 0.5
      %v4654 = vmul.f32 %v4644, 0.5
      %v4655 = vmul.f32 %v4617, 0.044715
      %v4656 = vmul.f32 %v4620, 0.044715
      %v4657 = vmul.f32 %v4625, 0.044715
      %v4658 = vmul.f32 %v4628, 0.044715
      %v4659 = vmul.f32 %v4633, 0.044715
      %v4660 = vmul.f32 %v4636, 0.044715
      %v4661 = vmul.f32 %v4641, 0.044715
      %v4662 = vmul.f32 %v4644, 0.044715
      %v4663 = vmul.f32 %v4655, %v4617
      %v4664 = vmul.f32 %v4656, %v4620
      %v4665 = vmul.f32 %v4657, %v4625
      %v4666 = vmul.f32 %v4658, %v4628
      %v4667 = vmul.f32 %v4659, %v4633
      %v4668 = vmul.f32 %v4660, %v4636
      %v4669 = vmul.f32 %v4661, %v4641
      %v4670 = vmul.f32 %v4662, %v4644
      %v4671 = vmul.f32 %v4663, %v4617
      %v4672 = vmul.f32 %v4664, %v4620
      %v4673 = vmul.f32 %v4665, %v4625
      %v4674 = vmul.f32 %v4666, %v4628
      %v4675 = vmul.f32 %v4667, %v4633
      %v4676 = vmul.f32 %v4668, %v4636
      %v4677 = vmul.f32 %v4669, %v4641
      %v4678 = vmul.f32 %v4670, %v4644
      %v4679 = vadd.f32 %v4617, %v4671
      %v4680 = vadd.f32 %v4620, %v4672
      %v4681 = vadd.f32 %v4625, %v4673
      %v4682 = vadd.f32 %v4628, %v4674
      %v4683 = vadd.f32 %v4633, %v4675
      %v4684 = vadd.f32 %v4636, %v4676
      %v4685 = vadd.f32 %v4641, %v4677
      %v4686 = vadd.f32 %v4644, %v4678
      %v4687 = vmul.f32 %v4679, 0.7978846
      %v4688 = vmul.f32 %v4680, 0.7978846
      %v4689 = vmul.f32 %v4681, 0.7978846
      %v4690 = vmul.f32 %v4682, 0.7978846
      %v4691 = vmul.f32 %v4683, 0.7978846
      %v4692 = vmul.f32 %v4684, 0.7978846
      %v4693 = vmul.f32 %v4685, 0.7978846
      %v4694 = vmul.f32 %v4686, 0.7978846
      %v4695 = vtanh.pop %v4687
      %v4696 = vtanh.pop %v4688
      %v4697 = vtanh.pop %v4689
      %v4698 = vtanh.pop %v4690
      %v4699 = vtanh.pop %v4691
      %v4700 = vtanh.pop %v4692
      %v4701 = vtanh.pop %v4693
      %v4702 = vtanh.pop %v4694
      %v4703 = vadd.f32 %v4695, 1.0
      %v4704 = vadd.f32 %v4696, 1.0
      %v4705 = vadd.f32 %v4697, 1.0
      %v4706 = vadd.f32 %v4698, 1.0
      %v4707 = vadd.f32 %v4699, 1.0
      %v4708 = vadd.f32 %v4700, 1.0
      %v4709 = vadd.f32 %v4701, 1.0
      %v4710 = vadd.f32 %v4702, 1.0
      %v4711 = vmul.f32 %v4647, %v4703
      %v4712 = vmul.f32 %v4648, %v4704
      %v4713 = vmul.f32 %v4649, %v4705
      %v4714 = vmul.f32 %v4650, %v4706
      %v4715 = vmul.f32 %v4651, %v4707
      %v4716 = vmul.f32 %v4652, %v4708
      %v4717 = vmul.f32 %v4653, %v4709
      %v4718 = vmul.f32 %v4654, %v4710
      %v4719 = vpack.c.bf16 %v4712, %v4711
      %v4720 = vpack.c.bf16 %v4714, %v4713
      %v4721 = vpack.c.bf16 %v4716, %v4715
      %v4722 = vpack.c.bf16 %v4718, %v4717
      %s4723 = smul.addr %s2569, 4
      %s4724 = scalar_lea.vmem [#allocation22], %s4723
      %v4725 = vld [vmem:[%s4724] sm:$0xf]
      %v4726 = vld [vmem:[%s4724 + $0x4] sm:$0xf]
      %v4727 = vld [vmem:[%s4724 + $0x8] sm:$0xf]
      %v4728 = vld [vmem:[%s4724 + $0xc] sm:$0xf]
      %v4729 = vld [vmem:[%s4724 + $0x10] sm:$0xf]
      %v4730 = vld [vmem:[%s4724 + $0x14] sm:$0xf]
      %v4731 = vld [vmem:[%s4724 + $0x18] sm:$0xf]
      %v4732 = vld [vmem:[%s4724 + $0x1c] sm:$0xf]
      %v4733 = vld [vmem:[%s4724 + $0x20] sm:$0xf]
      %v4734 = vld [vmem:[%s4724 + $0x24] sm:$0xf]
      %v4735 = vld [vmem:[%s4724 + $0x28] sm:$0xf]
      %v4736 = vld [vmem:[%s4724 + $0x2c] sm:$0xf]
      %v4737 = vld [vmem:[%s4724 + $0x30] sm:$0xf]
      %v4738 = vld [vmem:[%s4724 + $0x34] sm:$0xf]
      %v4739 = vld [vmem:[%s4724 + $0x38] sm:$0xf]
      %v4740 = vld [vmem:[%s4724 + $0x3c] sm:$0xf]
      %v4757 = vunpack.c.l.b16 %v4725
      %v4758 = vunpack.c.l.b16 %v4726
      %v4759 = vunpack.c.l.b16 %v4727
      %v4760 = vunpack.c.l.b16 %v4728
      %v4761 = vunpack.c.l.b16 %v4729
      %v4762 = vunpack.c.l.b16 %v4730
      %v4763 = vunpack.c.l.b16 %v4731
      %v4764 = vunpack.c.l.b16 %v4732
      %v4765 = vunpack.c.l.b16 %v4733
      %v4766 = vunpack.c.l.b16 %v4734
      %v4767 = vunpack.c.l.b16 %v4735
      %v4768 = vunpack.c.l.b16 %v4736
      %v4769 = vunpack.c.l.b16 %v4737
      %v4770 = vunpack.c.l.b16 %v4738
      %v4771 = vunpack.c.l.b16 %v4739
      %v4772 = vunpack.c.l.b16 %v4740
      %v4773 = vpack.c.b16 %v4758, %v4757
      %v4774 = vpack.c.b16 %v4760, %v4759
      %v4775 = vpack.c.b16 %v4762, %v4761
      %v4776 = vpack.c.b16 %v4764, %v4763
      %v4777 = vpack.c.b16 %v4766, %v4765
      %v4778 = vpack.c.b16 %v4768, %v4767
      %v4779 = vpack.c.b16 %v4770, %v4769
      %v4780 = vpack.c.b16 %v4772, %v4771
      %4789 = vmatprep.subr.bf16.mxu0 0
      %4790 = vmatpush1.bf16.msra.mxu0 %v4773
      %4791 = vmatprep.subr.bf16.mxu0 0
      %4792 = vmatpush1.bf16.msra.mxu0 %v4774
      %4793 = vmatprep.subr.bf16.mxu0 0
      %4794 = vmatpush1.bf16.msra.mxu0 %v4775
      %4795 = vmatprep.subr.bf16.mxu0 0
      %4796 = vmatpush1.bf16.msra.mxu0 %v4776
      %4797 = vmatprep.subr.bf16.mxu0 0
      %4798 = vmatpush1.bf16.msra.mxu0 %v4777
      %4799 = vmatprep.subr.bf16.mxu0 0
      %4800 = vmatpush1.bf16.msra.mxu0 %v4778
      %4801 = vmatprep.subr.bf16.mxu0 0
      %4802 = vmatpush1.bf16.msra.mxu0 %v4779
      %4803 = vmatprep.subr.bf16.mxu0 0
      %4804 = vmatpush1.bf16.msra.mxu0 %v4780
      %4805 = vmatprep.subr.bf16.mxu0 0
      %4806 = vmatpush1.bf16.msra.mxu0 0
      %4807 = vmatprep.subr.bf16.mxu0 0
      %4808 = vmatpush1.bf16.msra.mxu0 0
      %4809 = vmatprep.subr.bf16.mxu0 0
      %4810 = vmatpush1.bf16.msra.mxu0 0
      %4811 = vmatprep.subr.bf16.mxu0 0
      %4812 = vmatpush1.bf16.msra.mxu0 0
      %4813 = vmatprep.subr.bf16.mxu0 0
      %4814 = vmatpush1.bf16.msra.mxu0 0
      %4815 = vmatprep.subr.bf16.mxu0 0
      %4816 = vmatpush1.bf16.msra.mxu0 0
      %4817 = vmatprep.subr.bf16.mxu0 0
      %4818 = vmatpush1.bf16.msra.mxu0 0
      %4819 = vmatprep.subr.bf16.mxu0 0
      %4820 = vmatpush1.bf16.msra.mxu0 0
      %4821 = vmatprep.mubr.bf16.mxu0 0
      %4822 = vmatmul.mubr.bf16.gmra.mrb[0].mxu0 %v4719
      %v4823 = vpop.f32.mrb[0].mxu0
      %v4824 = vadd.f32 0.0, %v4823
      %v4825 = vpop.f32.mrb[0].mxu0
      %v4826 = vpop.f32.mrb[0].mxu0
      %v4827 = vadd.f32 0.0, %v4826
      %v4828 = vpop.f32.mrb[0].mxu0
      %4829 = vmatprep.mubr.bf16.mxu0 0
      %4830 = vmatmul.mubr.bf16.gmra.mrb[0].mxu0 %v4720
      %v4831 = vpop.f32.mrb[0].mxu0
      %v4832 = vadd.f32 0.0, %v4831
      %v4833 = vpop.f32.mrb[0].mxu0
      %v4834 = vpop.f32.mrb[0].mxu0
      %v4835 = vadd.f32 0.0, %v4834
      %v4836 = vpop.f32.mrb[0].mxu0
      %4837 = vmatprep.mubr.bf16.mxu0 0
      %4838 = vmatmul.mubr.bf16.gmra.mrb[0].mxu0 %v4721
      %v4839 = vpop.f32.mrb[0].mxu0
      %v4840 = vadd.f32 0.0, %v4839
      %v4841 = vpop.f32.mrb[0].mxu0
      %v4842 = vpop.f32.mrb[0].mxu0
      %v4843 = vadd.f32 0.0, %v4842
      %v4844 = vpop.f32.mrb[0].mxu0
      %4845 = vmatprep.mubr.bf16.mxu0 0
      %4846 = vmatmul.mubr.bf16.gmra.mrb[0].mxu0 %v4722
      %v4847 = vpop.f32.mrb[0].mxu0
      %v4848 = vadd.f32 0.0, %v4847
      %v4849 = vpop.f32.mrb[0].mxu0
      %v4850 = vpop.f32.mrb[0].mxu0
      %v4851 = vadd.f32 0.0, %v4850
      %v4852 = vpop.f32.mrb[0].mxu0
      %4853 = vdwg.mxu0
      %v4854 = vadd.f32 %v4360, %v4824
      %v4855 = vadd.f32 %v4361, %v4827
      %v4856 = vadd.f32 %v4362, %v4832
      %v4857 = vadd.f32 %v4363, %v4835
      %v4858 = vadd.f32 %v4364, %v4840
      %v4859 = vadd.f32 %v4365, %v4843
      %v4860 = vadd.f32 %v4366, %v4848
      %v4861 = vadd.f32 %v4367, %v4851
      %s4862 = scalar_lea.vmem %s23, %s2416
      %v4863 = vld [vmem:[%s4862] sm:$0x1]
      %v4865 = vlaneseq
      %v4866 = vshrl.u32 %v4865, 7
      %v4867 = vsub.s32 0, %v4866
      %v4868 = vrot.slane %v4863, %v4867
      %v4870 = vadd.f32 %v4854, %v4868
      %v4871 = vadd.f32 %v4855, %v4868
      %v4872 = vadd.f32 %v4856, %v4868
      %v4873 = vadd.f32 %v4857, %v4868
      %v4874 = vadd.f32 %v4858, %v4868
      %v4875 = vadd.f32 %v4859, %v4868
      %v4876 = vadd.f32 %v4860, %v4868
      %v4877 = vadd.f32 %v4861, %v4868
    $region162: #{tpu_custom_call.1} parent=1 // loop_footer
      %s2420 = sadd.s32 1, %s2416
    $region163: #{tpu_custom_call.1} parent=1 // loop_footer_branch
      %2415 = sbr.rel target = $region159
    $region164: #{tpu_custom_call.1} parent=1 // loop_exit
      _
    %v4878 = vld [vmem:[%s24] sm:$0x1]
    %v4879 = vld [vmem:[%s25] sm:$0x1]
    %v4880 = vmul.f32 %v2421, %v261
    %v4881 = vmul.f32 %v2422, %v261
    %v4882 = vmul.f32 %v2423, %v261
    %v4883 = vmul.f32 %v2424, %v261
    %v4884 = vmul.f32 %v2425, %v261
    %v4885 = vmul.f32 %v2426, %v261
    %v4886 = vmul.f32 %v2427, %v261
    %v4887 = vmul.f32 %v2428, %v261
    %4888 = vadd.xlane.f32.xlu0 %v4880
    %v4889 = vpop.xlane.xlu0 %4888
    %4890 = vadd.xlane.f32.xlu0 %v4881
    %v4891 = vpop.xlane.xlu0 %4890
    %4892 = vadd.xlane.f32.xlu0 %v4882
    %v4893 = vpop.xlane.xlu0 %4892
    %4894 = vadd.xlane.f32.xlu0 %v4883
    %v4895 = vpop.xlane.xlu0 %4894
    %4896 = vadd.xlane.f32.xlu0 %v4884
    %v4897 = vpop.xlane.xlu0 %4896
    %4898 = vadd.xlane.f32.xlu0 %v4885
    %v4899 = vpop.xlane.xlu0 %4898
    %4900 = vadd.xlane.f32.xlu0 %v4886
    %v4901 = vpop.xlane.xlu0 %4900
    %4902 = vadd.xlane.f32.xlu0 %v4887
    %v4903 = vpop.xlane.xlu0 %4902
    %v4904 = vmul.f32 %v4889, 0.03125
    %v4905 = vmul.f32 %v4891, 0.03125
    %v4906 = vmul.f32 %v4893, 0.03125
    %v4907 = vmul.f32 %v4895, 0.03125
    %v4908 = vmul.f32 %v4897, 0.03125
    %v4909 = vmul.f32 %v4899, 0.03125
    %v4910 = vmul.f32 %v4901, 0.03125
    %v4911 = vmul.f32 %v4903, 0.03125
    %v4912 = vsub.f32 %v2421, %v4904
    %v4913 = vsub.f32 %v2422, %v4905
    %v4914 = vsub.f32 %v2423, %v4906
    %v4915 = vsub.f32 %v2424, %v4907
    %v4916 = vsub.f32 %v2425, %v4908
    %v4917 = vsub.f32 %v2426, %v4909
    %v4918 = vsub.f32 %v2427, %v4910
    %v4919 = vsub.f32 %v2428, %v4911
    %v4920 = vmul.f32 %v4912, %v261
    %v4921 = vmul.f32 %v4913, %v261
    %v4922 = vmul.f32 %v4914, %v261
    %v4923 = vmul.f32 %v4915, %v261
    %v4924 = vmul.f32 %v4916, %v261
    %v4925 = vmul.f32 %v4917, %v261
    %v4926 = vmul.f32 %v4918, %v261
    %v4927 = vmul.f32 %v4919, %v261
    %v4928 = vmul.f32 %v4920, %v4920
    %v4929 = vmul.f32 %v4921, %v4921
    %v4930 = vmul.f32 %v4922, %v4922
    %v4931 = vmul.f32 %v4923, %v4923
    %v4932 = vmul.f32 %v4924, %v4924
    %v4933 = vmul.f32 %v4925, %v4925
    %v4934 = vmul.f32 %v4926, %v4926
    %v4935 = vmul.f32 %v4927, %v4927
    %4936 = vadd.xlane.f32.xlu0 %v4928
    %v4937 = vpop.xlane.xlu0 %4936
    %4938 = vadd.xlane.f32.xlu0 %v4929
    %v4939 = vpop.xlane.xlu0 %4938
    %4940 = vadd.xlane.f32.xlu0 %v4930
    %v4941 = vpop.xlane.xlu0 %4940
    %4942 = vadd.xlane.f32.xlu0 %v4931
    %v4943 = vpop.xlane.xlu0 %4942
    %4944 = vadd.xlane.f32.xlu0 %v4932
    %v4945 = vpop.xlane.xlu0 %4944
    %4946 = vadd.xlane.f32.xlu0 %v4933
    %v4947 = vpop.xlane.xlu0 %4946
    %4948 = vadd.xlane.f32.xlu0 %v4934
    %v4949 = vpop.xlane.xlu0 %4948
    %4950 = vadd.xlane.f32.xlu0 %v4935
    %v4951 = vpop.xlane.xlu0 %4950
    %v4952 = vmul.f32 %v4937, 0.03125
    %v4953 = vmul.f32 %v4939, 0.03125
    %v4954 = vmul.f32 %v4941, 0.03125
    %v4955 = vmul.f32 %v4943, 0.03125
    %v4956 = vmul.f32 %v4945, 0.03125
    %v4957 = vmul.f32 %v4947, 0.03125
    %v4958 = vmul.f32 %v4949, 0.03125
    %v4959 = vmul.f32 %v4951, 0.03125
    %v4960 = vadd.f32 %v4952, 1e-05
    %v4961 = vadd.f32 %v4953, 1e-05
    %v4962 = vadd.f32 %v4954, 1e-05
    %v4963 = vadd.f32 %v4955, 1e-05
    %v4964 = vadd.f32 %v4956, 1e-05
    %v4965 = vadd.f32 %v4957, 1e-05
    %v4966 = vadd.f32 %v4958, 1e-05
    %v4967 = vadd.f32 %v4959, 1e-05
    %v4968 = vrsqrt.pop %v4960
    %v4969 = vrsqrt.pop %v4961
    %v4970 = vrsqrt.pop %v4962
    %v4971 = vrsqrt.pop %v4963
    %v4972 = vrsqrt.pop %v4964
    %v4973 = vrsqrt.pop %v4965
    %v4974 = vrsqrt.pop %v4966
    %v4975 = vrsqrt.pop %v4967
    %v4976 = vmul.f32 %v4920, %v4968
    %v4977 = vmul.f32 %v4921, %v4969
    %v4978 = vmul.f32 %v4922, %v4970
    %v4979 = vmul.f32 %v4923, %v4971
    %v4980 = vmul.f32 %v4924, %v4972
    %v4981 = vmul.f32 %v4925, %v4973
    %v4982 = vmul.f32 %v4926, %v4974
    %v4983 = vmul.f32 %v4927, %v4975
    %v4985 = vlaneseq
    %v4986 = vshrl.u32 %v4985, 7
    %v4987 = vsub.s32 0, %v4986
    %v4988 = vrot.slane %v4878, %v4987
    %v4990 = vmul.f32 %v4976, %v4988
    %v4991 = vmul.f32 %v4977, %v4988
    %v4992 = vmul.f32 %v4978, %v4988
    %v4993 = vmul.f32 %v4979, %v4988
    %v4994 = vmul.f32 %v4980, %v4988
    %v4995 = vmul.f32 %v4981, %v4988
    %v4996 = vmul.f32 %v4982, %v4988
    %v4997 = vmul.f32 %v4983, %v4988
    %v4999 = vlaneseq
    %v5000 = vshrl.u32 %v4999, 7
    %v5001 = vsub.s32 0, %v5000
    %v5002 = vrot.slane %v4879, %v5001
    %v5004 = vadd.f32 %v4990, %v5002
    %v5005 = vadd.f32 %v4991, %v5002
    %v5006 = vadd.f32 %v4992, %v5002
    %v5007 = vadd.f32 %v4993, %v5002
    %v5008 = vadd.f32 %v4994, %v5002
    %v5009 = vadd.f32 %v4995, %v5002
    %v5010 = vadd.f32 %v4996, %v5002
    %v5011 = vadd.f32 %v4997, %v5002
    %v5012 = vadd.f32 %v5004, %v5005
    %v5013 = vadd.f32 %v5012, %v5006
    %v5014 = vadd.f32 %v5013, %v5007
    %v5015 = vrot.slane %v5014, 4
    %v5016 = vadd.f32 %v5014, %v5015
    %v5017 = vrot.slane %v5016, 2
    %v5018 = vadd.f32 %v5016, %v5017
    %v5019 = vrot.slane %v5018, 1
    %v5020 = vadd.f32 %v5018, %v5019
    %v5021 = vrcp.pop 32.0
    %v5022 = vmul.f32 %v5020, %v5021
    %5023 = vst [vmem:[#allocation23] sm:$0x1] %v5022
    %v5024 = vadd.f32 %v5008, %v5009
    %v5025 = vadd.f32 %v5024, %v5010
    %v5026 = vadd.f32 %v5025, %v5011
    %v5027 = vrot.slane %v5026, 4
    %v5028 = vadd.f32 %v5026, %v5027
    %v5029 = vrot.slane %v5028, 2
    %v5030 = vadd.f32 %v5028, %v5029
    %v5031 = vrot.slane %v5030, 1
    %v5032 = vadd.f32 %v5030, %v5031
    %v5033 = vmul.f32 %v5032, %v5021
    %s5034 = scalar_lea.vmem [#allocation23], 1
    %5035 = vst [vmem:[%s5034] sm:$0x1] %v5033
    // Predicated region
    $region165: #{tpu_custom_call.1} parent=1 // pred_check
      _
    $region166: #{tpu_custom_call.1} parent=1 // pred_check_branch
      %5037 = sbr.rel (0) target = $region168
    $region167: #{tpu_custom_call.1} parent=1 // pred_region
      %s5039 = ssub.s32 32, 32
      %5040 = vsyncadd [#allocation4], %s5039
      %s5041 = sshll.u32 [#allocation23], 4
      %s5042 = int_to_ptr.vmem [resolvable:$true] %s5041
      %5047 = dma.vmem_to_hbm [thread:$0]  %s5042, 32, %s26, [#allocation4], 16, 16, 1
    $region168: #{tpu_custom_call.1} parent=1 // pred_fallthru
      _
    // Predicated region
    $region169: #{tpu_custom_call.1} parent=1 // pred_check
      _
    $region170: #{tpu_custom_call.1} parent=1 // pred_check_branch
      %5049 = sbr.rel (0) target = $region172
    $region171: #{tpu_custom_call.1} parent=1 // pred_region
      %5050 = dma.done [#allocation4], 32
    $region172: #{tpu_custom_call.1} parent=1 // pred_fallthru
      _
    %5051 = vsyncpa [#allocation3], 1
    %5052 = vsyncpa [#allocation6], 1
    %5053 = vsyncpa [#allocation9], 1
    %5054 = vsyncpa [#allocation12], 1
    %5055 = vsyncpa [#allocation15], 1
    %5056 = vsyncpa [#allocation18], 1
    %5057 = vsyncpa [#allocation21], 1
    %5058 = vsyncpa [#allocation4], 1

</llo_original>
